<compile_context>
chip_gen: v6e
topology: v6e:2x2x1
jax: 0.10.0
libtpu: 0.0.40
codegen_flags: <defaults>
</compile_context>

<pallas_src>
import functools

import jax
import jax.numpy as jnp
from jax.experimental import pallas as pl
from jax.experimental.pallas import tpu as pltpu

EPS = 1e-5


def _silu(y):
    # sigmoid(y) = 0.5 * (1 + tanh(y/2)): tanh runs on the EUP (its own issue
    # slot), avoiding the VALU divide of 1/(1+exp(-y)); numerically exact.
    return y * (0.5 * jnp.tanh(0.5 * y) + 0.5)


def _bn_act(y, gamma, beta, n, cc, act, inv_m):
    """Training-mode BatchNorm (+ optional SiLU) on sample-major (n*cc, HW) rows.

    Single-pass (sum / sum-of-squares) statistics; per-channel stats combine the
    n per-sample row sums.
    TODO(synk): switch to a two-pass / Welford reduction if run at scales where
    E[x^2]-E[x]^2 cancellation matters (fine at this size / tolerance).
    """
    s1 = jnp.sum(y, axis=1, keepdims=True)            # (n*cc, 1)
    s2 = jnp.sum(y * y, axis=1, keepdims=True)        # (n*cc, 1)
    c1s, c2s = s1[0:cc], s2[0:cc]
    for i in range(1, n):
        c1s = c1s + s1[i * cc:(i + 1) * cc]
        c2s = c2s + s2[i * cc:(i + 1) * cc]
    mean = c1s * inv_m                                 # (cc, 1)
    var = c2s * inv_m - mean * mean                    # biased variance
    inv_std = jax.lax.rsqrt(var + EPS)
    scale = gamma * inv_std                            # (cc, 1)
    shift = beta - mean * scale                        # (cc, 1)
    if n > 1:                                          # broadcast back to rows
        scale = jnp.concatenate([scale] * n, axis=0)   # (n*cc, 1)
        shift = jnp.concatenate([shift] * n, axis=0)
    y = y * scale + shift
    if act:
        y = _silu(y)
    return y


def _pointwise_conv(row, n, cin, cout, w_pw):
    """1x1 conv as per-sample Cin broadcast multiply-adds on the VPU.

    row(i, ci) -> (1, HW) input row of sample i, channel ci.
    Returns (n*cout, HW) sample-major.  MXU is deliberately skipped: at these
    channel counts it would be >94% idle.
    """
    blocks = []
    for i in range(n):
        acc = None
        for ci in range(cin):
            t = w_pw[:, ci:ci + 1] * row(i, ci)        # (cout, HW)
            acc = t if acc is None else acc + t
        blocks.append(acc)
    return blocks[0] if n == 1 else jnp.concatenate(blocks, axis=0)


def _depthwise_conv5x5(a, w_rows, masks, w, hw):
    """Depthwise 5x5, pad=2, on sample-major (n*cc, HW) rows.

    Each tap is a static lane roll of the per-image flat layout.  Any lane that
    wraps around corresponds to a position whose true neighbour is outside the
    HxW image, so the per-tap border mask zeroes it: roll + mask is bit-identical
    to the zero-padded reference conv.  Taps accumulate into one partial per
    kernel row (5 independent chains) so the VALU slots can fill.
    """
    parts = []
    for kh in range(5):
        acc = None
        for kw in range(5):
            dh, dw = kh - 2, kw - 2
            d = dh * w + dw                            # flat lane shift of this tap
            t = kh * 5 + kw
            s = (-d) % hw
            if s == 0:                                 # centre tap: mask is all-true
                tap = a * w_rows[:, t:t + 1]
            else:
                shifted = pltpu.roll(a, shift=s, axis=1)   # XLU, co-issues with FMAs
                tap = jnp.where(masks[t], shifted, 0.0) * w_rows[:, t:t + 1]
            acc = tap if acc is None else acc + tap
        parts.append(acc)
    return (parts[0] + parts[1]) + (parts[2] + parts[3]) + parts[4]


def _gsconv_stage(row, n, cin, cc, w_pw, g_pw, b_pw, w_dw, g_dw, b_dw,
                  masks, w, hw, act, inv_m):
    """One GSConv minus its channel shuffle (folded into host-side weight perms).

    Returns (pw_out, dw_out), each (n*cc, HW) sample-major.
    """
    pw = _bn_act(_pointwise_conv(row, n, cin, cc, w_pw),
                 g_pw, b_pw, n, cc, act, inv_m)
    w_dw_rows = w_dw if n == 1 else jnp.concatenate([w_dw] * n, axis=0)
    dwv = _bn_act(_depthwise_conv5x5(pw, w_dw_rows, masks, w, hw),
                  g_dw, b_dw, n, cc, act, inv_m)
    return pw, dwv


def _gs_bottleneck_kernel(x_ref, pos_ref, p_ref, o_ref, *,
                          n, c1, cc1, cc2, h, w):
    hw = h * w
    inv_m = 1.0 / (n * hw)
    c2 = 2 * cc2
    hc = cc2 // 2
    pw_w = max(c1, 2 * cc1)
    bcol = pw_w + 25

    # 25 border masks (shared by both stages) from the packed lane->(x, y) map.
    pos = pos_ref[...]
    wpos = pos[0:1, :]
    hpos = pos[1:2, :]
    masks = []
    for kh in range(5):
        for kw in range(5):
            dh, dw = kh - 2, kw - 2
            masks.append((wpos + dw >= 0) & (wpos + dw < w) &
                         (hpos + dh >= 0) & (hpos + dh < h))

    # Unpack the single packed parameter buffer.
    P = p_ref[...]
    w_pw1 = P[0:cc1, 0:c1]
    w_pw2 = P[cc1:cc1 + cc2, 0:2 * cc1]
    w_dw1 = P[0:cc1, pw_w:pw_w + 25]
    w_dw2 = P[cc1:cc1 + cc2, pw_w:pw_w + 25]
    g_pw1, b_pw1 = P[0:cc1, bcol:bcol + 1], P[0:cc1, bcol + 1:bcol + 2]
    g_dw1, b_dw1 = P[0:cc1, bcol + 2:bcol + 3], P[0:cc1, bcol + 3:bcol + 4]
    g_pw2, b_pw2 = P[cc1:, bcol:bcol + 1], P[cc1:, bcol + 1:bcol + 2]
    g_dw2, b_dw2 = P[cc1:, bcol + 2:bcol + 3], P[cc1:, bcol + 3:bcol + 4]

    x = x_ref[...]                                     # (n*c1, HW), sample-major

    # Stage 1: GSConv(c1 -> 2*cc1), SiLU.  Its output shuffle is folded into the
    # column permutation of w_pw2 done in the wrapper.
    pw1, dw1 = _gsconv_stage(
        lambda i, ci: x[i * c1 + ci:i * c1 + ci + 1, :],
        n, c1, cc1, w_pw1, g_pw1, b_pw1, w_dw1, g_dw1, b_dw1,
        masks, w, hw, True, inv_m)

    # Stage 2: GSConv(2*cc1 -> 2*cc2), Identity.  Reads stage 1's natural
    # [pw | dw] channel order directly (no intermediate concat materialized).
    def s1_row(i, ci):
        if ci < cc1:
            return pw1[i * cc1 + ci:i * cc1 + ci + 1, :]
        j = ci - cc1
        return dw1[i * cc1 + j:i * cc1 + j + 1, :]

    pw2, dw2 = _gsconv_stage(
        s1_row, n, 2 * cc1, cc2, w_pw2, g_pw2, b_pw2, w_dw2, g_dw2, b_dw2,
        masks, w, hw, False, inv_m)

    # The stage-2 channel shuffle was folded into a row permutation of the
    # stage-2 params, so the final channel order is just contiguous slices.
    for i in range(n):
        ob, pb = i * c2, i * cc2
        o_ref[ob:ob + hc, :] = pw2[pb:pb + hc, :]
        o_ref[ob + hc:ob + cc2, :] = dw2[pb:pb + hc, :]
        o_ref[ob + cc2:ob + cc2 + hc, :] = pw2[pb + hc:pb + cc2, :]
        o_ref[ob + cc2 + hc:ob + c2, :] = dw2[pb + hc:pb + cc2, :]


def _full_block(shape):
    zeros = (0,) * len(shape)
    return pl.BlockSpec(shape, lambda i, _z=zeros: _z)


def _even_odd(c):
    return list(range(0, c, 2)) + list(range(1, c, 2))


def _invert(perm):
    inv = [0] * len(perm)
    for i, p in enumerate(perm):
        inv[p] = i
    return inv


def gs_bottleneck(x_nchw, params):
    """GSBottleneck forward.  x_nchw: (N, C1, H, W); params in PyTorch layouts."""
    n, c1, h, w = x_nchw.shape
    cc1 = params["w_pw1"].shape[0]            # (c2 // 2) // 2
    cc2 = params["w_pw2"].shape[0]            # c2 // 2
    c2 = 2 * cc2
    hw = h * w
    f32 = jnp.float32
    # TODO(synk): odd cc2 would need the per-row output scatter of the previous
    # version; GSBottleneck channel counts are even in practice.
    assert cc2 % 2 == 0, "stage-2 shuffle fold assumes an even channel count"

    # GS channel shuffles folded into free host-side weight permutations:
    #   stage-1 shuffle -> column permutation of w_pw2,
    #   stage-2 shuffle -> row permutation of all stage-2 params.
    inv_p1 = jnp.asarray(_invert(_even_odd(2 * cc1)), jnp.int32)
    sigma = jnp.asarray(_even_odd(cc2), jnp.int32)

    w_pw1 = params["w_pw1"].reshape(cc1, c1).astype(f32)
    w_dw1 = params["w_dw1"].reshape(cc1, 25).astype(f32)
    w_pw2 = params["w_pw2"].reshape(cc2, 2 * cc1).astype(f32)
    w_pw2 = jnp.take(jnp.take(w_pw2, sigma, axis=0), inv_p1, axis=1)
    w_dw2 = jnp.take(params["w_dw2"].reshape(cc2, 25).astype(f32), sigma, axis=0)

    def col(v, perm=None):
        v = v.reshape(-1).astype(f32)
        return v if perm is None else jnp.take(v, perm, axis=0)

    # One packed parameter buffer: rows = channels of [stage1 | stage2], columns
    # = [pointwise weights | 25 depthwise taps | g_pw, b_pw, g_dw, b_dw].
    pw_w = max(c1, 2 * cc1)
    pbuf = jnp.zeros((cc1 + cc2, pw_w + 29), f32)
    pbuf = pbuf.at[:cc1, :c1].set(w_pw1)
    pbuf = pbuf.at[cc1:, :2 * cc1].set(w_pw2)
    pbuf = pbuf.at[:cc1, pw_w:pw_w + 25].set(w_dw1)
    pbuf = pbuf.at[cc1:, pw_w:pw_w + 25].set(w_dw2)
    bn1 = jnp.stack([col(params["g_pw1"]), col(params["b_pw1"]),
                     col(params["g_dw1"]), col(params["b_dw1"])], axis=1)
    bn2 = jnp.stack([col(params["g_pw2"], sigma), col(params["b_pw2"], sigma),
                     col(params["g_dw2"], sigma), col(params["b_dw2"], sigma)],
                    axis=1)
    pbuf = pbuf.at[:cc1, pw_w + 25:].set(bn1)
    pbuf = pbuf.at[cc1:, pw_w + 25:].set(bn2)

    # Lane -> (x, y) position map for the in-kernel depthwise border masks.
    lane = jnp.arange(hw, dtype=jnp.int32)
    pos = jnp.stack([lane % w, lane // w], axis=0)     # (2, HW) int32

    # Glue is contiguous reshapes only (free): no transposes, no padding.
    x2d = x_nchw.reshape(n * c1, hw).astype(f32)

    kernel = functools.partial(_gs_bottleneck_kernel,
                               n=n, c1=c1, cc1=cc1, cc2=cc2, h=h, w=w)
    out = pl.pallas_call(
        kernel,
        out_shape=jax.ShapeDtypeStruct((n * c2, hw), f32),
        grid=(1,),
        in_specs=[_full_block(x2d.shape), _full_block(pos.shape),
                  _full_block(pbuf.shape)],
        out_specs=_full_block((n * c2, hw)),
        compiler_params=pltpu.CompilerParams(dimension_semantics=("arbitrary",)),
    )(x2d, pos, pbuf)
    return out.reshape(n, c2, h, w)


# ---------------- pure-JAX reference (literal translation of the PyTorch module) ----


def _conv_bn_ref(x, wgt, gamma, beta, *, padding, groups, act):
    y = jax.lax.conv_general_dilated(
        x.astype(jnp.float32), wgt.astype(jnp.float32),
        window_strides=(1, 1),
        padding=((padding, padding), (padding, padding)),
        dimension_numbers=("NCHW", "OIHW", "NCHW"),
        feature_group_count=groups)
    mean = jnp.mean(y, axis=(0, 2, 3), keepdims=True)
    var = jnp.mean((y - mean) ** 2, axis=(0, 2, 3), keepdims=True)
    y = (y - mean) * jax.lax.rsqrt(var + EPS)
    y = y * gamma.reshape(1, -1, 1, 1) + beta.reshape(1, -1, 1, 1)
    if act:
        y = y * jax.nn.sigmoid(y)
    return y


def _gsconv_ref(x, w_pw, g_pw, b_pw, w_dw, g_dw, b_dw, act):
    x1 = _conv_bn_ref(x, w_pw, g_pw, b_pw, padding=0, groups=1, act=act)
    x2b = _conv_bn_ref(x1, w_dw, g_dw, b_dw, padding=2, groups=x1.shape[1], act=act)
    x2 = jnp.concatenate([x1, x2b], axis=1)
    b, c, h, w = x2.shape
    y = x2.reshape(b * c // 2, 2, h * w)
    y = jnp.transpose(y, (1, 0, 2))
    y = y.reshape(2, -1, c // 2, h, w)
    return jnp.concatenate([y[0], y[1]], axis=1)


def _gs_bottleneck_ref(x, p):
    y = _gsconv_ref(x, p["w_pw1"], p["g_pw1"], p["b_pw1"],
                    p["w_dw1"], p["g_dw1"], p["b_dw1"], act=True)
    return _gsconv_ref(y, p["w_pw2"], p["g_pw2"], p["b_pw2"],
                       p["w_dw2"], p["g_dw2"], p["b_dw2"], act=False)


if __name__ == "__main__":
    # GSBottleneck(c1=4, c2=8); input (N=2, C=4, H=W=16).
    N, C1, C2, H, W = 2, 4, 8, 16, 16
    c_hidden = C2 // 2            # GSConv1 output channels
    cc1 = c_hidden // 2           # GSConv1 internal width (pointwise/depthwise channels)
    cc2 = C2 // 2                 # GSConv2 internal width

    key = jax.random.PRNGKey(0)
    ks = jax.random.split(key, 13)
    params = {
        "w_pw1": 0.5 * jax.random.normal(ks[0], (cc1, C1, 1, 1), jnp.float32),
        "w_dw1": 0.5 * jax.random.normal(ks[1], (cc1, 1, 5, 5), jnp.float32),
        "w_pw2": 0.5 * jax.random.normal(ks[2], (cc2, c_hidden, 1, 1), jnp.float32),
        "w_dw2": 0.5 * jax.random.normal(ks[3], (cc2, 1, 5, 5), jnp.float32),
        "g_pw1": 1.0 + 0.1 * jax.random.normal(ks[4], (cc1,), jnp.float32),
        "b_pw1": 0.1 * jax.random.normal(ks[5], (cc1,), jnp.float32),
        "g_dw1": 1.0 + 0.1 * jax.random.normal(ks[6], (cc1,), jnp.float32),
        "b_dw1": 0.1 * jax.random.normal(ks[7], (cc1,), jnp.float32),
        "g_pw2": 1.0 + 0.1 * jax.random.normal(ks[8], (cc2,), jnp.float32),
        "b_pw2": 0.1 * jax.random.normal(ks[9], (cc2,), jnp.float32),
        "g_dw2": 1.0 + 0.1 * jax.random.normal(ks[10], (cc2,), jnp.float32),
        "b_dw2": 0.1 * jax.random.normal(ks[11], (cc2,), jnp.float32),
    }
    x = jax.random.normal(ks[12], (N, C1, H, W), dtype=jnp.float32)

    out = gs_bottleneck(x, params)
    out = jax.block_until_ready(out)

    ref = _gs_bottleneck_ref(x, params)
    assert out.shape == ref.shape == (N, C2, H, W), (out.shape, ref.shape)
    err = float(jnp.max(jnp.abs(out - ref)))
    assert err < 1e-3, err

    print("KERNEL_OK")
</pallas_src>

<mosaic_0001>
module attributes {stable_mosaic.version = 11 : i64} {
  func.func @_gs_bottleneck_kernel(%arg0: i32, %arg1: memref<8x256xf32, #tpu.memory_space<vmem>>, %arg2: memref<2x256xi32, #tpu.memory_space<vmem>>, %arg3: memref<6x33xf32, #tpu.memory_space<vmem>>, %arg4: memref<16x256xf32, #tpu.memory_space<vmem>>) attributes {dimension_semantics = [#tpu.dimension_semantics<arbitrary>], iteration_bounds = array<i64: 1>, scalar_prefetch = 0 : i64, scratch_operands = 0 : i64, tpu.core_type = #tpu.core_type<tc>, window_params = [{pipeline_mode = #tpu.pipeline_mode<synchronous>, transform_indices = @transform_0, window_bounds = array<i64: 8, 256>}, {pipeline_mode = #tpu.pipeline_mode<synchronous>, transform_indices = @transform_1, window_bounds = array<i64: 2, 256>}, {pipeline_mode = #tpu.pipeline_mode<synchronous>, transform_indices = @transform_2, window_bounds = array<i64: 6, 33>}, {pipeline_mode = #tpu.pipeline_mode<synchronous>, transform_indices = @transform_3, window_bounds = array<i64: 16, 256>}]} {
    %c0 = arith.constant 0 : index
    %c0_0 = arith.constant 0 : index
    %0 = vector.load %arg2[%c0, %c0_0] : memref<2x256xi32, #tpu.memory_space<vmem>>, vector<2x256xi32>
    %1 = vector.extract_strided_slice %0 {offsets = [0, 0], sizes = [1, 256], strides = [1, 1]} : vector<2x256xi32> to vector<1x256xi32>
    %2 = vector.extract_strided_slice %0 {offsets = [1, 0], sizes = [1, 256], strides = [1, 1]} : vector<2x256xi32> to vector<1x256xi32>
    %c-2_i32 = arith.constant -2 : i32
    %3 = vector.broadcast %c-2_i32 : i32 to vector<1x256xi32>
    %4 = arith.addi %1, %3 : vector<1x256xi32>
    %c0_i32 = arith.constant 0 : i32
    %5 = vector.broadcast %c0_i32 : i32 to vector<1x256xi32>
    %6 = arith.cmpi sge, %4, %5 : vector<1x256xi32>
    %c-2_i32_1 = arith.constant -2 : i32
    %7 = vector.broadcast %c-2_i32_1 : i32 to vector<1x256xi32>
    %8 = arith.addi %1, %7 : vector<1x256xi32>
    %c16_i32 = arith.constant 16 : i32
    %9 = vector.broadcast %c16_i32 : i32 to vector<1x256xi32>
    %10 = arith.cmpi slt, %8, %9 : vector<1x256xi32>
    %11 = arith.andi %6, %10 : vector<1x256xi1>
    %c-2_i32_2 = arith.constant -2 : i32
    %12 = vector.broadcast %c-2_i32_2 : i32 to vector<1x256xi32>
    %13 = arith.addi %2, %12 : vector<1x256xi32>
    %c0_i32_3 = arith.constant 0 : i32
    %14 = vector.broadcast %c0_i32_3 : i32 to vector<1x256xi32>
    %15 = arith.cmpi sge, %13, %14 : vector<1x256xi32>
    %16 = arith.andi %11, %15 : vector<1x256xi1>
    %c-2_i32_4 = arith.constant -2 : i32
    %17 = vector.broadcast %c-2_i32_4 : i32 to vector<1x256xi32>
    %18 = arith.addi %2, %17 : vector<1x256xi32>
    %c16_i32_5 = arith.constant 16 : i32
    %19 = vector.broadcast %c16_i32_5 : i32 to vector<1x256xi32>
    %20 = arith.cmpi slt, %18, %19 : vector<1x256xi32>
    %21 = arith.andi %16, %20 : vector<1x256xi1>
    %c-1_i32 = arith.constant -1 : i32
    %22 = vector.broadcast %c-1_i32 : i32 to vector<1x256xi32>
    %23 = arith.addi %1, %22 : vector<1x256xi32>
    %c0_i32_6 = arith.constant 0 : i32
    %24 = vector.broadcast %c0_i32_6 : i32 to vector<1x256xi32>
    %25 = arith.cmpi sge, %23, %24 : vector<1x256xi32>
    %c-1_i32_7 = arith.constant -1 : i32
    %26 = vector.broadcast %c-1_i32_7 : i32 to vector<1x256xi32>
    %27 = arith.addi %1, %26 : vector<1x256xi32>
    %c16_i32_8 = arith.constant 16 : i32
    %28 = vector.broadcast %c16_i32_8 : i32 to vector<1x256xi32>
    %29 = arith.cmpi slt, %27, %28 : vector<1x256xi32>
    %30 = arith.andi %25, %29 : vector<1x256xi1>
    %c-2_i32_9 = arith.constant -2 : i32
    %31 = vector.broadcast %c-2_i32_9 : i32 to vector<1x256xi32>
    %32 = arith.addi %2, %31 : vector<1x256xi32>
    %c0_i32_10 = arith.constant 0 : i32
    %33 = vector.broadcast %c0_i32_10 : i32 to vector<1x256xi32>
    %34 = arith.cmpi sge, %32, %33 : vector<1x256xi32>
    %35 = arith.andi %30, %34 : vector<1x256xi1>
    %c-2_i32_11 = arith.constant -2 : i32
    %36 = vector.broadcast %c-2_i32_11 : i32 to vector<1x256xi32>
    %37 = arith.addi %2, %36 : vector<1x256xi32>
    %c16_i32_12 = arith.constant 16 : i32
    %38 = vector.broadcast %c16_i32_12 : i32 to vector<1x256xi32>
    %39 = arith.cmpi slt, %37, %38 : vector<1x256xi32>
    %40 = arith.andi %35, %39 : vector<1x256xi1>
    %c0_i32_13 = arith.constant 0 : i32
    %41 = vector.broadcast %c0_i32_13 : i32 to vector<1x256xi32>
    %42 = arith.addi %1, %41 : vector<1x256xi32>
    %c0_i32_14 = arith.constant 0 : i32
    %43 = vector.broadcast %c0_i32_14 : i32 to vector<1x256xi32>
    %44 = arith.cmpi sge, %42, %43 : vector<1x256xi32>
    %c0_i32_15 = arith.constant 0 : i32
    %45 = vector.broadcast %c0_i32_15 : i32 to vector<1x256xi32>
    %46 = arith.addi %1, %45 : vector<1x256xi32>
    %c16_i32_16 = arith.constant 16 : i32
    %47 = vector.broadcast %c16_i32_16 : i32 to vector<1x256xi32>
    %48 = arith.cmpi slt, %46, %47 : vector<1x256xi32>
    %49 = arith.andi %44, %48 : vector<1x256xi1>
    %c-2_i32_17 = arith.constant -2 : i32
    %50 = vector.broadcast %c-2_i32_17 : i32 to vector<1x256xi32>
    %51 = arith.addi %2, %50 : vector<1x256xi32>
    %c0_i32_18 = arith.constant 0 : i32
    %52 = vector.broadcast %c0_i32_18 : i32 to vector<1x256xi32>
    %53 = arith.cmpi sge, %51, %52 : vector<1x256xi32>
    %54 = arith.andi %49, %53 : vector<1x256xi1>
    %c-2_i32_19 = arith.constant -2 : i32
    %55 = vector.broadcast %c-2_i32_19 : i32 to vector<1x256xi32>
    %56 = arith.addi %2, %55 : vector<1x256xi32>
    %c16_i32_20 = arith.constant 16 : i32
    %57 = vector.broadcast %c16_i32_20 : i32 to vector<1x256xi32>
    %58 = arith.cmpi slt, %56, %57 : vector<1x256xi32>
    %59 = arith.andi %54, %58 : vector<1x256xi1>
    %c1_i32 = arith.constant 1 : i32
    %60 = vector.broadcast %c1_i32 : i32 to vector<1x256xi32>
    %61 = arith.addi %1, %60 : vector<1x256xi32>
    %c0_i32_21 = arith.constant 0 : i32
    %62 = vector.broadcast %c0_i32_21 : i32 to vector<1x256xi32>
    %63 = arith.cmpi sge, %61, %62 : vector<1x256xi32>
    %c1_i32_22 = arith.constant 1 : i32
    %64 = vector.broadcast %c1_i32_22 : i32 to vector<1x256xi32>
    %65 = arith.addi %1, %64 : vector<1x256xi32>
    %c16_i32_23 = arith.constant 16 : i32
    %66 = vector.broadcast %c16_i32_23 : i32 to vector<1x256xi32>
    %67 = arith.cmpi slt, %65, %66 : vector<1x256xi32>
    %68 = arith.andi %63, %67 : vector<1x256xi1>
    %c-2_i32_24 = arith.constant -2 : i32
    %69 = vector.broadcast %c-2_i32_24 : i32 to vector<1x256xi32>
    %70 = arith.addi %2, %69 : vector<1x256xi32>
    %c0_i32_25 = arith.constant 0 : i32
    %71 = vector.broadcast %c0_i32_25 : i32 to vector<1x256xi32>
    %72 = arith.cmpi sge, %70, %71 : vector<1x256xi32>
    %73 = arith.andi %68, %72 : vector<1x256xi1>
    %c-2_i32_26 = arith.constant -2 : i32
    %74 = vector.broadcast %c-2_i32_26 : i32 to vector<1x256xi32>
    %75 = arith.addi %2, %74 : vector<1x256xi32>
    %c16_i32_27 = arith.constant 16 : i32
    %76 = vector.broadcast %c16_i32_27 : i32 to vector<1x256xi32>
    %77 = arith.cmpi slt, %75, %76 : vector<1x256xi32>
    %78 = arith.andi %73, %77 : vector<1x256xi1>
    %c2_i32 = arith.constant 2 : i32
    %79 = vector.broadcast %c2_i32 : i32 to vector<1x256xi32>
    %80 = arith.addi %1, %79 : vector<1x256xi32>
    %c0_i32_28 = arith.constant 0 : i32
    %81 = vector.broadcast %c0_i32_28 : i32 to vector<1x256xi32>
    %82 = arith.cmpi sge, %80, %81 : vector<1x256xi32>
    %c2_i32_29 = arith.constant 2 : i32
    %83 = vector.broadcast %c2_i32_29 : i32 to vector<1x256xi32>
    %84 = arith.addi %1, %83 : vector<1x256xi32>
    %c16_i32_30 = arith.constant 16 : i32
    %85 = vector.broadcast %c16_i32_30 : i32 to vector<1x256xi32>
    %86 = arith.cmpi slt, %84, %85 : vector<1x256xi32>
    %87 = arith.andi %82, %86 : vector<1x256xi1>
    %c-2_i32_31 = arith.constant -2 : i32
    %88 = vector.broadcast %c-2_i32_31 : i32 to vector<1x256xi32>
    %89 = arith.addi %2, %88 : vector<1x256xi32>
    %c0_i32_32 = arith.constant 0 : i32
    %90 = vector.broadcast %c0_i32_32 : i32 to vector<1x256xi32>
    %91 = arith.cmpi sge, %89, %90 : vector<1x256xi32>
    %92 = arith.andi %87, %91 : vector<1x256xi1>
    %c-2_i32_33 = arith.constant -2 : i32
    %93 = vector.broadcast %c-2_i32_33 : i32 to vector<1x256xi32>
    %94 = arith.addi %2, %93 : vector<1x256xi32>
    %c16_i32_34 = arith.constant 16 : i32
    %95 = vector.broadcast %c16_i32_34 : i32 to vector<1x256xi32>
    %96 = arith.cmpi slt, %94, %95 : vector<1x256xi32>
    %97 = arith.andi %92, %96 : vector<1x256xi1>
    %c-2_i32_35 = arith.constant -2 : i32
    %98 = vector.broadcast %c-2_i32_35 : i32 to vector<1x256xi32>
    %99 = arith.addi %1, %98 : vector<1x256xi32>
    %c0_i32_36 = arith.constant 0 : i32
    %100 = vector.broadcast %c0_i32_36 : i32 to vector<1x256xi32>
    %101 = arith.cmpi sge, %99, %100 : vector<1x256xi32>
    %c-2_i32_37 = arith.constant -2 : i32
    %102 = vector.broadcast %c-2_i32_37 : i32 to vector<1x256xi32>
    %103 = arith.addi %1, %102 : vector<1x256xi32>
    %c16_i32_38 = arith.constant 16 : i32
    %104 = vector.broadcast %c16_i32_38 : i32 to vector<1x256xi32>
    %105 = arith.cmpi slt, %103, %104 : vector<1x256xi32>
    %106 = arith.andi %101, %105 : vector<1x256xi1>
    %c-1_i32_39 = arith.constant -1 : i32
    %107 = vector.broadcast %c-1_i32_39 : i32 to vector<1x256xi32>
    %108 = arith.addi %2, %107 : vector<1x256xi32>
    %c0_i32_40 = arith.constant 0 : i32
    %109 = vector.broadcast %c0_i32_40 : i32 to vector<1x256xi32>
    %110 = arith.cmpi sge, %108, %109 : vector<1x256xi32>
    %111 = arith.andi %106, %110 : vector<1x256xi1>
    %c-1_i32_41 = arith.constant -1 : i32
    %112 = vector.broadcast %c-1_i32_41 : i32 to vector<1x256xi32>
    %113 = arith.addi %2, %112 : vector<1x256xi32>
    %c16_i32_42 = arith.constant 16 : i32
    %114 = vector.broadcast %c16_i32_42 : i32 to vector<1x256xi32>
    %115 = arith.cmpi slt, %113, %114 : vector<1x256xi32>
    %116 = arith.andi %111, %115 : vector<1x256xi1>
    %c-1_i32_43 = arith.constant -1 : i32
    %117 = vector.broadcast %c-1_i32_43 : i32 to vector<1x256xi32>
    %118 = arith.addi %1, %117 : vector<1x256xi32>
    %c0_i32_44 = arith.constant 0 : i32
    %119 = vector.broadcast %c0_i32_44 : i32 to vector<1x256xi32>
    %120 = arith.cmpi sge, %118, %119 : vector<1x256xi32>
    %c-1_i32_45 = arith.constant -1 : i32
    %121 = vector.broadcast %c-1_i32_45 : i32 to vector<1x256xi32>
    %122 = arith.addi %1, %121 : vector<1x256xi32>
    %c16_i32_46 = arith.constant 16 : i32
    %123 = vector.broadcast %c16_i32_46 : i32 to vector<1x256xi32>
    %124 = arith.cmpi slt, %122, %123 : vector<1x256xi32>
    %125 = arith.andi %120, %124 : vector<1x256xi1>
    %c-1_i32_47 = arith.constant -1 : i32
    %126 = vector.broadcast %c-1_i32_47 : i32 to vector<1x256xi32>
    %127 = arith.addi %2, %126 : vector<1x256xi32>
    %c0_i32_48 = arith.constant 0 : i32
    %128 = vector.broadcast %c0_i32_48 : i32 to vector<1x256xi32>
    %129 = arith.cmpi sge, %127, %128 : vector<1x256xi32>
    %130 = arith.andi %125, %129 : vector<1x256xi1>
    %c-1_i32_49 = arith.constant -1 : i32
    %131 = vector.broadcast %c-1_i32_49 : i32 to vector<1x256xi32>
    %132 = arith.addi %2, %131 : vector<1x256xi32>
    %c16_i32_50 = arith.constant 16 : i32
    %133 = vector.broadcast %c16_i32_50 : i32 to vector<1x256xi32>
    %134 = arith.cmpi slt, %132, %133 : vector<1x256xi32>
    %135 = arith.andi %130, %134 : vector<1x256xi1>
    %c0_i32_51 = arith.constant 0 : i32
    %136 = vector.broadcast %c0_i32_51 : i32 to vector<1x256xi32>
    %137 = arith.addi %1, %136 : vector<1x256xi32>
    %c0_i32_52 = arith.constant 0 : i32
    %138 = vector.broadcast %c0_i32_52 : i32 to vector<1x256xi32>
    %139 = arith.cmpi sge, %137, %138 : vector<1x256xi32>
    %c0_i32_53 = arith.constant 0 : i32
    %140 = vector.broadcast %c0_i32_53 : i32 to vector<1x256xi32>
    %141 = arith.addi %1, %140 : vector<1x256xi32>
    %c16_i32_54 = arith.constant 16 : i32
    %142 = vector.broadcast %c16_i32_54 : i32 to vector<1x256xi32>
    %143 = arith.cmpi slt, %141, %142 : vector<1x256xi32>
    %144 = arith.andi %139, %143 : vector<1x256xi1>
    %c-1_i32_55 = arith.constant -1 : i32
    %145 = vector.broadcast %c-1_i32_55 : i32 to vector<1x256xi32>
    %146 = arith.addi %2, %145 : vector<1x256xi32>
    %c0_i32_56 = arith.constant 0 : i32
    %147 = vector.broadcast %c0_i32_56 : i32 to vector<1x256xi32>
    %148 = arith.cmpi sge, %146, %147 : vector<1x256xi32>
    %149 = arith.andi %144, %148 : vector<1x256xi1>
    %c-1_i32_57 = arith.constant -1 : i32
    %150 = vector.broadcast %c-1_i32_57 : i32 to vector<1x256xi32>
    %151 = arith.addi %2, %150 : vector<1x256xi32>
    %c16_i32_58 = arith.constant 16 : i32
    %152 = vector.broadcast %c16_i32_58 : i32 to vector<1x256xi32>
    %153 = arith.cmpi slt, %151, %152 : vector<1x256xi32>
    %154 = arith.andi %149, %153 : vector<1x256xi1>
    %c1_i32_59 = arith.constant 1 : i32
    %155 = vector.broadcast %c1_i32_59 : i32 to vector<1x256xi32>
    %156 = arith.addi %1, %155 : vector<1x256xi32>
    %c0_i32_60 = arith.constant 0 : i32
    %157 = vector.broadcast %c0_i32_60 : i32 to vector<1x256xi32>
    %158 = arith.cmpi sge, %156, %157 : vector<1x256xi32>
    %c1_i32_61 = arith.constant 1 : i32
    %159 = vector.broadcast %c1_i32_61 : i32 to vector<1x256xi32>
    %160 = arith.addi %1, %159 : vector<1x256xi32>
    %c16_i32_62 = arith.constant 16 : i32
    %161 = vector.broadcast %c16_i32_62 : i32 to vector<1x256xi32>
    %162 = arith.cmpi slt, %160, %161 : vector<1x256xi32>
    %163 = arith.andi %158, %162 : vector<1x256xi1>
    %c-1_i32_63 = arith.constant -1 : i32
    %164 = vector.broadcast %c-1_i32_63 : i32 to vector<1x256xi32>
    %165 = arith.addi %2, %164 : vector<1x256xi32>
    %c0_i32_64 = arith.constant 0 : i32
    %166 = vector.broadcast %c0_i32_64 : i32 to vector<1x256xi32>
    %167 = arith.cmpi sge, %165, %166 : vector<1x256xi32>
    %168 = arith.andi %163, %167 : vector<1x256xi1>
    %c-1_i32_65 = arith.constant -1 : i32
    %169 = vector.broadcast %c-1_i32_65 : i32 to vector<1x256xi32>
    %170 = arith.addi %2, %169 : vector<1x256xi32>
    %c16_i32_66 = arith.constant 16 : i32
    %171 = vector.broadcast %c16_i32_66 : i32 to vector<1x256xi32>
    %172 = arith.cmpi slt, %170, %171 : vector<1x256xi32>
    %173 = arith.andi %168, %172 : vector<1x256xi1>
    %c2_i32_67 = arith.constant 2 : i32
    %174 = vector.broadcast %c2_i32_67 : i32 to vector<1x256xi32>
    %175 = arith.addi %1, %174 : vector<1x256xi32>
    %c0_i32_68 = arith.constant 0 : i32
    %176 = vector.broadcast %c0_i32_68 : i32 to vector<1x256xi32>
    %177 = arith.cmpi sge, %175, %176 : vector<1x256xi32>
    %c2_i32_69 = arith.constant 2 : i32
    %178 = vector.broadcast %c2_i32_69 : i32 to vector<1x256xi32>
    %179 = arith.addi %1, %178 : vector<1x256xi32>
    %c16_i32_70 = arith.constant 16 : i32
    %180 = vector.broadcast %c16_i32_70 : i32 to vector<1x256xi32>
    %181 = arith.cmpi slt, %179, %180 : vector<1x256xi32>
    %182 = arith.andi %177, %181 : vector<1x256xi1>
    %c-1_i32_71 = arith.constant -1 : i32
    %183 = vector.broadcast %c-1_i32_71 : i32 to vector<1x256xi32>
    %184 = arith.addi %2, %183 : vector<1x256xi32>
    %c0_i32_72 = arith.constant 0 : i32
    %185 = vector.broadcast %c0_i32_72 : i32 to vector<1x256xi32>
    %186 = arith.cmpi sge, %184, %185 : vector<1x256xi32>
    %187 = arith.andi %182, %186 : vector<1x256xi1>
    %c-1_i32_73 = arith.constant -1 : i32
    %188 = vector.broadcast %c-1_i32_73 : i32 to vector<1x256xi32>
    %189 = arith.addi %2, %188 : vector<1x256xi32>
    %c16_i32_74 = arith.constant 16 : i32
    %190 = vector.broadcast %c16_i32_74 : i32 to vector<1x256xi32>
    %191 = arith.cmpi slt, %189, %190 : vector<1x256xi32>
    %192 = arith.andi %187, %191 : vector<1x256xi1>
    %c-2_i32_75 = arith.constant -2 : i32
    %193 = vector.broadcast %c-2_i32_75 : i32 to vector<1x256xi32>
    %194 = arith.addi %1, %193 : vector<1x256xi32>
    %c0_i32_76 = arith.constant 0 : i32
    %195 = vector.broadcast %c0_i32_76 : i32 to vector<1x256xi32>
    %196 = arith.cmpi sge, %194, %195 : vector<1x256xi32>
    %c-2_i32_77 = arith.constant -2 : i32
    %197 = vector.broadcast %c-2_i32_77 : i32 to vector<1x256xi32>
    %198 = arith.addi %1, %197 : vector<1x256xi32>
    %c16_i32_78 = arith.constant 16 : i32
    %199 = vector.broadcast %c16_i32_78 : i32 to vector<1x256xi32>
    %200 = arith.cmpi slt, %198, %199 : vector<1x256xi32>
    %201 = arith.andi %196, %200 : vector<1x256xi1>
    %c0_i32_79 = arith.constant 0 : i32
    %202 = vector.broadcast %c0_i32_79 : i32 to vector<1x256xi32>
    %203 = arith.addi %2, %202 : vector<1x256xi32>
    %c0_i32_80 = arith.constant 0 : i32
    %204 = vector.broadcast %c0_i32_80 : i32 to vector<1x256xi32>
    %205 = arith.cmpi sge, %203, %204 : vector<1x256xi32>
    %206 = arith.andi %201, %205 : vector<1x256xi1>
    %c0_i32_81 = arith.constant 0 : i32
    %207 = vector.broadcast %c0_i32_81 : i32 to vector<1x256xi32>
    %208 = arith.addi %2, %207 : vector<1x256xi32>
    %c16_i32_82 = arith.constant 16 : i32
    %209 = vector.broadcast %c16_i32_82 : i32 to vector<1x256xi32>
    %210 = arith.cmpi slt, %208, %209 : vector<1x256xi32>
    %211 = arith.andi %206, %210 : vector<1x256xi1>
    %c-1_i32_83 = arith.constant -1 : i32
    %212 = vector.broadcast %c-1_i32_83 : i32 to vector<1x256xi32>
    %213 = arith.addi %1, %212 : vector<1x256xi32>
    %c0_i32_84 = arith.constant 0 : i32
    %214 = vector.broadcast %c0_i32_84 : i32 to vector<1x256xi32>
    %215 = arith.cmpi sge, %213, %214 : vector<1x256xi32>
    %c-1_i32_85 = arith.constant -1 : i32
    %216 = vector.broadcast %c-1_i32_85 : i32 to vector<1x256xi32>
    %217 = arith.addi %1, %216 : vector<1x256xi32>
    %c16_i32_86 = arith.constant 16 : i32
    %218 = vector.broadcast %c16_i32_86 : i32 to vector<1x256xi32>
    %219 = arith.cmpi slt, %217, %218 : vector<1x256xi32>
    %220 = arith.andi %215, %219 : vector<1x256xi1>
    %c0_i32_87 = arith.constant 0 : i32
    %221 = vector.broadcast %c0_i32_87 : i32 to vector<1x256xi32>
    %222 = arith.addi %2, %221 : vector<1x256xi32>
    %c0_i32_88 = arith.constant 0 : i32
    %223 = vector.broadcast %c0_i32_88 : i32 to vector<1x256xi32>
    %224 = arith.cmpi sge, %222, %223 : vector<1x256xi32>
    %225 = arith.andi %220, %224 : vector<1x256xi1>
    %c0_i32_89 = arith.constant 0 : i32
    %226 = vector.broadcast %c0_i32_89 : i32 to vector<1x256xi32>
    %227 = arith.addi %2, %226 : vector<1x256xi32>
    %c16_i32_90 = arith.constant 16 : i32
    %228 = vector.broadcast %c16_i32_90 : i32 to vector<1x256xi32>
    %229 = arith.cmpi slt, %227, %228 : vector<1x256xi32>
    %230 = arith.andi %225, %229 : vector<1x256xi1>
    %c1_i32_91 = arith.constant 1 : i32
    %231 = vector.broadcast %c1_i32_91 : i32 to vector<1x256xi32>
    %232 = arith.addi %1, %231 : vector<1x256xi32>
    %c0_i32_92 = arith.constant 0 : i32
    %233 = vector.broadcast %c0_i32_92 : i32 to vector<1x256xi32>
    %234 = arith.cmpi sge, %232, %233 : vector<1x256xi32>
    %c1_i32_93 = arith.constant 1 : i32
    %235 = vector.broadcast %c1_i32_93 : i32 to vector<1x256xi32>
    %236 = arith.addi %1, %235 : vector<1x256xi32>
    %c16_i32_94 = arith.constant 16 : i32
    %237 = vector.broadcast %c16_i32_94 : i32 to vector<1x256xi32>
    %238 = arith.cmpi slt, %236, %237 : vector<1x256xi32>
    %239 = arith.andi %234, %238 : vector<1x256xi1>
    %c0_i32_95 = arith.constant 0 : i32
    %240 = vector.broadcast %c0_i32_95 : i32 to vector<1x256xi32>
    %241 = arith.addi %2, %240 : vector<1x256xi32>
    %c0_i32_96 = arith.constant 0 : i32
    %242 = vector.broadcast %c0_i32_96 : i32 to vector<1x256xi32>
    %243 = arith.cmpi sge, %241, %242 : vector<1x256xi32>
    %244 = arith.andi %239, %243 : vector<1x256xi1>
    %c0_i32_97 = arith.constant 0 : i32
    %245 = vector.broadcast %c0_i32_97 : i32 to vector<1x256xi32>
    %246 = arith.addi %2, %245 : vector<1x256xi32>
    %c16_i32_98 = arith.constant 16 : i32
    %247 = vector.broadcast %c16_i32_98 : i32 to vector<1x256xi32>
    %248 = arith.cmpi slt, %246, %247 : vector<1x256xi32>
    %249 = arith.andi %244, %248 : vector<1x256xi1>
    %c2_i32_99 = arith.constant 2 : i32
    %250 = vector.broadcast %c2_i32_99 : i32 to vector<1x256xi32>
    %251 = arith.addi %1, %250 : vector<1x256xi32>
    %c0_i32_100 = arith.constant 0 : i32
    %252 = vector.broadcast %c0_i32_100 : i32 to vector<1x256xi32>
    %253 = arith.cmpi sge, %251, %252 : vector<1x256xi32>
    %c2_i32_101 = arith.constant 2 : i32
    %254 = vector.broadcast %c2_i32_101 : i32 to vector<1x256xi32>
    %255 = arith.addi %1, %254 : vector<1x256xi32>
    %c16_i32_102 = arith.constant 16 : i32
    %256 = vector.broadcast %c16_i32_102 : i32 to vector<1x256xi32>
    %257 = arith.cmpi slt, %255, %256 : vector<1x256xi32>
    %258 = arith.andi %253, %257 : vector<1x256xi1>
    %c0_i32_103 = arith.constant 0 : i32
    %259 = vector.broadcast %c0_i32_103 : i32 to vector<1x256xi32>
    %260 = arith.addi %2, %259 : vector<1x256xi32>
    %c0_i32_104 = arith.constant 0 : i32
    %261 = vector.broadcast %c0_i32_104 : i32 to vector<1x256xi32>
    %262 = arith.cmpi sge, %260, %261 : vector<1x256xi32>
    %263 = arith.andi %258, %262 : vector<1x256xi1>
    %c0_i32_105 = arith.constant 0 : i32
    %264 = vector.broadcast %c0_i32_105 : i32 to vector<1x256xi32>
    %265 = arith.addi %2, %264 : vector<1x256xi32>
    %c16_i32_106 = arith.constant 16 : i32
    %266 = vector.broadcast %c16_i32_106 : i32 to vector<1x256xi32>
    %267 = arith.cmpi slt, %265, %266 : vector<1x256xi32>
    %268 = arith.andi %263, %267 : vector<1x256xi1>
    %c-2_i32_107 = arith.constant -2 : i32
    %269 = vector.broadcast %c-2_i32_107 : i32 to vector<1x256xi32>
    %270 = arith.addi %1, %269 : vector<1x256xi32>
    %c0_i32_108 = arith.constant 0 : i32
    %271 = vector.broadcast %c0_i32_108 : i32 to vector<1x256xi32>
    %272 = arith.cmpi sge, %270, %271 : vector<1x256xi32>
    %c-2_i32_109 = arith.constant -2 : i32
    %273 = vector.broadcast %c-2_i32_109 : i32 to vector<1x256xi32>
    %274 = arith.addi %1, %273 : vector<1x256xi32>
    %c16_i32_110 = arith.constant 16 : i32
    %275 = vector.broadcast %c16_i32_110 : i32 to vector<1x256xi32>
    %276 = arith.cmpi slt, %274, %275 : vector<1x256xi32>
    %277 = arith.andi %272, %276 : vector<1x256xi1>
    %c1_i32_111 = arith.constant 1 : i32
    %278 = vector.broadcast %c1_i32_111 : i32 to vector<1x256xi32>
    %279 = arith.addi %2, %278 : vector<1x256xi32>
    %c0_i32_112 = arith.constant 0 : i32
    %280 = vector.broadcast %c0_i32_112 : i32 to vector<1x256xi32>
    %281 = arith.cmpi sge, %279, %280 : vector<1x256xi32>
    %282 = arith.andi %277, %281 : vector<1x256xi1>
    %c1_i32_113 = arith.constant 1 : i32
    %283 = vector.broadcast %c1_i32_113 : i32 to vector<1x256xi32>
    %284 = arith.addi %2, %283 : vector<1x256xi32>
    %c16_i32_114 = arith.constant 16 : i32
    %285 = vector.broadcast %c16_i32_114 : i32 to vector<1x256xi32>
    %286 = arith.cmpi slt, %284, %285 : vector<1x256xi32>
    %287 = arith.andi %282, %286 : vector<1x256xi1>
    %c-1_i32_115 = arith.constant -1 : i32
    %288 = vector.broadcast %c-1_i32_115 : i32 to vector<1x256xi32>
    %289 = arith.addi %1, %288 : vector<1x256xi32>
    %c0_i32_116 = arith.constant 0 : i32
    %290 = vector.broadcast %c0_i32_116 : i32 to vector<1x256xi32>
    %291 = arith.cmpi sge, %289, %290 : vector<1x256xi32>
    %c-1_i32_117 = arith.constant -1 : i32
    %292 = vector.broadcast %c-1_i32_117 : i32 to vector<1x256xi32>
    %293 = arith.addi %1, %292 : vector<1x256xi32>
    %c16_i32_118 = arith.constant 16 : i32
    %294 = vector.broadcast %c16_i32_118 : i32 to vector<1x256xi32>
    %295 = arith.cmpi slt, %293, %294 : vector<1x256xi32>
    %296 = arith.andi %291, %295 : vector<1x256xi1>
    %c1_i32_119 = arith.constant 1 : i32
    %297 = vector.broadcast %c1_i32_119 : i32 to vector<1x256xi32>
    %298 = arith.addi %2, %297 : vector<1x256xi32>
    %c0_i32_120 = arith.constant 0 : i32
    %299 = vector.broadcast %c0_i32_120 : i32 to vector<1x256xi32>
    %300 = arith.cmpi sge, %298, %299 : vector<1x256xi32>
    %301 = arith.andi %296, %300 : vector<1x256xi1>
    %c1_i32_121 = arith.constant 1 : i32
    %302 = vector.broadcast %c1_i32_121 : i32 to vector<1x256xi32>
    %303 = arith.addi %2, %302 : vector<1x256xi32>
    %c16_i32_122 = arith.constant 16 : i32
    %304 = vector.broadcast %c16_i32_122 : i32 to vector<1x256xi32>
    %305 = arith.cmpi slt, %303, %304 : vector<1x256xi32>
    %306 = arith.andi %301, %305 : vector<1x256xi1>
    %c0_i32_123 = arith.constant 0 : i32
    %307 = vector.broadcast %c0_i32_123 : i32 to vector<1x256xi32>
    %308 = arith.addi %1, %307 : vector<1x256xi32>
    %c0_i32_124 = arith.constant 0 : i32
    %309 = vector.broadcast %c0_i32_124 : i32 to vector<1x256xi32>
    %310 = arith.cmpi sge, %308, %309 : vector<1x256xi32>
    %c0_i32_125 = arith.constant 0 : i32
    %311 = vector.broadcast %c0_i32_125 : i32 to vector<1x256xi32>
    %312 = arith.addi %1, %311 : vector<1x256xi32>
    %c16_i32_126 = arith.constant 16 : i32
    %313 = vector.broadcast %c16_i32_126 : i32 to vector<1x256xi32>
    %314 = arith.cmpi slt, %312, %313 : vector<1x256xi32>
    %315 = arith.andi %310, %314 : vector<1x256xi1>
    %c1_i32_127 = arith.constant 1 : i32
    %316 = vector.broadcast %c1_i32_127 : i32 to vector<1x256xi32>
    %317 = arith.addi %2, %316 : vector<1x256xi32>
    %c0_i32_128 = arith.constant 0 : i32
    %318 = vector.broadcast %c0_i32_128 : i32 to vector<1x256xi32>
    %319 = arith.cmpi sge, %317, %318 : vector<1x256xi32>
    %320 = arith.andi %315, %319 : vector<1x256xi1>
    %c1_i32_129 = arith.constant 1 : i32
    %321 = vector.broadcast %c1_i32_129 : i32 to vector<1x256xi32>
    %322 = arith.addi %2, %321 : vector<1x256xi32>
    %c16_i32_130 = arith.constant 16 : i32
    %323 = vector.broadcast %c16_i32_130 : i32 to vector<1x256xi32>
    %324 = arith.cmpi slt, %322, %323 : vector<1x256xi32>
    %325 = arith.andi %320, %324 : vector<1x256xi1>
    %c1_i32_131 = arith.constant 1 : i32
    %326 = vector.broadcast %c1_i32_131 : i32 to vector<1x256xi32>
    %327 = arith.addi %1, %326 : vector<1x256xi32>
    %c0_i32_132 = arith.constant 0 : i32
    %328 = vector.broadcast %c0_i32_132 : i32 to vector<1x256xi32>
    %329 = arith.cmpi sge, %327, %328 : vector<1x256xi32>
    %c1_i32_133 = arith.constant 1 : i32
    %330 = vector.broadcast %c1_i32_133 : i32 to vector<1x256xi32>
    %331 = arith.addi %1, %330 : vector<1x256xi32>
    %c16_i32_134 = arith.constant 16 : i32
    %332 = vector.broadcast %c16_i32_134 : i32 to vector<1x256xi32>
    %333 = arith.cmpi slt, %331, %332 : vector<1x256xi32>
    %334 = arith.andi %329, %333 : vector<1x256xi1>
    %c1_i32_135 = arith.constant 1 : i32
    %335 = vector.broadcast %c1_i32_135 : i32 to vector<1x256xi32>
    %336 = arith.addi %2, %335 : vector<1x256xi32>
    %c0_i32_136 = arith.constant 0 : i32
    %337 = vector.broadcast %c0_i32_136 : i32 to vector<1x256xi32>
    %338 = arith.cmpi sge, %336, %337 : vector<1x256xi32>
    %339 = arith.andi %334, %338 : vector<1x256xi1>
    %c1_i32_137 = arith.constant 1 : i32
    %340 = vector.broadcast %c1_i32_137 : i32 to vector<1x256xi32>
    %341 = arith.addi %2, %340 : vector<1x256xi32>
    %c16_i32_138 = arith.constant 16 : i32
    %342 = vector.broadcast %c16_i32_138 : i32 to vector<1x256xi32>
    %343 = arith.cmpi slt, %341, %342 : vector<1x256xi32>
    %344 = arith.andi %339, %343 : vector<1x256xi1>
    %c2_i32_139 = arith.constant 2 : i32
    %345 = vector.broadcast %c2_i32_139 : i32 to vector<1x256xi32>
    %346 = arith.addi %1, %345 : vector<1x256xi32>
    %c0_i32_140 = arith.constant 0 : i32
    %347 = vector.broadcast %c0_i32_140 : i32 to vector<1x256xi32>
    %348 = arith.cmpi sge, %346, %347 : vector<1x256xi32>
    %c2_i32_141 = arith.constant 2 : i32
    %349 = vector.broadcast %c2_i32_141 : i32 to vector<1x256xi32>
    %350 = arith.addi %1, %349 : vector<1x256xi32>
    %c16_i32_142 = arith.constant 16 : i32
    %351 = vector.broadcast %c16_i32_142 : i32 to vector<1x256xi32>
    %352 = arith.cmpi slt, %350, %351 : vector<1x256xi32>
    %353 = arith.andi %348, %352 : vector<1x256xi1>
    %c1_i32_143 = arith.constant 1 : i32
    %354 = vector.broadcast %c1_i32_143 : i32 to vector<1x256xi32>
    %355 = arith.addi %2, %354 : vector<1x256xi32>
    %c0_i32_144 = arith.constant 0 : i32
    %356 = vector.broadcast %c0_i32_144 : i32 to vector<1x256xi32>
    %357 = arith.cmpi sge, %355, %356 : vector<1x256xi32>
    %358 = arith.andi %353, %357 : vector<1x256xi1>
    %c1_i32_145 = arith.constant 1 : i32
    %359 = vector.broadcast %c1_i32_145 : i32 to vector<1x256xi32>
    %360 = arith.addi %2, %359 : vector<1x256xi32>
    %c16_i32_146 = arith.constant 16 : i32
    %361 = vector.broadcast %c16_i32_146 : i32 to vector<1x256xi32>
    %362 = arith.cmpi slt, %360, %361 : vector<1x256xi32>
    %363 = arith.andi %358, %362 : vector<1x256xi1>
    %c-2_i32_147 = arith.constant -2 : i32
    %364 = vector.broadcast %c-2_i32_147 : i32 to vector<1x256xi32>
    %365 = arith.addi %1, %364 : vector<1x256xi32>
    %c0_i32_148 = arith.constant 0 : i32
    %366 = vector.broadcast %c0_i32_148 : i32 to vector<1x256xi32>
    %367 = arith.cmpi sge, %365, %366 : vector<1x256xi32>
    %c-2_i32_149 = arith.constant -2 : i32
    %368 = vector.broadcast %c-2_i32_149 : i32 to vector<1x256xi32>
    %369 = arith.addi %1, %368 : vector<1x256xi32>
    %c16_i32_150 = arith.constant 16 : i32
    %370 = vector.broadcast %c16_i32_150 : i32 to vector<1x256xi32>
    %371 = arith.cmpi slt, %369, %370 : vector<1x256xi32>
    %372 = arith.andi %367, %371 : vector<1x256xi1>
    %c2_i32_151 = arith.constant 2 : i32
    %373 = vector.broadcast %c2_i32_151 : i32 to vector<1x256xi32>
    %374 = arith.addi %2, %373 : vector<1x256xi32>
    %c0_i32_152 = arith.constant 0 : i32
    %375 = vector.broadcast %c0_i32_152 : i32 to vector<1x256xi32>
    %376 = arith.cmpi sge, %374, %375 : vector<1x256xi32>
    %377 = arith.andi %372, %376 : vector<1x256xi1>
    %c2_i32_153 = arith.constant 2 : i32
    %378 = vector.broadcast %c2_i32_153 : i32 to vector<1x256xi32>
    %379 = arith.addi %2, %378 : vector<1x256xi32>
    %c16_i32_154 = arith.constant 16 : i32
    %380 = vector.broadcast %c16_i32_154 : i32 to vector<1x256xi32>
    %381 = arith.cmpi slt, %379, %380 : vector<1x256xi32>
    %382 = arith.andi %377, %381 : vector<1x256xi1>
    %c-1_i32_155 = arith.constant -1 : i32
    %383 = vector.broadcast %c-1_i32_155 : i32 to vector<1x256xi32>
    %384 = arith.addi %1, %383 : vector<1x256xi32>
    %c0_i32_156 = arith.constant 0 : i32
    %385 = vector.broadcast %c0_i32_156 : i32 to vector<1x256xi32>
    %386 = arith.cmpi sge, %384, %385 : vector<1x256xi32>
    %c-1_i32_157 = arith.constant -1 : i32
    %387 = vector.broadcast %c-1_i32_157 : i32 to vector<1x256xi32>
    %388 = arith.addi %1, %387 : vector<1x256xi32>
    %c16_i32_158 = arith.constant 16 : i32
    %389 = vector.broadcast %c16_i32_158 : i32 to vector<1x256xi32>
    %390 = arith.cmpi slt, %388, %389 : vector<1x256xi32>
    %391 = arith.andi %386, %390 : vector<1x256xi1>
    %c2_i32_159 = arith.constant 2 : i32
    %392 = vector.broadcast %c2_i32_159 : i32 to vector<1x256xi32>
    %393 = arith.addi %2, %392 : vector<1x256xi32>
    %c0_i32_160 = arith.constant 0 : i32
    %394 = vector.broadcast %c0_i32_160 : i32 to vector<1x256xi32>
    %395 = arith.cmpi sge, %393, %394 : vector<1x256xi32>
    %396 = arith.andi %391, %395 : vector<1x256xi1>
    %c2_i32_161 = arith.constant 2 : i32
    %397 = vector.broadcast %c2_i32_161 : i32 to vector<1x256xi32>
    %398 = arith.addi %2, %397 : vector<1x256xi32>
    %c16_i32_162 = arith.constant 16 : i32
    %399 = vector.broadcast %c16_i32_162 : i32 to vector<1x256xi32>
    %400 = arith.cmpi slt, %398, %399 : vector<1x256xi32>
    %401 = arith.andi %396, %400 : vector<1x256xi1>
    %c0_i32_163 = arith.constant 0 : i32
    %402 = vector.broadcast %c0_i32_163 : i32 to vector<1x256xi32>
    %403 = arith.addi %1, %402 : vector<1x256xi32>
    %c0_i32_164 = arith.constant 0 : i32
    %404 = vector.broadcast %c0_i32_164 : i32 to vector<1x256xi32>
    %405 = arith.cmpi sge, %403, %404 : vector<1x256xi32>
    %c0_i32_165 = arith.constant 0 : i32
    %406 = vector.broadcast %c0_i32_165 : i32 to vector<1x256xi32>
    %407 = arith.addi %1, %406 : vector<1x256xi32>
    %c16_i32_166 = arith.constant 16 : i32
    %408 = vector.broadcast %c16_i32_166 : i32 to vector<1x256xi32>
    %409 = arith.cmpi slt, %407, %408 : vector<1x256xi32>
    %410 = arith.andi %405, %409 : vector<1x256xi1>
    %c2_i32_167 = arith.constant 2 : i32
    %411 = vector.broadcast %c2_i32_167 : i32 to vector<1x256xi32>
    %412 = arith.addi %2, %411 : vector<1x256xi32>
    %c0_i32_168 = arith.constant 0 : i32
    %413 = vector.broadcast %c0_i32_168 : i32 to vector<1x256xi32>
    %414 = arith.cmpi sge, %412, %413 : vector<1x256xi32>
    %415 = arith.andi %410, %414 : vector<1x256xi1>
    %c2_i32_169 = arith.constant 2 : i32
    %416 = vector.broadcast %c2_i32_169 : i32 to vector<1x256xi32>
    %417 = arith.addi %2, %416 : vector<1x256xi32>
    %c16_i32_170 = arith.constant 16 : i32
    %418 = vector.broadcast %c16_i32_170 : i32 to vector<1x256xi32>
    %419 = arith.cmpi slt, %417, %418 : vector<1x256xi32>
    %420 = arith.andi %415, %419 : vector<1x256xi1>
    %c1_i32_171 = arith.constant 1 : i32
    %421 = vector.broadcast %c1_i32_171 : i32 to vector<1x256xi32>
    %422 = arith.addi %1, %421 : vector<1x256xi32>
    %c0_i32_172 = arith.constant 0 : i32
    %423 = vector.broadcast %c0_i32_172 : i32 to vector<1x256xi32>
    %424 = arith.cmpi sge, %422, %423 : vector<1x256xi32>
    %c1_i32_173 = arith.constant 1 : i32
    %425 = vector.broadcast %c1_i32_173 : i32 to vector<1x256xi32>
    %426 = arith.addi %1, %425 : vector<1x256xi32>
    %c16_i32_174 = arith.constant 16 : i32
    %427 = vector.broadcast %c16_i32_174 : i32 to vector<1x256xi32>
    %428 = arith.cmpi slt, %426, %427 : vector<1x256xi32>
    %429 = arith.andi %424, %428 : vector<1x256xi1>
    %c2_i32_175 = arith.constant 2 : i32
    %430 = vector.broadcast %c2_i32_175 : i32 to vector<1x256xi32>
    %431 = arith.addi %2, %430 : vector<1x256xi32>
    %c0_i32_176 = arith.constant 0 : i32
    %432 = vector.broadcast %c0_i32_176 : i32 to vector<1x256xi32>
    %433 = arith.cmpi sge, %431, %432 : vector<1x256xi32>
    %434 = arith.andi %429, %433 : vector<1x256xi1>
    %c2_i32_177 = arith.constant 2 : i32
    %435 = vector.broadcast %c2_i32_177 : i32 to vector<1x256xi32>
    %436 = arith.addi %2, %435 : vector<1x256xi32>
    %c16_i32_178 = arith.constant 16 : i32
    %437 = vector.broadcast %c16_i32_178 : i32 to vector<1x256xi32>
    %438 = arith.cmpi slt, %436, %437 : vector<1x256xi32>
    %439 = arith.andi %434, %438 : vector<1x256xi1>
    %c2_i32_179 = arith.constant 2 : i32
    %440 = vector.broadcast %c2_i32_179 : i32 to vector<1x256xi32>
    %441 = arith.addi %1, %440 : vector<1x256xi32>
    %c0_i32_180 = arith.constant 0 : i32
    %442 = vector.broadcast %c0_i32_180 : i32 to vector<1x256xi32>
    %443 = arith.cmpi sge, %441, %442 : vector<1x256xi32>
    %c2_i32_181 = arith.constant 2 : i32
    %444 = vector.broadcast %c2_i32_181 : i32 to vector<1x256xi32>
    %445 = arith.addi %1, %444 : vector<1x256xi32>
    %c16_i32_182 = arith.constant 16 : i32
    %446 = vector.broadcast %c16_i32_182 : i32 to vector<1x256xi32>
    %447 = arith.cmpi slt, %445, %446 : vector<1x256xi32>
    %448 = arith.andi %443, %447 : vector<1x256xi1>
    %c2_i32_183 = arith.constant 2 : i32
    %449 = vector.broadcast %c2_i32_183 : i32 to vector<1x256xi32>
    %450 = arith.addi %2, %449 : vector<1x256xi32>
    %c0_i32_184 = arith.constant 0 : i32
    %451 = vector.broadcast %c0_i32_184 : i32 to vector<1x256xi32>
    %452 = arith.cmpi sge, %450, %451 : vector<1x256xi32>
    %453 = arith.andi %448, %452 : vector<1x256xi1>
    %c2_i32_185 = arith.constant 2 : i32
    %454 = vector.broadcast %c2_i32_185 : i32 to vector<1x256xi32>
    %455 = arith.addi %2, %454 : vector<1x256xi32>
    %c16_i32_186 = arith.constant 16 : i32
    %456 = vector.broadcast %c16_i32_186 : i32 to vector<1x256xi32>
    %457 = arith.cmpi slt, %455, %456 : vector<1x256xi32>
    %458 = arith.andi %453, %457 : vector<1x256xi1>
    %c0_187 = arith.constant 0 : index
    %c0_188 = arith.constant 0 : index
    %459 = vector.load %arg3[%c0_187, %c0_188] : memref<6x33xf32, #tpu.memory_space<vmem>>, vector<6x33xf32>
    %460 = vector.extract_strided_slice %459 {offsets = [0, 0], sizes = [2, 4], strides = [1, 1]} : vector<6x33xf32> to vector<2x4xf32>
    %461 = vector.extract_strided_slice %459 {offsets = [2, 0], sizes = [4, 4], strides = [1, 1]} : vector<6x33xf32> to vector<4x4xf32>
    %462 = vector.extract_strided_slice %459 {offsets = [0, 4], sizes = [2, 25], strides = [1, 1]} : vector<6x33xf32> to vector<2x25xf32>
    %463 = vector.extract_strided_slice %459 {offsets = [2, 4], sizes = [4, 25], strides = [1, 1]} : vector<6x33xf32> to vector<4x25xf32>
    %464 = vector.extract_strided_slice %459 {offsets = [0, 29], sizes = [2, 1], strides = [1, 1]} : vector<6x33xf32> to vector<2x1xf32>
    %465 = vector.extract_strided_slice %459 {offsets = [0, 30], sizes = [2, 1], strides = [1, 1]} : vector<6x33xf32> to vector<2x1xf32>
    %466 = vector.extract_strided_slice %459 {offsets = [0, 31], sizes = [2, 1], strides = [1, 1]} : vector<6x33xf32> to vector<2x1xf32>
    %467 = vector.extract_strided_slice %459 {offsets = [0, 32], sizes = [2, 1], strides = [1, 1]} : vector<6x33xf32> to vector<2x1xf32>
    %468 = vector.extract_strided_slice %459 {offsets = [2, 29], sizes = [4, 1], strides = [1, 1]} : vector<6x33xf32> to vector<4x1xf32>
    %469 = vector.extract_strided_slice %459 {offsets = [2, 30], sizes = [4, 1], strides = [1, 1]} : vector<6x33xf32> to vector<4x1xf32>
    %470 = vector.extract_strided_slice %459 {offsets = [2, 31], sizes = [4, 1], strides = [1, 1]} : vector<6x33xf32> to vector<4x1xf32>
    %471 = vector.extract_strided_slice %459 {offsets = [2, 32], sizes = [4, 1], strides = [1, 1]} : vector<6x33xf32> to vector<4x1xf32>
    %c0_189 = arith.constant 0 : index
    %c0_190 = arith.constant 0 : index
    %472 = vector.load %arg1[%c0_189, %c0_190] : memref<8x256xf32, #tpu.memory_space<vmem>>, vector<8x256xf32>
    %473 = vector.extract_strided_slice %460 {offsets = [0, 0], sizes = [2, 1], strides = [1, 1]} : vector<2x4xf32> to vector<2x1xf32>
    %474 = vector.extract_strided_slice %472 {offsets = [0, 0], sizes = [1, 256], strides = [1, 1]} : vector<8x256xf32> to vector<1x256xf32>
    %475 = vector.broadcast %473 : vector<2x1xf32> to vector<2x256xf32>
    %476 = vector.broadcast %474 : vector<1x256xf32> to vector<2x256xf32>
    %477 = arith.mulf %475, %476 : vector<2x256xf32>
    %478 = vector.extract_strided_slice %460 {offsets = [0, 1], sizes = [2, 1], strides = [1, 1]} : vector<2x4xf32> to vector<2x1xf32>
    %479 = vector.extract_strided_slice %472 {offsets = [1, 0], sizes = [1, 256], strides = [1, 1]} : vector<8x256xf32> to vector<1x256xf32>
    %480 = vector.broadcast %478 : vector<2x1xf32> to vector<2x256xf32>
    %481 = vector.broadcast %479 : vector<1x256xf32> to vector<2x256xf32>
    %482 = arith.mulf %480, %481 : vector<2x256xf32>
    %483 = arith.addf %477, %482 : vector<2x256xf32>
    %484 = vector.extract_strided_slice %460 {offsets = [0, 2], sizes = [2, 1], strides = [1, 1]} : vector<2x4xf32> to vector<2x1xf32>
    %485 = vector.extract_strided_slice %472 {offsets = [2, 0], sizes = [1, 256], strides = [1, 1]} : vector<8x256xf32> to vector<1x256xf32>
    %486 = vector.broadcast %484 : vector<2x1xf32> to vector<2x256xf32>
    %487 = vector.broadcast %485 : vector<1x256xf32> to vector<2x256xf32>
    %488 = arith.mulf %486, %487 : vector<2x256xf32>
    %489 = arith.addf %483, %488 : vector<2x256xf32>
    %490 = vector.extract_strided_slice %460 {offsets = [0, 3], sizes = [2, 1], strides = [1, 1]} : vector<2x4xf32> to vector<2x1xf32>
    %491 = vector.extract_strided_slice %472 {offsets = [3, 0], sizes = [1, 256], strides = [1, 1]} : vector<8x256xf32> to vector<1x256xf32>
    %492 = vector.broadcast %490 : vector<2x1xf32> to vector<2x256xf32>
    %493 = vector.broadcast %491 : vector<1x256xf32> to vector<2x256xf32>
    %494 = arith.mulf %492, %493 : vector<2x256xf32>
    %495 = arith.addf %489, %494 : vector<2x256xf32>
    %496 = vector.extract_strided_slice %460 {offsets = [0, 0], sizes = [2, 1], strides = [1, 1]} : vector<2x4xf32> to vector<2x1xf32>
    %497 = vector.extract_strided_slice %472 {offsets = [4, 0], sizes = [1, 256], strides = [1, 1]} : vector<8x256xf32> to vector<1x256xf32>
    %498 = vector.broadcast %496 : vector<2x1xf32> to vector<2x256xf32>
    %499 = vector.broadcast %497 : vector<1x256xf32> to vector<2x256xf32>
    %500 = arith.mulf %498, %499 : vector<2x256xf32>
    %501 = vector.extract_strided_slice %460 {offsets = [0, 1], sizes = [2, 1], strides = [1, 1]} : vector<2x4xf32> to vector<2x1xf32>
    %502 = vector.extract_strided_slice %472 {offsets = [5, 0], sizes = [1, 256], strides = [1, 1]} : vector<8x256xf32> to vector<1x256xf32>
    %503 = vector.broadcast %501 : vector<2x1xf32> to vector<2x256xf32>
    %504 = vector.broadcast %502 : vector<1x256xf32> to vector<2x256xf32>
    %505 = arith.mulf %503, %504 : vector<2x256xf32>
    %506 = arith.addf %500, %505 : vector<2x256xf32>
    %507 = vector.extract_strided_slice %460 {offsets = [0, 2], sizes = [2, 1], strides = [1, 1]} : vector<2x4xf32> to vector<2x1xf32>
    %508 = vector.extract_strided_slice %472 {offsets = [6, 0], sizes = [1, 256], strides = [1, 1]} : vector<8x256xf32> to vector<1x256xf32>
    %509 = vector.broadcast %507 : vector<2x1xf32> to vector<2x256xf32>
    %510 = vector.broadcast %508 : vector<1x256xf32> to vector<2x256xf32>
    %511 = arith.mulf %509, %510 : vector<2x256xf32>
    %512 = arith.addf %506, %511 : vector<2x256xf32>
    %513 = vector.extract_strided_slice %460 {offsets = [0, 3], sizes = [2, 1], strides = [1, 1]} : vector<2x4xf32> to vector<2x1xf32>
    %514 = vector.extract_strided_slice %472 {offsets = [7, 0], sizes = [1, 256], strides = [1, 1]} : vector<8x256xf32> to vector<1x256xf32>
    %515 = vector.broadcast %513 : vector<2x1xf32> to vector<2x256xf32>
    %516 = vector.broadcast %514 : vector<1x256xf32> to vector<2x256xf32>
    %517 = arith.mulf %515, %516 : vector<2x256xf32>
    %518 = arith.addf %512, %517 : vector<2x256xf32>
    %519 = tpu.concatenate %495, %518 in 0 : vector<2x256xf32>, vector<2x256xf32> -> vector<4x256xf32>
    %cst = arith.constant dense<0.000000e+00> : vector<4xf32>
    %520 = vector.multi_reduction <add>, %519, %cst [1] : vector<4x256xf32> to vector<4xf32>
    %521 = vector.shape_cast %520 : vector<4xf32> to vector<4x1xf32>
    %522 = arith.mulf %519, %519 : vector<4x256xf32>
    %cst_191 = arith.constant dense<0.000000e+00> : vector<4xf32>
    %523 = vector.multi_reduction <add>, %522, %cst_191 [1] : vector<4x256xf32> to vector<4xf32>
    %524 = vector.shape_cast %523 : vector<4xf32> to vector<4x1xf32>
    %525 = vector.extract_strided_slice %521 {offsets = [0, 0], sizes = [2, 1], strides = [1, 1]} : vector<4x1xf32> to vector<2x1xf32>
    %526 = vector.extract_strided_slice %524 {offsets = [0, 0], sizes = [2, 1], strides = [1, 1]} : vector<4x1xf32> to vector<2x1xf32>
    %527 = vector.extract_strided_slice %521 {offsets = [2, 0], sizes = [2, 1], strides = [1, 1]} : vector<4x1xf32> to vector<2x1xf32>
    %528 = arith.addf %525, %527 : vector<2x1xf32>
    %529 = vector.extract_strided_slice %524 {offsets = [2, 0], sizes = [2, 1], strides = [1, 1]} : vector<4x1xf32> to vector<2x1xf32>
    %530 = arith.addf %526, %529 : vector<2x1xf32>
    %cst_192 = arith.constant 0.001953125 : f32
    %531 = vector.broadcast %cst_192 : f32 to vector<2x1xf32>
    %532 = arith.mulf %528, %531 : vector<2x1xf32>
    %cst_193 = arith.constant 0.001953125 : f32
    %533 = vector.broadcast %cst_193 : f32 to vector<2x1xf32>
    %534 = arith.mulf %530, %533 : vector<2x1xf32>
    %535 = arith.mulf %532, %532 : vector<2x1xf32>
    %536 = arith.subf %534, %535 : vector<2x1xf32>
    %cst_194 = arith.constant 9.99999974E-6 : f32
    %537 = vector.broadcast %cst_194 : f32 to vector<2x1xf32>
    %538 = arith.addf %536, %537 : vector<2x1xf32>
    %539 = math.rsqrt %538 : vector<2x1xf32>
    %540 = arith.mulf %464, %539 : vector<2x1xf32>
    %541 = arith.mulf %532, %540 : vector<2x1xf32>
    %542 = arith.subf %465, %541 : vector<2x1xf32>
    %543 = tpu.concatenate %540, %540 in 0 : vector<2x1xf32>, vector<2x1xf32> -> vector<4x1xf32>
    %544 = tpu.concatenate %542, %542 in 0 : vector<2x1xf32>, vector<2x1xf32> -> vector<4x1xf32>
    %545 = vector.broadcast %543 : vector<4x1xf32> to vector<4x256xf32>
    %546 = arith.mulf %519, %545 : vector<4x256xf32>
    %547 = vector.broadcast %544 : vector<4x1xf32> to vector<4x256xf32>
    %548 = arith.addf %546, %547 : vector<4x256xf32>
    %cst_195 = arith.constant 5.000000e-01 : f32
    %549 = vector.broadcast %cst_195 : f32 to vector<4x256xf32>
    %550 = arith.mulf %549, %548 : vector<4x256xf32>
    %551 = math.tanh %550 : vector<4x256xf32>
    %cst_196 = arith.constant 5.000000e-01 : f32
    %552 = vector.broadcast %cst_196 : f32 to vector<4x256xf32>
    %553 = arith.mulf %552, %551 : vector<4x256xf32>
    %cst_197 = arith.constant 5.000000e-01 : f32
    %554 = vector.broadcast %cst_197 : f32 to vector<4x256xf32>
    %555 = arith.addf %553, %554 : vector<4x256xf32>
    %556 = arith.mulf %548, %555 : vector<4x256xf32>
    %557 = tpu.concatenate %462, %462 in 0 : vector<2x25xf32>, vector<2x25xf32> -> vector<4x25xf32>
    %c34_i32 = arith.constant 34 : i32
    %558 = tpu.dynamic_rotate %556 by %c34_i32 dim 1 : vector<4x256xf32>, i32 -> vector<4x256xf32>
    %cst_198 = arith.constant 0.000000e+00 : f32
    %559 = vector.shape_cast %21 : vector<1x256xi1> to vector<1x256xi1>
    %560 = vector.broadcast %559 : vector<1x256xi1> to vector<4x256xi1>
    %561 = vector.broadcast %cst_198 : f32 to vector<4x256xf32>
    %562 = arith.select %560, %558, %561 : vector<4x256xi1>, vector<4x256xf32>
    %563 = vector.extract_strided_slice %557 {offsets = [0, 0], sizes = [4, 1], strides = [1, 1]} : vector<4x25xf32> to vector<4x1xf32>
    %564 = vector.broadcast %563 : vector<4x1xf32> to vector<4x256xf32>
    %565 = arith.mulf %562, %564 : vector<4x256xf32>
    %c33_i32 = arith.constant 33 : i32
    %566 = tpu.dynamic_rotate %556 by %c33_i32 dim 1 : vector<4x256xf32>, i32 -> vector<4x256xf32>
    %cst_199 = arith.constant 0.000000e+00 : f32
    %567 = vector.shape_cast %40 : vector<1x256xi1> to vector<1x256xi1>
    %568 = vector.broadcast %567 : vector<1x256xi1> to vector<4x256xi1>
    %569 = vector.broadcast %cst_199 : f32 to vector<4x256xf32>
    %570 = arith.select %568, %566, %569 : vector<4x256xi1>, vector<4x256xf32>
    %571 = vector.extract_strided_slice %557 {offsets = [0, 1], sizes = [4, 1], strides = [1, 1]} : vector<4x25xf32> to vector<4x1xf32>
    %572 = vector.broadcast %571 : vector<4x1xf32> to vector<4x256xf32>
    %573 = arith.mulf %570, %572 : vector<4x256xf32>
    %574 = arith.addf %565, %573 : vector<4x256xf32>
    %c32_i32 = arith.constant 32 : i32
    %575 = tpu.dynamic_rotate %556 by %c32_i32 dim 1 : vector<4x256xf32>, i32 -> vector<4x256xf32>
    %cst_200 = arith.constant 0.000000e+00 : f32
    %576 = vector.shape_cast %59 : vector<1x256xi1> to vector<1x256xi1>
    %577 = vector.broadcast %576 : vector<1x256xi1> to vector<4x256xi1>
    %578 = vector.broadcast %cst_200 : f32 to vector<4x256xf32>
    %579 = arith.select %577, %575, %578 : vector<4x256xi1>, vector<4x256xf32>
    %580 = vector.extract_strided_slice %557 {offsets = [0, 2], sizes = [4, 1], strides = [1, 1]} : vector<4x25xf32> to vector<4x1xf32>
    %581 = vector.broadcast %580 : vector<4x1xf32> to vector<4x256xf32>
    %582 = arith.mulf %579, %581 : vector<4x256xf32>
    %583 = arith.addf %574, %582 : vector<4x256xf32>
    %c31_i32 = arith.constant 31 : i32
    %584 = tpu.dynamic_rotate %556 by %c31_i32 dim 1 : vector<4x256xf32>, i32 -> vector<4x256xf32>
    %cst_201 = arith.constant 0.000000e+00 : f32
    %585 = vector.shape_cast %78 : vector<1x256xi1> to vector<1x256xi1>
    %586 = vector.broadcast %585 : vector<1x256xi1> to vector<4x256xi1>
    %587 = vector.broadcast %cst_201 : f32 to vector<4x256xf32>
    %588 = arith.select %586, %584, %587 : vector<4x256xi1>, vector<4x256xf32>
    %589 = vector.extract_strided_slice %557 {offsets = [0, 3], sizes = [4, 1], strides = [1, 1]} : vector<4x25xf32> to vector<4x1xf32>
    %590 = vector.broadcast %589 : vector<4x1xf32> to vector<4x256xf32>
    %591 = arith.mulf %588, %590 : vector<4x256xf32>
    %592 = arith.addf %583, %591 : vector<4x256xf32>
    %c30_i32 = arith.constant 30 : i32
    %593 = tpu.dynamic_rotate %556 by %c30_i32 dim 1 : vector<4x256xf32>, i32 -> vector<4x256xf32>
    %cst_202 = arith.constant 0.000000e+00 : f32
    %594 = vector.shape_cast %97 : vector<1x256xi1> to vector<1x256xi1>
    %595 = vector.broadcast %594 : vector<1x256xi1> to vector<4x256xi1>
    %596 = vector.broadcast %cst_202 : f32 to vector<4x256xf32>
    %597 = arith.select %595, %593, %596 : vector<4x256xi1>, vector<4x256xf32>
    %598 = vector.extract_strided_slice %557 {offsets = [0, 4], sizes = [4, 1], strides = [1, 1]} : vector<4x25xf32> to vector<4x1xf32>
    %599 = vector.broadcast %598 : vector<4x1xf32> to vector<4x256xf32>
    %600 = arith.mulf %597, %599 : vector<4x256xf32>
    %601 = arith.addf %592, %600 : vector<4x256xf32>
    %c18_i32 = arith.constant 18 : i32
    %602 = tpu.dynamic_rotate %556 by %c18_i32 dim 1 : vector<4x256xf32>, i32 -> vector<4x256xf32>
    %cst_203 = arith.constant 0.000000e+00 : f32
    %603 = vector.shape_cast %116 : vector<1x256xi1> to vector<1x256xi1>
    %604 = vector.broadcast %603 : vector<1x256xi1> to vector<4x256xi1>
    %605 = vector.broadcast %cst_203 : f32 to vector<4x256xf32>
    %606 = arith.select %604, %602, %605 : vector<4x256xi1>, vector<4x256xf32>
    %607 = vector.extract_strided_slice %557 {offsets = [0, 5], sizes = [4, 1], strides = [1, 1]} : vector<4x25xf32> to vector<4x1xf32>
    %608 = vector.broadcast %607 : vector<4x1xf32> to vector<4x256xf32>
    %609 = arith.mulf %606, %608 : vector<4x256xf32>
    %c17_i32 = arith.constant 17 : i32
    %610 = tpu.dynamic_rotate %556 by %c17_i32 dim 1 : vector<4x256xf32>, i32 -> vector<4x256xf32>
    %cst_204 = arith.constant 0.000000e+00 : f32
    %611 = vector.shape_cast %135 : vector<1x256xi1> to vector<1x256xi1>
    %612 = vector.broadcast %611 : vector<1x256xi1> to vector<4x256xi1>
    %613 = vector.broadcast %cst_204 : f32 to vector<4x256xf32>
    %614 = arith.select %612, %610, %613 : vector<4x256xi1>, vector<4x256xf32>
    %615 = vector.extract_strided_slice %557 {offsets = [0, 6], sizes = [4, 1], strides = [1, 1]} : vector<4x25xf32> to vector<4x1xf32>
    %616 = vector.broadcast %615 : vector<4x1xf32> to vector<4x256xf32>
    %617 = arith.mulf %614, %616 : vector<4x256xf32>
    %618 = arith.addf %609, %617 : vector<4x256xf32>
    %c16_i32_205 = arith.constant 16 : i32
    %619 = tpu.dynamic_rotate %556 by %c16_i32_205 dim 1 : vector<4x256xf32>, i32 -> vector<4x256xf32>
    %cst_206 = arith.constant 0.000000e+00 : f32
    %620 = vector.shape_cast %154 : vector<1x256xi1> to vector<1x256xi1>
    %621 = vector.broadcast %620 : vector<1x256xi1> to vector<4x256xi1>
    %622 = vector.broadcast %cst_206 : f32 to vector<4x256xf32>
    %623 = arith.select %621, %619, %622 : vector<4x256xi1>, vector<4x256xf32>
    %624 = vector.extract_strided_slice %557 {offsets = [0, 7], sizes = [4, 1], strides = [1, 1]} : vector<4x25xf32> to vector<4x1xf32>
    %625 = vector.broadcast %624 : vector<4x1xf32> to vector<4x256xf32>
    %626 = arith.mulf %623, %625 : vector<4x256xf32>
    %627 = arith.addf %618, %626 : vector<4x256xf32>
    %c15_i32 = arith.constant 15 : i32
    %628 = tpu.dynamic_rotate %556 by %c15_i32 dim 1 : vector<4x256xf32>, i32 -> vector<4x256xf32>
    %cst_207 = arith.constant 0.000000e+00 : f32
    %629 = vector.shape_cast %173 : vector<1x256xi1> to vector<1x256xi1>
    %630 = vector.broadcast %629 : vector<1x256xi1> to vector<4x256xi1>
    %631 = vector.broadcast %cst_207 : f32 to vector<4x256xf32>
    %632 = arith.select %630, %628, %631 : vector<4x256xi1>, vector<4x256xf32>
    %633 = vector.extract_strided_slice %557 {offsets = [0, 8], sizes = [4, 1], strides = [1, 1]} : vector<4x25xf32> to vector<4x1xf32>
    %634 = vector.broadcast %633 : vector<4x1xf32> to vector<4x256xf32>
    %635 = arith.mulf %632, %634 : vector<4x256xf32>
    %636 = arith.addf %627, %635 : vector<4x256xf32>
    %c14_i32 = arith.constant 14 : i32
    %637 = tpu.dynamic_rotate %556 by %c14_i32 dim 1 : vector<4x256xf32>, i32 -> vector<4x256xf32>
    %cst_208 = arith.constant 0.000000e+00 : f32
    %638 = vector.shape_cast %192 : vector<1x256xi1> to vector<1x256xi1>
    %639 = vector.broadcast %638 : vector<1x256xi1> to vector<4x256xi1>
    %640 = vector.broadcast %cst_208 : f32 to vector<4x256xf32>
    %641 = arith.select %639, %637, %640 : vector<4x256xi1>, vector<4x256xf32>
    %642 = vector.extract_strided_slice %557 {offsets = [0, 9], sizes = [4, 1], strides = [1, 1]} : vector<4x25xf32> to vector<4x1xf32>
    %643 = vector.broadcast %642 : vector<4x1xf32> to vector<4x256xf32>
    %644 = arith.mulf %641, %643 : vector<4x256xf32>
    %645 = arith.addf %636, %644 : vector<4x256xf32>
    %c2_i32_209 = arith.constant 2 : i32
    %646 = tpu.dynamic_rotate %556 by %c2_i32_209 dim 1 : vector<4x256xf32>, i32 -> vector<4x256xf32>
    %cst_210 = arith.constant 0.000000e+00 : f32
    %647 = vector.shape_cast %211 : vector<1x256xi1> to vector<1x256xi1>
    %648 = vector.broadcast %647 : vector<1x256xi1> to vector<4x256xi1>
    %649 = vector.broadcast %cst_210 : f32 to vector<4x256xf32>
    %650 = arith.select %648, %646, %649 : vector<4x256xi1>, vector<4x256xf32>
    %651 = vector.extract_strided_slice %557 {offsets = [0, 10], sizes = [4, 1], strides = [1, 1]} : vector<4x25xf32> to vector<4x1xf32>
    %652 = vector.broadcast %651 : vector<4x1xf32> to vector<4x256xf32>
    %653 = arith.mulf %650, %652 : vector<4x256xf32>
    %c1_i32_211 = arith.constant 1 : i32
    %654 = tpu.dynamic_rotate %556 by %c1_i32_211 dim 1 : vector<4x256xf32>, i32 -> vector<4x256xf32>
    %cst_212 = arith.constant 0.000000e+00 : f32
    %655 = vector.shape_cast %230 : vector<1x256xi1> to vector<1x256xi1>
    %656 = vector.broadcast %655 : vector<1x256xi1> to vector<4x256xi1>
    %657 = vector.broadcast %cst_212 : f32 to vector<4x256xf32>
    %658 = arith.select %656, %654, %657 : vector<4x256xi1>, vector<4x256xf32>
    %659 = vector.extract_strided_slice %557 {offsets = [0, 11], sizes = [4, 1], strides = [1, 1]} : vector<4x25xf32> to vector<4x1xf32>
    %660 = vector.broadcast %659 : vector<4x1xf32> to vector<4x256xf32>
    %661 = arith.mulf %658, %660 : vector<4x256xf32>
    %662 = arith.addf %653, %661 : vector<4x256xf32>
    %663 = vector.extract_strided_slice %557 {offsets = [0, 12], sizes = [4, 1], strides = [1, 1]} : vector<4x25xf32> to vector<4x1xf32>
    %664 = vector.broadcast %663 : vector<4x1xf32> to vector<4x256xf32>
    %665 = arith.mulf %556, %664 : vector<4x256xf32>
    %666 = arith.addf %662, %665 : vector<4x256xf32>
    %c255_i32 = arith.constant 255 : i32
    %667 = tpu.dynamic_rotate %556 by %c255_i32 dim 1 : vector<4x256xf32>, i32 -> vector<4x256xf32>
    %cst_213 = arith.constant 0.000000e+00 : f32
    %668 = vector.shape_cast %249 : vector<1x256xi1> to vector<1x256xi1>
    %669 = vector.broadcast %668 : vector<1x256xi1> to vector<4x256xi1>
    %670 = vector.broadcast %cst_213 : f32 to vector<4x256xf32>
    %671 = arith.select %669, %667, %670 : vector<4x256xi1>, vector<4x256xf32>
    %672 = vector.extract_strided_slice %557 {offsets = [0, 13], sizes = [4, 1], strides = [1, 1]} : vector<4x25xf32> to vector<4x1xf32>
    %673 = vector.broadcast %672 : vector<4x1xf32> to vector<4x256xf32>
    %674 = arith.mulf %671, %673 : vector<4x256xf32>
    %675 = arith.addf %666, %674 : vector<4x256xf32>
    %c254_i32 = arith.constant 254 : i32
    %676 = tpu.dynamic_rotate %556 by %c254_i32 dim 1 : vector<4x256xf32>, i32 -> vector<4x256xf32>
    %cst_214 = arith.constant 0.000000e+00 : f32
    %677 = vector.shape_cast %268 : vector<1x256xi1> to vector<1x256xi1>
    %678 = vector.broadcast %677 : vector<1x256xi1> to vector<4x256xi1>
    %679 = vector.broadcast %cst_214 : f32 to vector<4x256xf32>
    %680 = arith.select %678, %676, %679 : vector<4x256xi1>, vector<4x256xf32>
    %681 = vector.extract_strided_slice %557 {offsets = [0, 14], sizes = [4, 1], strides = [1, 1]} : vector<4x25xf32> to vector<4x1xf32>
    %682 = vector.broadcast %681 : vector<4x1xf32> to vector<4x256xf32>
    %683 = arith.mulf %680, %682 : vector<4x256xf32>
    %684 = arith.addf %675, %683 : vector<4x256xf32>
    %c242_i32 = arith.constant 242 : i32
    %685 = tpu.dynamic_rotate %556 by %c242_i32 dim 1 : vector<4x256xf32>, i32 -> vector<4x256xf32>
    %cst_215 = arith.constant 0.000000e+00 : f32
    %686 = vector.shape_cast %287 : vector<1x256xi1> to vector<1x256xi1>
    %687 = vector.broadcast %686 : vector<1x256xi1> to vector<4x256xi1>
    %688 = vector.broadcast %cst_215 : f32 to vector<4x256xf32>
    %689 = arith.select %687, %685, %688 : vector<4x256xi1>, vector<4x256xf32>
    %690 = vector.extract_strided_slice %557 {offsets = [0, 15], sizes = [4, 1], strides = [1, 1]} : vector<4x25xf32> to vector<4x1xf32>
    %691 = vector.broadcast %690 : vector<4x1xf32> to vector<4x256xf32>
    %692 = arith.mulf %689, %691 : vector<4x256xf32>
    %c241_i32 = arith.constant 241 : i32
    %693 = tpu.dynamic_rotate %556 by %c241_i32 dim 1 : vector<4x256xf32>, i32 -> vector<4x256xf32>
    %cst_216 = arith.constant 0.000000e+00 : f32
    %694 = vector.shape_cast %306 : vector<1x256xi1> to vector<1x256xi1>
    %695 = vector.broadcast %694 : vector<1x256xi1> to vector<4x256xi1>
    %696 = vector.broadcast %cst_216 : f32 to vector<4x256xf32>
    %697 = arith.select %695, %693, %696 : vector<4x256xi1>, vector<4x256xf32>
    %698 = vector.extract_strided_slice %557 {offsets = [0, 16], sizes = [4, 1], strides = [1, 1]} : vector<4x25xf32> to vector<4x1xf32>
    %699 = vector.broadcast %698 : vector<4x1xf32> to vector<4x256xf32>
    %700 = arith.mulf %697, %699 : vector<4x256xf32>
    %701 = arith.addf %692, %700 : vector<4x256xf32>
    %c240_i32 = arith.constant 240 : i32
    %702 = tpu.dynamic_rotate %556 by %c240_i32 dim 1 : vector<4x256xf32>, i32 -> vector<4x256xf32>
    %cst_217 = arith.constant 0.000000e+00 : f32
    %703 = vector.shape_cast %325 : vector<1x256xi1> to vector<1x256xi1>
    %704 = vector.broadcast %703 : vector<1x256xi1> to vector<4x256xi1>
    %705 = vector.broadcast %cst_217 : f32 to vector<4x256xf32>
    %706 = arith.select %704, %702, %705 : vector<4x256xi1>, vector<4x256xf32>
    %707 = vector.extract_strided_slice %557 {offsets = [0, 17], sizes = [4, 1], strides = [1, 1]} : vector<4x25xf32> to vector<4x1xf32>
    %708 = vector.broadcast %707 : vector<4x1xf32> to vector<4x256xf32>
    %709 = arith.mulf %706, %708 : vector<4x256xf32>
    %710 = arith.addf %701, %709 : vector<4x256xf32>
    %c239_i32 = arith.constant 239 : i32
    %711 = tpu.dynamic_rotate %556 by %c239_i32 dim 1 : vector<4x256xf32>, i32 -> vector<4x256xf32>
    %cst_218 = arith.constant 0.000000e+00 : f32
    %712 = vector.shape_cast %344 : vector<1x256xi1> to vector<1x256xi1>
    %713 = vector.broadcast %712 : vector<1x256xi1> to vector<4x256xi1>
    %714 = vector.broadcast %cst_218 : f32 to vector<4x256xf32>
    %715 = arith.select %713, %711, %714 : vector<4x256xi1>, vector<4x256xf32>
    %716 = vector.extract_strided_slice %557 {offsets = [0, 18], sizes = [4, 1], strides = [1, 1]} : vector<4x25xf32> to vector<4x1xf32>
    %717 = vector.broadcast %716 : vector<4x1xf32> to vector<4x256xf32>
    %718 = arith.mulf %715, %717 : vector<4x256xf32>
    %719 = arith.addf %710, %718 : vector<4x256xf32>
    %c238_i32 = arith.constant 238 : i32
    %720 = tpu.dynamic_rotate %556 by %c238_i32 dim 1 : vector<4x256xf32>, i32 -> vector<4x256xf32>
    %cst_219 = arith.constant 0.000000e+00 : f32
    %721 = vector.shape_cast %363 : vector<1x256xi1> to vector<1x256xi1>
    %722 = vector.broadcast %721 : vector<1x256xi1> to vector<4x256xi1>
    %723 = vector.broadcast %cst_219 : f32 to vector<4x256xf32>
    %724 = arith.select %722, %720, %723 : vector<4x256xi1>, vector<4x256xf32>
    %725 = vector.extract_strided_slice %557 {offsets = [0, 19], sizes = [4, 1], strides = [1, 1]} : vector<4x25xf32> to vector<4x1xf32>
    %726 = vector.broadcast %725 : vector<4x1xf32> to vector<4x256xf32>
    %727 = arith.mulf %724, %726 : vector<4x256xf32>
    %728 = arith.addf %719, %727 : vector<4x256xf32>
    %c226_i32 = arith.constant 226 : i32
    %729 = tpu.dynamic_rotate %556 by %c226_i32 dim 1 : vector<4x256xf32>, i32 -> vector<4x256xf32>
    %cst_220 = arith.constant 0.000000e+00 : f32
    %730 = vector.shape_cast %382 : vector<1x256xi1> to vector<1x256xi1>
    %731 = vector.broadcast %730 : vector<1x256xi1> to vector<4x256xi1>
    %732 = vector.broadcast %cst_220 : f32 to vector<4x256xf32>
    %733 = arith.select %731, %729, %732 : vector<4x256xi1>, vector<4x256xf32>
    %734 = vector.extract_strided_slice %557 {offsets = [0, 20], sizes = [4, 1], strides = [1, 1]} : vector<4x25xf32> to vector<4x1xf32>
    %735 = vector.broadcast %734 : vector<4x1xf32> to vector<4x256xf32>
    %736 = arith.mulf %733, %735 : vector<4x256xf32>
    %c225_i32 = arith.constant 225 : i32
    %737 = tpu.dynamic_rotate %556 by %c225_i32 dim 1 : vector<4x256xf32>, i32 -> vector<4x256xf32>
    %cst_221 = arith.constant 0.000000e+00 : f32
    %738 = vector.shape_cast %401 : vector<1x256xi1> to vector<1x256xi1>
    %739 = vector.broadcast %738 : vector<1x256xi1> to vector<4x256xi1>
    %740 = vector.broadcast %cst_221 : f32 to vector<4x256xf32>
    %741 = arith.select %739, %737, %740 : vector<4x256xi1>, vector<4x256xf32>
    %742 = vector.extract_strided_slice %557 {offsets = [0, 21], sizes = [4, 1], strides = [1, 1]} : vector<4x25xf32> to vector<4x1xf32>
    %743 = vector.broadcast %742 : vector<4x1xf32> to vector<4x256xf32>
    %744 = arith.mulf %741, %743 : vector<4x256xf32>
    %745 = arith.addf %736, %744 : vector<4x256xf32>
    %c224_i32 = arith.constant 224 : i32
    %746 = tpu.dynamic_rotate %556 by %c224_i32 dim 1 : vector<4x256xf32>, i32 -> vector<4x256xf32>
    %cst_222 = arith.constant 0.000000e+00 : f32
    %747 = vector.shape_cast %420 : vector<1x256xi1> to vector<1x256xi1>
    %748 = vector.broadcast %747 : vector<1x256xi1> to vector<4x256xi1>
    %749 = vector.broadcast %cst_222 : f32 to vector<4x256xf32>
    %750 = arith.select %748, %746, %749 : vector<4x256xi1>, vector<4x256xf32>
    %751 = vector.extract_strided_slice %557 {offsets = [0, 22], sizes = [4, 1], strides = [1, 1]} : vector<4x25xf32> to vector<4x1xf32>
    %752 = vector.broadcast %751 : vector<4x1xf32> to vector<4x256xf32>
    %753 = arith.mulf %750, %752 : vector<4x256xf32>
    %754 = arith.addf %745, %753 : vector<4x256xf32>
    %c223_i32 = arith.constant 223 : i32
    %755 = tpu.dynamic_rotate %556 by %c223_i32 dim 1 : vector<4x256xf32>, i32 -> vector<4x256xf32>
    %cst_223 = arith.constant 0.000000e+00 : f32
    %756 = vector.shape_cast %439 : vector<1x256xi1> to vector<1x256xi1>
    %757 = vector.broadcast %756 : vector<1x256xi1> to vector<4x256xi1>
    %758 = vector.broadcast %cst_223 : f32 to vector<4x256xf32>
    %759 = arith.select %757, %755, %758 : vector<4x256xi1>, vector<4x256xf32>
    %760 = vector.extract_strided_slice %557 {offsets = [0, 23], sizes = [4, 1], strides = [1, 1]} : vector<4x25xf32> to vector<4x1xf32>
    %761 = vector.broadcast %760 : vector<4x1xf32> to vector<4x256xf32>
    %762 = arith.mulf %759, %761 : vector<4x256xf32>
    %763 = arith.addf %754, %762 : vector<4x256xf32>
    %c222_i32 = arith.constant 222 : i32
    %764 = tpu.dynamic_rotate %556 by %c222_i32 dim 1 : vector<4x256xf32>, i32 -> vector<4x256xf32>
    %cst_224 = arith.constant 0.000000e+00 : f32
    %765 = vector.shape_cast %458 : vector<1x256xi1> to vector<1x256xi1>
    %766 = vector.broadcast %765 : vector<1x256xi1> to vector<4x256xi1>
    %767 = vector.broadcast %cst_224 : f32 to vector<4x256xf32>
    %768 = arith.select %766, %764, %767 : vector<4x256xi1>, vector<4x256xf32>
    %769 = vector.extract_strided_slice %557 {offsets = [0, 24], sizes = [4, 1], strides = [1, 1]} : vector<4x25xf32> to vector<4x1xf32>
    %770 = vector.broadcast %769 : vector<4x1xf32> to vector<4x256xf32>
    %771 = arith.mulf %768, %770 : vector<4x256xf32>
    %772 = arith.addf %763, %771 : vector<4x256xf32>
    %773 = arith.addf %601, %645 : vector<4x256xf32>
    %774 = arith.addf %684, %728 : vector<4x256xf32>
    %775 = arith.addf %773, %774 : vector<4x256xf32>
    %776 = arith.addf %775, %772 : vector<4x256xf32>
    %cst_225 = arith.constant dense<0.000000e+00> : vector<4xf32>
    %777 = vector.multi_reduction <add>, %776, %cst_225 [1] : vector<4x256xf32> to vector<4xf32>
    %778 = vector.shape_cast %777 : vector<4xf32> to vector<4x1xf32>
    %779 = arith.mulf %776, %776 : vector<4x256xf32>
    %cst_226 = arith.constant dense<0.000000e+00> : vector<4xf32>
    %780 = vector.multi_reduction <add>, %779, %cst_226 [1] : vector<4x256xf32> to vector<4xf32>
    %781 = vector.shape_cast %780 : vector<4xf32> to vector<4x1xf32>
    %782 = vector.extract_strided_slice %778 {offsets = [0, 0], sizes = [2, 1], strides = [1, 1]} : vector<4x1xf32> to vector<2x1xf32>
    %783 = vector.extract_strided_slice %781 {offsets = [0, 0], sizes = [2, 1], strides = [1, 1]} : vector<4x1xf32> to vector<2x1xf32>
    %784 = vector.extract_strided_slice %778 {offsets = [2, 0], sizes = [2, 1], strides = [1, 1]} : vector<4x1xf32> to vector<2x1xf32>
    %785 = arith.addf %782, %784 : vector<2x1xf32>
    %786 = vector.extract_strided_slice %781 {offsets = [2, 0], sizes = [2, 1], strides = [1, 1]} : vector<4x1xf32> to vector<2x1xf32>
    %787 = arith.addf %783, %786 : vector<2x1xf32>
    %cst_227 = arith.constant 0.001953125 : f32
    %788 = vector.broadcast %cst_227 : f32 to vector<2x1xf32>
    %789 = arith.mulf %785, %788 : vector<2x1xf32>
    %cst_228 = arith.constant 0.001953125 : f32
    %790 = vector.broadcast %cst_228 : f32 to vector<2x1xf32>
    %791 = arith.mulf %787, %790 : vector<2x1xf32>
    %792 = arith.mulf %789, %789 : vector<2x1xf32>
    %793 = arith.subf %791, %792 : vector<2x1xf32>
    %cst_229 = arith.constant 9.99999974E-6 : f32
    %794 = vector.broadcast %cst_229 : f32 to vector<2x1xf32>
    %795 = arith.addf %793, %794 : vector<2x1xf32>
    %796 = math.rsqrt %795 : vector<2x1xf32>
    %797 = arith.mulf %466, %796 : vector<2x1xf32>
    %798 = arith.mulf %789, %797 : vector<2x1xf32>
    %799 = arith.subf %467, %798 : vector<2x1xf32>
    %800 = tpu.concatenate %797, %797 in 0 : vector<2x1xf32>, vector<2x1xf32> -> vector<4x1xf32>
    %801 = tpu.concatenate %799, %799 in 0 : vector<2x1xf32>, vector<2x1xf32> -> vector<4x1xf32>
    %802 = vector.broadcast %800 : vector<4x1xf32> to vector<4x256xf32>
    %803 = arith.mulf %776, %802 : vector<4x256xf32>
    %804 = vector.broadcast %801 : vector<4x1xf32> to vector<4x256xf32>
    %805 = arith.addf %803, %804 : vector<4x256xf32>
    %cst_230 = arith.constant 5.000000e-01 : f32
    %806 = vector.broadcast %cst_230 : f32 to vector<4x256xf32>
    %807 = arith.mulf %806, %805 : vector<4x256xf32>
    %808 = math.tanh %807 : vector<4x256xf32>
    %cst_231 = arith.constant 5.000000e-01 : f32
    %809 = vector.broadcast %cst_231 : f32 to vector<4x256xf32>
    %810 = arith.mulf %809, %808 : vector<4x256xf32>
    %cst_232 = arith.constant 5.000000e-01 : f32
    %811 = vector.broadcast %cst_232 : f32 to vector<4x256xf32>
    %812 = arith.addf %810, %811 : vector<4x256xf32>
    %813 = arith.mulf %805, %812 : vector<4x256xf32>
    %814 = vector.extract_strided_slice %461 {offsets = [0, 0], sizes = [4, 1], strides = [1, 1]} : vector<4x4xf32> to vector<4x1xf32>
    %815 = vector.extract_strided_slice %556 {offsets = [0, 0], sizes = [1, 256], strides = [1, 1]} : vector<4x256xf32> to vector<1x256xf32>
    %816 = vector.broadcast %814 : vector<4x1xf32> to vector<4x256xf32>
    %817 = vector.broadcast %815 : vector<1x256xf32> to vector<4x256xf32>
    %818 = arith.mulf %816, %817 : vector<4x256xf32>
    %819 = vector.extract_strided_slice %461 {offsets = [0, 1], sizes = [4, 1], strides = [1, 1]} : vector<4x4xf32> to vector<4x1xf32>
    %820 = vector.extract_strided_slice %556 {offsets = [1, 0], sizes = [1, 256], strides = [1, 1]} : vector<4x256xf32> to vector<1x256xf32>
    %821 = vector.broadcast %819 : vector<4x1xf32> to vector<4x256xf32>
    %822 = vector.broadcast %820 : vector<1x256xf32> to vector<4x256xf32>
    %823 = arith.mulf %821, %822 : vector<4x256xf32>
    %824 = arith.addf %818, %823 : vector<4x256xf32>
    %825 = vector.extract_strided_slice %461 {offsets = [0, 2], sizes = [4, 1], strides = [1, 1]} : vector<4x4xf32> to vector<4x1xf32>
    %826 = vector.extract_strided_slice %813 {offsets = [0, 0], sizes = [1, 256], strides = [1, 1]} : vector<4x256xf32> to vector<1x256xf32>
    %827 = vector.broadcast %825 : vector<4x1xf32> to vector<4x256xf32>
    %828 = vector.broadcast %826 : vector<1x256xf32> to vector<4x256xf32>
    %829 = arith.mulf %827, %828 : vector<4x256xf32>
    %830 = arith.addf %824, %829 : vector<4x256xf32>
    %831 = vector.extract_strided_slice %461 {offsets = [0, 3], sizes = [4, 1], strides = [1, 1]} : vector<4x4xf32> to vector<4x1xf32>
    %832 = vector.extract_strided_slice %813 {offsets = [1, 0], sizes = [1, 256], strides = [1, 1]} : vector<4x256xf32> to vector<1x256xf32>
    %833 = vector.broadcast %831 : vector<4x1xf32> to vector<4x256xf32>
    %834 = vector.broadcast %832 : vector<1x256xf32> to vector<4x256xf32>
    %835 = arith.mulf %833, %834 : vector<4x256xf32>
    %836 = arith.addf %830, %835 : vector<4x256xf32>
    %837 = vector.extract_strided_slice %461 {offsets = [0, 0], sizes = [4, 1], strides = [1, 1]} : vector<4x4xf32> to vector<4x1xf32>
    %838 = vector.extract_strided_slice %556 {offsets = [2, 0], sizes = [1, 256], strides = [1, 1]} : vector<4x256xf32> to vector<1x256xf32>
    %839 = vector.broadcast %837 : vector<4x1xf32> to vector<4x256xf32>
    %840 = vector.broadcast %838 : vector<1x256xf32> to vector<4x256xf32>
    %841 = arith.mulf %839, %840 : vector<4x256xf32>
    %842 = vector.extract_strided_slice %461 {offsets = [0, 1], sizes = [4, 1], strides = [1, 1]} : vector<4x4xf32> to vector<4x1xf32>
    %843 = vector.extract_strided_slice %556 {offsets = [3, 0], sizes = [1, 256], strides = [1, 1]} : vector<4x256xf32> to vector<1x256xf32>
    %844 = vector.broadcast %842 : vector<4x1xf32> to vector<4x256xf32>
    %845 = vector.broadcast %843 : vector<1x256xf32> to vector<4x256xf32>
    %846 = arith.mulf %844, %845 : vector<4x256xf32>
    %847 = arith.addf %841, %846 : vector<4x256xf32>
    %848 = vector.extract_strided_slice %461 {offsets = [0, 2], sizes = [4, 1], strides = [1, 1]} : vector<4x4xf32> to vector<4x1xf32>
    %849 = vector.extract_strided_slice %813 {offsets = [2, 0], sizes = [1, 256], strides = [1, 1]} : vector<4x256xf32> to vector<1x256xf32>
    %850 = vector.broadcast %848 : vector<4x1xf32> to vector<4x256xf32>
    %851 = vector.broadcast %849 : vector<1x256xf32> to vector<4x256xf32>
    %852 = arith.mulf %850, %851 : vector<4x256xf32>
    %853 = arith.addf %847, %852 : vector<4x256xf32>
    %854 = vector.extract_strided_slice %461 {offsets = [0, 3], sizes = [4, 1], strides = [1, 1]} : vector<4x4xf32> to vector<4x1xf32>
    %855 = vector.extract_strided_slice %813 {offsets = [3, 0], sizes = [1, 256], strides = [1, 1]} : vector<4x256xf32> to vector<1x256xf32>
    %856 = vector.broadcast %854 : vector<4x1xf32> to vector<4x256xf32>
    %857 = vector.broadcast %855 : vector<1x256xf32> to vector<4x256xf32>
    %858 = arith.mulf %856, %857 : vector<4x256xf32>
    %859 = arith.addf %853, %858 : vector<4x256xf32>
    %860 = tpu.concatenate %836, %859 in 0 : vector<4x256xf32>, vector<4x256xf32> -> vector<8x256xf32>
    %cst_233 = arith.constant dense<0.000000e+00> : vector<8xf32>
    %861 = vector.multi_reduction <add>, %860, %cst_233 [1] : vector<8x256xf32> to vector<8xf32>
    %862 = vector.shape_cast %861 : vector<8xf32> to vector<8x1xf32>
    %863 = arith.mulf %860, %860 : vector<8x256xf32>
    %cst_234 = arith.constant dense<0.000000e+00> : vector<8xf32>
    %864 = vector.multi_reduction <add>, %863, %cst_234 [1] : vector<8x256xf32> to vector<8xf32>
    %865 = vector.shape_cast %864 : vector<8xf32> to vector<8x1xf32>
    %866 = vector.extract_strided_slice %862 {offsets = [0, 0], sizes = [4, 1], strides = [1, 1]} : vector<8x1xf32> to vector<4x1xf32>
    %867 = vector.extract_strided_slice %865 {offsets = [0, 0], sizes = [4, 1], strides = [1, 1]} : vector<8x1xf32> to vector<4x1xf32>
    %868 = vector.extract_strided_slice %862 {offsets = [4, 0], sizes = [4, 1], strides = [1, 1]} : vector<8x1xf32> to vector<4x1xf32>
    %869 = arith.addf %866, %868 : vector<4x1xf32>
    %870 = vector.extract_strided_slice %865 {offsets = [4, 0], sizes = [4, 1], strides = [1, 1]} : vector<8x1xf32> to vector<4x1xf32>
    %871 = arith.addf %867, %870 : vector<4x1xf32>
    %cst_235 = arith.constant 0.001953125 : f32
    %872 = vector.broadcast %cst_235 : f32 to vector<4x1xf32>
    %873 = arith.mulf %869, %872 : vector<4x1xf32>
    %cst_236 = arith.constant 0.001953125 : f32
    %874 = vector.broadcast %cst_236 : f32 to vector<4x1xf32>
    %875 = arith.mulf %871, %874 : vector<4x1xf32>
    %876 = arith.mulf %873, %873 : vector<4x1xf32>
    %877 = arith.subf %875, %876 : vector<4x1xf32>
    %cst_237 = arith.constant 9.99999974E-6 : f32
    %878 = vector.broadcast %cst_237 : f32 to vector<4x1xf32>
    %879 = arith.addf %877, %878 : vector<4x1xf32>
    %880 = math.rsqrt %879 : vector<4x1xf32>
    %881 = arith.mulf %468, %880 : vector<4x1xf32>
    %882 = arith.mulf %873, %881 : vector<4x1xf32>
    %883 = arith.subf %469, %882 : vector<4x1xf32>
    %884 = tpu.concatenate %881, %881 in 0 : vector<4x1xf32>, vector<4x1xf32> -> vector<8x1xf32>
    %885 = tpu.concatenate %883, %883 in 0 : vector<4x1xf32>, vector<4x1xf32> -> vector<8x1xf32>
    %886 = vector.broadcast %884 : vector<8x1xf32> to vector<8x256xf32>
    %887 = arith.mulf %860, %886 : vector<8x256xf32>
    %888 = vector.broadcast %885 : vector<8x1xf32> to vector<8x256xf32>
    %889 = arith.addf %887, %888 : vector<8x256xf32>
    %890 = tpu.concatenate %463, %463 in 0 : vector<4x25xf32>, vector<4x25xf32> -> vector<8x25xf32>
    %c34_i32_238 = arith.constant 34 : i32
    %891 = tpu.dynamic_rotate %889 by %c34_i32_238 dim 1 : vector<8x256xf32>, i32 -> vector<8x256xf32>
    %cst_239 = arith.constant 0.000000e+00 : f32
    %892 = vector.shape_cast %21 : vector<1x256xi1> to vector<1x256xi1>
    %893 = vector.broadcast %892 : vector<1x256xi1> to vector<8x256xi1>
    %894 = vector.broadcast %cst_239 : f32 to vector<8x256xf32>
    %895 = arith.select %893, %891, %894 : vector<8x256xi1>, vector<8x256xf32>
    %896 = vector.extract_strided_slice %890 {offsets = [0, 0], sizes = [8, 1], strides = [1, 1]} : vector<8x25xf32> to vector<8x1xf32>
    %897 = vector.broadcast %896 : vector<8x1xf32> to vector<8x256xf32>
    %898 = arith.mulf %895, %897 : vector<8x256xf32>
    %c33_i32_240 = arith.constant 33 : i32
    %899 = tpu.dynamic_rotate %889 by %c33_i32_240 dim 1 : vector<8x256xf32>, i32 -> vector<8x256xf32>
    %cst_241 = arith.constant 0.000000e+00 : f32
    %900 = vector.shape_cast %40 : vector<1x256xi1> to vector<1x256xi1>
    %901 = vector.broadcast %900 : vector<1x256xi1> to vector<8x256xi1>
    %902 = vector.broadcast %cst_241 : f32 to vector<8x256xf32>
    %903 = arith.select %901, %899, %902 : vector<8x256xi1>, vector<8x256xf32>
    %904 = vector.extract_strided_slice %890 {offsets = [0, 1], sizes = [8, 1], strides = [1, 1]} : vector<8x25xf32> to vector<8x1xf32>
    %905 = vector.broadcast %904 : vector<8x1xf32> to vector<8x256xf32>
    %906 = arith.mulf %903, %905 : vector<8x256xf32>
    %907 = arith.addf %898, %906 : vector<8x256xf32>
    %c32_i32_242 = arith.constant 32 : i32
    %908 = tpu.dynamic_rotate %889 by %c32_i32_242 dim 1 : vector<8x256xf32>, i32 -> vector<8x256xf32>
    %cst_243 = arith.constant 0.000000e+00 : f32
    %909 = vector.shape_cast %59 : vector<1x256xi1> to vector<1x256xi1>
    %910 = vector.broadcast %909 : vector<1x256xi1> to vector<8x256xi1>
    %911 = vector.broadcast %cst_243 : f32 to vector<8x256xf32>
    %912 = arith.select %910, %908, %911 : vector<8x256xi1>, vector<8x256xf32>
    %913 = vector.extract_strided_slice %890 {offsets = [0, 2], sizes = [8, 1], strides = [1, 1]} : vector<8x25xf32> to vector<8x1xf32>
    %914 = vector.broadcast %913 : vector<8x1xf32> to vector<8x256xf32>
    %915 = arith.mulf %912, %914 : vector<8x256xf32>
    %916 = arith.addf %907, %915 : vector<8x256xf32>
    %c31_i32_244 = arith.constant 31 : i32
    %917 = tpu.dynamic_rotate %889 by %c31_i32_244 dim 1 : vector<8x256xf32>, i32 -> vector<8x256xf32>
    %cst_245 = arith.constant 0.000000e+00 : f32
    %918 = vector.shape_cast %78 : vector<1x256xi1> to vector<1x256xi1>
    %919 = vector.broadcast %918 : vector<1x256xi1> to vector<8x256xi1>
    %920 = vector.broadcast %cst_245 : f32 to vector<8x256xf32>
    %921 = arith.select %919, %917, %920 : vector<8x256xi1>, vector<8x256xf32>
    %922 = vector.extract_strided_slice %890 {offsets = [0, 3], sizes = [8, 1], strides = [1, 1]} : vector<8x25xf32> to vector<8x1xf32>
    %923 = vector.broadcast %922 : vector<8x1xf32> to vector<8x256xf32>
    %924 = arith.mulf %921, %923 : vector<8x256xf32>
    %925 = arith.addf %916, %924 : vector<8x256xf32>
    %c30_i32_246 = arith.constant 30 : i32
    %926 = tpu.dynamic_rotate %889 by %c30_i32_246 dim 1 : vector<8x256xf32>, i32 -> vector<8x256xf32>
    %cst_247 = arith.constant 0.000000e+00 : f32
    %927 = vector.shape_cast %97 : vector<1x256xi1> to vector<1x256xi1>
    %928 = vector.broadcast %927 : vector<1x256xi1> to vector<8x256xi1>
    %929 = vector.broadcast %cst_247 : f32 to vector<8x256xf32>
    %930 = arith.select %928, %926, %929 : vector<8x256xi1>, vector<8x256xf32>
    %931 = vector.extract_strided_slice %890 {offsets = [0, 4], sizes = [8, 1], strides = [1, 1]} : vector<8x25xf32> to vector<8x1xf32>
    %932 = vector.broadcast %931 : vector<8x1xf32> to vector<8x256xf32>
    %933 = arith.mulf %930, %932 : vector<8x256xf32>
    %934 = arith.addf %925, %933 : vector<8x256xf32>
    %c18_i32_248 = arith.constant 18 : i32
    %935 = tpu.dynamic_rotate %889 by %c18_i32_248 dim 1 : vector<8x256xf32>, i32 -> vector<8x256xf32>
    %cst_249 = arith.constant 0.000000e+00 : f32
    %936 = vector.shape_cast %116 : vector<1x256xi1> to vector<1x256xi1>
    %937 = vector.broadcast %936 : vector<1x256xi1> to vector<8x256xi1>
    %938 = vector.broadcast %cst_249 : f32 to vector<8x256xf32>
    %939 = arith.select %937, %935, %938 : vector<8x256xi1>, vector<8x256xf32>
    %940 = vector.extract_strided_slice %890 {offsets = [0, 5], sizes = [8, 1], strides = [1, 1]} : vector<8x25xf32> to vector<8x1xf32>
    %941 = vector.broadcast %940 : vector<8x1xf32> to vector<8x256xf32>
    %942 = arith.mulf %939, %941 : vector<8x256xf32>
    %c17_i32_250 = arith.constant 17 : i32
    %943 = tpu.dynamic_rotate %889 by %c17_i32_250 dim 1 : vector<8x256xf32>, i32 -> vector<8x256xf32>
    %cst_251 = arith.constant 0.000000e+00 : f32
    %944 = vector.shape_cast %135 : vector<1x256xi1> to vector<1x256xi1>
    %945 = vector.broadcast %944 : vector<1x256xi1> to vector<8x256xi1>
    %946 = vector.broadcast %cst_251 : f32 to vector<8x256xf32>
    %947 = arith.select %945, %943, %946 : vector<8x256xi1>, vector<8x256xf32>
    %948 = vector.extract_strided_slice %890 {offsets = [0, 6], sizes = [8, 1], strides = [1, 1]} : vector<8x25xf32> to vector<8x1xf32>
    %949 = vector.broadcast %948 : vector<8x1xf32> to vector<8x256xf32>
    %950 = arith.mulf %947, %949 : vector<8x256xf32>
    %951 = arith.addf %942, %950 : vector<8x256xf32>
    %c16_i32_252 = arith.constant 16 : i32
    %952 = tpu.dynamic_rotate %889 by %c16_i32_252 dim 1 : vector<8x256xf32>, i32 -> vector<8x256xf32>
    %cst_253 = arith.constant 0.000000e+00 : f32
    %953 = vector.shape_cast %154 : vector<1x256xi1> to vector<1x256xi1>
    %954 = vector.broadcast %953 : vector<1x256xi1> to vector<8x256xi1>
    %955 = vector.broadcast %cst_253 : f32 to vector<8x256xf32>
    %956 = arith.select %954, %952, %955 : vector<8x256xi1>, vector<8x256xf32>
    %957 = vector.extract_strided_slice %890 {offsets = [0, 7], sizes = [8, 1], strides = [1, 1]} : vector<8x25xf32> to vector<8x1xf32>
    %958 = vector.broadcast %957 : vector<8x1xf32> to vector<8x256xf32>
    %959 = arith.mulf %956, %958 : vector<8x256xf32>
    %960 = arith.addf %951, %959 : vector<8x256xf32>
    %c15_i32_254 = arith.constant 15 : i32
    %961 = tpu.dynamic_rotate %889 by %c15_i32_254 dim 1 : vector<8x256xf32>, i32 -> vector<8x256xf32>
    %cst_255 = arith.constant 0.000000e+00 : f32
    %962 = vector.shape_cast %173 : vector<1x256xi1> to vector<1x256xi1>
    %963 = vector.broadcast %962 : vector<1x256xi1> to vector<8x256xi1>
    %964 = vector.broadcast %cst_255 : f32 to vector<8x256xf32>
    %965 = arith.select %963, %961, %964 : vector<8x256xi1>, vector<8x256xf32>
    %966 = vector.extract_strided_slice %890 {offsets = [0, 8], sizes = [8, 1], strides = [1, 1]} : vector<8x25xf32> to vector<8x1xf32>
    %967 = vector.broadcast %966 : vector<8x1xf32> to vector<8x256xf32>
    %968 = arith.mulf %965, %967 : vector<8x256xf32>
    %969 = arith.addf %960, %968 : vector<8x256xf32>
    %c14_i32_256 = arith.constant 14 : i32
    %970 = tpu.dynamic_rotate %889 by %c14_i32_256 dim 1 : vector<8x256xf32>, i32 -> vector<8x256xf32>
    %cst_257 = arith.constant 0.000000e+00 : f32
    %971 = vector.shape_cast %192 : vector<1x256xi1> to vector<1x256xi1>
    %972 = vector.broadcast %971 : vector<1x256xi1> to vector<8x256xi1>
    %973 = vector.broadcast %cst_257 : f32 to vector<8x256xf32>
    %974 = arith.select %972, %970, %973 : vector<8x256xi1>, vector<8x256xf32>
    %975 = vector.extract_strided_slice %890 {offsets = [0, 9], sizes = [8, 1], strides = [1, 1]} : vector<8x25xf32> to vector<8x1xf32>
    %976 = vector.broadcast %975 : vector<8x1xf32> to vector<8x256xf32>
    %977 = arith.mulf %974, %976 : vector<8x256xf32>
    %978 = arith.addf %969, %977 : vector<8x256xf32>
    %c2_i32_258 = arith.constant 2 : i32
    %979 = tpu.dynamic_rotate %889 by %c2_i32_258 dim 1 : vector<8x256xf32>, i32 -> vector<8x256xf32>
    %cst_259 = arith.constant 0.000000e+00 : f32
    %980 = vector.shape_cast %211 : vector<1x256xi1> to vector<1x256xi1>
    %981 = vector.broadcast %980 : vector<1x256xi1> to vector<8x256xi1>
    %982 = vector.broadcast %cst_259 : f32 to vector<8x256xf32>
    %983 = arith.select %981, %979, %982 : vector<8x256xi1>, vector<8x256xf32>
    %984 = vector.extract_strided_slice %890 {offsets = [0, 10], sizes = [8, 1], strides = [1, 1]} : vector<8x25xf32> to vector<8x1xf32>
    %985 = vector.broadcast %984 : vector<8x1xf32> to vector<8x256xf32>
    %986 = arith.mulf %983, %985 : vector<8x256xf32>
    %c1_i32_260 = arith.constant 1 : i32
    %987 = tpu.dynamic_rotate %889 by %c1_i32_260 dim 1 : vector<8x256xf32>, i32 -> vector<8x256xf32>
    %cst_261 = arith.constant 0.000000e+00 : f32
    %988 = vector.shape_cast %230 : vector<1x256xi1> to vector<1x256xi1>
    %989 = vector.broadcast %988 : vector<1x256xi1> to vector<8x256xi1>
    %990 = vector.broadcast %cst_261 : f32 to vector<8x256xf32>
    %991 = arith.select %989, %987, %990 : vector<8x256xi1>, vector<8x256xf32>
    %992 = vector.extract_strided_slice %890 {offsets = [0, 11], sizes = [8, 1], strides = [1, 1]} : vector<8x25xf32> to vector<8x1xf32>
    %993 = vector.broadcast %992 : vector<8x1xf32> to vector<8x256xf32>
    %994 = arith.mulf %991, %993 : vector<8x256xf32>
    %995 = arith.addf %986, %994 : vector<8x256xf32>
    %996 = vector.extract_strided_slice %890 {offsets = [0, 12], sizes = [8, 1], strides = [1, 1]} : vector<8x25xf32> to vector<8x1xf32>
    %997 = vector.broadcast %996 : vector<8x1xf32> to vector<8x256xf32>
    %998 = arith.mulf %889, %997 : vector<8x256xf32>
    %999 = arith.addf %995, %998 : vector<8x256xf32>
    %c255_i32_262 = arith.constant 255 : i32
    %1000 = tpu.dynamic_rotate %889 by %c255_i32_262 dim 1 : vector<8x256xf32>, i32 -> vector<8x256xf32>
    %cst_263 = arith.constant 0.000000e+00 : f32
    %1001 = vector.shape_cast %249 : vector<1x256xi1> to vector<1x256xi1>
    %1002 = vector.broadcast %1001 : vector<1x256xi1> to vector<8x256xi1>
    %1003 = vector.broadcast %cst_263 : f32 to vector<8x256xf32>
    %1004 = arith.select %1002, %1000, %1003 : vector<8x256xi1>, vector<8x256xf32>
    %1005 = vector.extract_strided_slice %890 {offsets = [0, 13], sizes = [8, 1], strides = [1, 1]} : vector<8x25xf32> to vector<8x1xf32>
    %1006 = vector.broadcast %1005 : vector<8x1xf32> to vector<8x256xf32>
    %1007 = arith.mulf %1004, %1006 : vector<8x256xf32>
    %1008 = arith.addf %999, %1007 : vector<8x256xf32>
    %c254_i32_264 = arith.constant 254 : i32
    %1009 = tpu.dynamic_rotate %889 by %c254_i32_264 dim 1 : vector<8x256xf32>, i32 -> vector<8x256xf32>
    %cst_265 = arith.constant 0.000000e+00 : f32
    %1010 = vector.shape_cast %268 : vector<1x256xi1> to vector<1x256xi1>
    %1011 = vector.broadcast %1010 : vector<1x256xi1> to vector<8x256xi1>
    %1012 = vector.broadcast %cst_265 : f32 to vector<8x256xf32>
    %1013 = arith.select %1011, %1009, %1012 : vector<8x256xi1>, vector<8x256xf32>
    %1014 = vector.extract_strided_slice %890 {offsets = [0, 14], sizes = [8, 1], strides = [1, 1]} : vector<8x25xf32> to vector<8x1xf32>
    %1015 = vector.broadcast %1014 : vector<8x1xf32> to vector<8x256xf32>
    %1016 = arith.mulf %1013, %1015 : vector<8x256xf32>
    %1017 = arith.addf %1008, %1016 : vector<8x256xf32>
    %c242_i32_266 = arith.constant 242 : i32
    %1018 = tpu.dynamic_rotate %889 by %c242_i32_266 dim 1 : vector<8x256xf32>, i32 -> vector<8x256xf32>
    %cst_267 = arith.constant 0.000000e+00 : f32
    %1019 = vector.shape_cast %287 : vector<1x256xi1> to vector<1x256xi1>
    %1020 = vector.broadcast %1019 : vector<1x256xi1> to vector<8x256xi1>
    %1021 = vector.broadcast %cst_267 : f32 to vector<8x256xf32>
    %1022 = arith.select %1020, %1018, %1021 : vector<8x256xi1>, vector<8x256xf32>
    %1023 = vector.extract_strided_slice %890 {offsets = [0, 15], sizes = [8, 1], strides = [1, 1]} : vector<8x25xf32> to vector<8x1xf32>
    %1024 = vector.broadcast %1023 : vector<8x1xf32> to vector<8x256xf32>
    %1025 = arith.mulf %1022, %1024 : vector<8x256xf32>
    %c241_i32_268 = arith.constant 241 : i32
    %1026 = tpu.dynamic_rotate %889 by %c241_i32_268 dim 1 : vector<8x256xf32>, i32 -> vector<8x256xf32>
    %cst_269 = arith.constant 0.000000e+00 : f32
    %1027 = vector.shape_cast %306 : vector<1x256xi1> to vector<1x256xi1>
    %1028 = vector.broadcast %1027 : vector<1x256xi1> to vector<8x256xi1>
    %1029 = vector.broadcast %cst_269 : f32 to vector<8x256xf32>
    %1030 = arith.select %1028, %1026, %1029 : vector<8x256xi1>, vector<8x256xf32>
    %1031 = vector.extract_strided_slice %890 {offsets = [0, 16], sizes = [8, 1], strides = [1, 1]} : vector<8x25xf32> to vector<8x1xf32>
    %1032 = vector.broadcast %1031 : vector<8x1xf32> to vector<8x256xf32>
    %1033 = arith.mulf %1030, %1032 : vector<8x256xf32>
    %1034 = arith.addf %1025, %1033 : vector<8x256xf32>
    %c240_i32_270 = arith.constant 240 : i32
    %1035 = tpu.dynamic_rotate %889 by %c240_i32_270 dim 1 : vector<8x256xf32>, i32 -> vector<8x256xf32>
    %cst_271 = arith.constant 0.000000e+00 : f32
    %1036 = vector.shape_cast %325 : vector<1x256xi1> to vector<1x256xi1>
    %1037 = vector.broadcast %1036 : vector<1x256xi1> to vector<8x256xi1>
    %1038 = vector.broadcast %cst_271 : f32 to vector<8x256xf32>
    %1039 = arith.select %1037, %1035, %1038 : vector<8x256xi1>, vector<8x256xf32>
    %1040 = vector.extract_strided_slice %890 {offsets = [0, 17], sizes = [8, 1], strides = [1, 1]} : vector<8x25xf32> to vector<8x1xf32>
    %1041 = vector.broadcast %1040 : vector<8x1xf32> to vector<8x256xf32>
    %1042 = arith.mulf %1039, %1041 : vector<8x256xf32>
    %1043 = arith.addf %1034, %1042 : vector<8x256xf32>
    %c239_i32_272 = arith.constant 239 : i32
    %1044 = tpu.dynamic_rotate %889 by %c239_i32_272 dim 1 : vector<8x256xf32>, i32 -> vector<8x256xf32>
    %cst_273 = arith.constant 0.000000e+00 : f32
    %1045 = vector.shape_cast %344 : vector<1x256xi1> to vector<1x256xi1>
    %1046 = vector.broadcast %1045 : vector<1x256xi1> to vector<8x256xi1>
    %1047 = vector.broadcast %cst_273 : f32 to vector<8x256xf32>
    %1048 = arith.select %1046, %1044, %1047 : vector<8x256xi1>, vector<8x256xf32>
    %1049 = vector.extract_strided_slice %890 {offsets = [0, 18], sizes = [8, 1], strides = [1, 1]} : vector<8x25xf32> to vector<8x1xf32>
    %1050 = vector.broadcast %1049 : vector<8x1xf32> to vector<8x256xf32>
    %1051 = arith.mulf %1048, %1050 : vector<8x256xf32>
    %1052 = arith.addf %1043, %1051 : vector<8x256xf32>
    %c238_i32_274 = arith.constant 238 : i32
    %1053 = tpu.dynamic_rotate %889 by %c238_i32_274 dim 1 : vector<8x256xf32>, i32 -> vector<8x256xf32>
    %cst_275 = arith.constant 0.000000e+00 : f32
    %1054 = vector.shape_cast %363 : vector<1x256xi1> to vector<1x256xi1>
    %1055 = vector.broadcast %1054 : vector<1x256xi1> to vector<8x256xi1>
    %1056 = vector.broadcast %cst_275 : f32 to vector<8x256xf32>
    %1057 = arith.select %1055, %1053, %1056 : vector<8x256xi1>, vector<8x256xf32>
    %1058 = vector.extract_strided_slice %890 {offsets = [0, 19], sizes = [8, 1], strides = [1, 1]} : vector<8x25xf32> to vector<8x1xf32>
    %1059 = vector.broadcast %1058 : vector<8x1xf32> to vector<8x256xf32>
    %1060 = arith.mulf %1057, %1059 : vector<8x256xf32>
    %1061 = arith.addf %1052, %1060 : vector<8x256xf32>
    %c226_i32_276 = arith.constant 226 : i32
    %1062 = tpu.dynamic_rotate %889 by %c226_i32_276 dim 1 : vector<8x256xf32>, i32 -> vector<8x256xf32>
    %cst_277 = arith.constant 0.000000e+00 : f32
    %1063 = vector.shape_cast %382 : vector<1x256xi1> to vector<1x256xi1>
    %1064 = vector.broadcast %1063 : vector<1x256xi1> to vector<8x256xi1>
    %1065 = vector.broadcast %cst_277 : f32 to vector<8x256xf32>
    %1066 = arith.select %1064, %1062, %1065 : vector<8x256xi1>, vector<8x256xf32>
    %1067 = vector.extract_strided_slice %890 {offsets = [0, 20], sizes = [8, 1], strides = [1, 1]} : vector<8x25xf32> to vector<8x1xf32>
    %1068 = vector.broadcast %1067 : vector<8x1xf32> to vector<8x256xf32>
    %1069 = arith.mulf %1066, %1068 : vector<8x256xf32>
    %c225_i32_278 = arith.constant 225 : i32
    %1070 = tpu.dynamic_rotate %889 by %c225_i32_278 dim 1 : vector<8x256xf32>, i32 -> vector<8x256xf32>
    %cst_279 = arith.constant 0.000000e+00 : f32
    %1071 = vector.shape_cast %401 : vector<1x256xi1> to vector<1x256xi1>
    %1072 = vector.broadcast %1071 : vector<1x256xi1> to vector<8x256xi1>
    %1073 = vector.broadcast %cst_279 : f32 to vector<8x256xf32>
    %1074 = arith.select %1072, %1070, %1073 : vector<8x256xi1>, vector<8x256xf32>
    %1075 = vector.extract_strided_slice %890 {offsets = [0, 21], sizes = [8, 1], strides = [1, 1]} : vector<8x25xf32> to vector<8x1xf32>
    %1076 = vector.broadcast %1075 : vector<8x1xf32> to vector<8x256xf32>
    %1077 = arith.mulf %1074, %1076 : vector<8x256xf32>
    %1078 = arith.addf %1069, %1077 : vector<8x256xf32>
    %c224_i32_280 = arith.constant 224 : i32
    %1079 = tpu.dynamic_rotate %889 by %c224_i32_280 dim 1 : vector<8x256xf32>, i32 -> vector<8x256xf32>
    %cst_281 = arith.constant 0.000000e+00 : f32
    %1080 = vector.shape_cast %420 : vector<1x256xi1> to vector<1x256xi1>
    %1081 = vector.broadcast %1080 : vector<1x256xi1> to vector<8x256xi1>
    %1082 = vector.broadcast %cst_281 : f32 to vector<8x256xf32>
    %1083 = arith.select %1081, %1079, %1082 : vector<8x256xi1>, vector<8x256xf32>
    %1084 = vector.extract_strided_slice %890 {offsets = [0, 22], sizes = [8, 1], strides = [1, 1]} : vector<8x25xf32> to vector<8x1xf32>
    %1085 = vector.broadcast %1084 : vector<8x1xf32> to vector<8x256xf32>
    %1086 = arith.mulf %1083, %1085 : vector<8x256xf32>
    %1087 = arith.addf %1078, %1086 : vector<8x256xf32>
    %c223_i32_282 = arith.constant 223 : i32
    %1088 = tpu.dynamic_rotate %889 by %c223_i32_282 dim 1 : vector<8x256xf32>, i32 -> vector<8x256xf32>
    %cst_283 = arith.constant 0.000000e+00 : f32
    %1089 = vector.shape_cast %439 : vector<1x256xi1> to vector<1x256xi1>
    %1090 = vector.broadcast %1089 : vector<1x256xi1> to vector<8x256xi1>
    %1091 = vector.broadcast %cst_283 : f32 to vector<8x256xf32>
    %1092 = arith.select %1090, %1088, %1091 : vector<8x256xi1>, vector<8x256xf32>
    %1093 = vector.extract_strided_slice %890 {offsets = [0, 23], sizes = [8, 1], strides = [1, 1]} : vector<8x25xf32> to vector<8x1xf32>
    %1094 = vector.broadcast %1093 : vector<8x1xf32> to vector<8x256xf32>
    %1095 = arith.mulf %1092, %1094 : vector<8x256xf32>
    %1096 = arith.addf %1087, %1095 : vector<8x256xf32>
    %c222_i32_284 = arith.constant 222 : i32
    %1097 = tpu.dynamic_rotate %889 by %c222_i32_284 dim 1 : vector<8x256xf32>, i32 -> vector<8x256xf32>
    %cst_285 = arith.constant 0.000000e+00 : f32
    %1098 = vector.shape_cast %458 : vector<1x256xi1> to vector<1x256xi1>
    %1099 = vector.broadcast %1098 : vector<1x256xi1> to vector<8x256xi1>
    %1100 = vector.broadcast %cst_285 : f32 to vector<8x256xf32>
    %1101 = arith.select %1099, %1097, %1100 : vector<8x256xi1>, vector<8x256xf32>
    %1102 = vector.extract_strided_slice %890 {offsets = [0, 24], sizes = [8, 1], strides = [1, 1]} : vector<8x25xf32> to vector<8x1xf32>
    %1103 = vector.broadcast %1102 : vector<8x1xf32> to vector<8x256xf32>
    %1104 = arith.mulf %1101, %1103 : vector<8x256xf32>
    %1105 = arith.addf %1096, %1104 : vector<8x256xf32>
    %1106 = arith.addf %934, %978 : vector<8x256xf32>
    %1107 = arith.addf %1017, %1061 : vector<8x256xf32>
    %1108 = arith.addf %1106, %1107 : vector<8x256xf32>
    %1109 = arith.addf %1108, %1105 : vector<8x256xf32>
    %cst_286 = arith.constant dense<0.000000e+00> : vector<8xf32>
    %1110 = vector.multi_reduction <add>, %1109, %cst_286 [1] : vector<8x256xf32> to vector<8xf32>
    %1111 = vector.shape_cast %1110 : vector<8xf32> to vector<8x1xf32>
    %1112 = arith.mulf %1109, %1109 : vector<8x256xf32>
    %cst_287 = arith.constant dense<0.000000e+00> : vector<8xf32>
    %1113 = vector.multi_reduction <add>, %1112, %cst_287 [1] : vector<8x256xf32> to vector<8xf32>
    %1114 = vector.shape_cast %1113 : vector<8xf32> to vector<8x1xf32>
    %1115 = vector.extract_strided_slice %1111 {offsets = [0, 0], sizes = [4, 1], strides = [1, 1]} : vector<8x1xf32> to vector<4x1xf32>
    %1116 = vector.extract_strided_slice %1114 {offsets = [0, 0], sizes = [4, 1], strides = [1, 1]} : vector<8x1xf32> to vector<4x1xf32>
    %1117 = vector.extract_strided_slice %1111 {offsets = [4, 0], sizes = [4, 1], strides = [1, 1]} : vector<8x1xf32> to vector<4x1xf32>
    %1118 = arith.addf %1115, %1117 : vector<4x1xf32>
    %1119 = vector.extract_strided_slice %1114 {offsets = [4, 0], sizes = [4, 1], strides = [1, 1]} : vector<8x1xf32> to vector<4x1xf32>
    %1120 = arith.addf %1116, %1119 : vector<4x1xf32>
    %cst_288 = arith.constant 0.001953125 : f32
    %1121 = vector.broadcast %cst_288 : f32 to vector<4x1xf32>
    %1122 = arith.mulf %1118, %1121 : vector<4x1xf32>
    %cst_289 = arith.constant 0.001953125 : f32
    %1123 = vector.broadcast %cst_289 : f32 to vector<4x1xf32>
    %1124 = arith.mulf %1120, %1123 : vector<4x1xf32>
    %1125 = arith.mulf %1122, %1122 : vector<4x1xf32>
    %1126 = arith.subf %1124, %1125 : vector<4x1xf32>
    %cst_290 = arith.constant 9.99999974E-6 : f32
    %1127 = vector.broadcast %cst_290 : f32 to vector<4x1xf32>
    %1128 = arith.addf %1126, %1127 : vector<4x1xf32>
    %1129 = math.rsqrt %1128 : vector<4x1xf32>
    %1130 = arith.mulf %470, %1129 : vector<4x1xf32>
    %1131 = arith.mulf %1122, %1130 : vector<4x1xf32>
    %1132 = arith.subf %471, %1131 : vector<4x1xf32>
    %1133 = tpu.concatenate %1130, %1130 in 0 : vector<4x1xf32>, vector<4x1xf32> -> vector<8x1xf32>
    %1134 = tpu.concatenate %1132, %1132 in 0 : vector<4x1xf32>, vector<4x1xf32> -> vector<8x1xf32>
    %1135 = vector.broadcast %1133 : vector<8x1xf32> to vector<8x256xf32>
    %1136 = arith.mulf %1109, %1135 : vector<8x256xf32>
    %1137 = vector.broadcast %1134 : vector<8x1xf32> to vector<8x256xf32>
    %1138 = arith.addf %1136, %1137 : vector<8x256xf32>
    %1139 = vector.extract_strided_slice %889 {offsets = [0, 0], sizes = [2, 256], strides = [1, 1]} : vector<8x256xf32> to vector<2x256xf32>
    %c0_291 = arith.constant 0 : index
    %c0_292 = arith.constant 0 : index
    %1140 = vector.load %arg4[%c0_291, %c0_292] : memref<16x256xf32, #tpu.memory_space<vmem>>, vector<2x256xf32>
    tpu.vector_store %arg4[%c0_291, %c0_292], %1139 {strides = array<i32>} : memref<16x256xf32, #tpu.memory_space<vmem>>, vector<2x256xf32>,
    %1141 = vector.extract_strided_slice %1138 {offsets = [0, 0], sizes = [2, 256], strides = [1, 1]} : vector<8x256xf32> to vector<2x256xf32>
    %c2 = arith.constant 2 : index
    %c0_293 = arith.constant 0 : index
    %1142 = vector.load %arg4[%c2, %c0_293] : memref<16x256xf32, #tpu.memory_space<vmem>>, vector<2x256xf32>
    tpu.vector_store %arg4[%c2, %c0_293], %1141 {strides = array<i32>} : memref<16x256xf32, #tpu.memory_space<vmem>>, vector<2x256xf32>,
    %1143 = vector.extract_strided_slice %889 {offsets = [2, 0], sizes = [2, 256], strides = [1, 1]} : vector<8x256xf32> to vector<2x256xf32>
    %c4 = arith.constant 4 : index
    %c0_294 = arith.constant 0 : index
    %1144 = vector.load %arg4[%c4, %c0_294] : memref<16x256xf32, #tpu.memory_space<vmem>>, vector<2x256xf32>
    tpu.vector_store %arg4[%c4, %c0_294], %1143 {strides = array<i32>} : memref<16x256xf32, #tpu.memory_space<vmem>>, vector<2x256xf32>,
    %1145 = vector.extract_strided_slice %1138 {offsets = [2, 0], sizes = [2, 256], strides = [1, 1]} : vector<8x256xf32> to vector<2x256xf32>
    %c6 = arith.constant 6 : index
    %c0_295 = arith.constant 0 : index
    %1146 = vector.load %arg4[%c6, %c0_295] : memref<16x256xf32, #tpu.memory_space<vmem>>, vector<2x256xf32>
    tpu.vector_store %arg4[%c6, %c0_295], %1145 {strides = array<i32>} : memref<16x256xf32, #tpu.memory_space<vmem>>, vector<2x256xf32>,
    %1147 = vector.extract_strided_slice %889 {offsets = [4, 0], sizes = [2, 256], strides = [1, 1]} : vector<8x256xf32> to vector<2x256xf32>
    %c8 = arith.constant 8 : index
    %c0_296 = arith.constant 0 : index
    %1148 = vector.load %arg4[%c8, %c0_296] : memref<16x256xf32, #tpu.memory_space<vmem>>, vector<2x256xf32>
    tpu.vector_store %arg4[%c8, %c0_296], %1147 {strides = array<i32>} : memref<16x256xf32, #tpu.memory_space<vmem>>, vector<2x256xf32>,
    %1149 = vector.extract_strided_slice %1138 {offsets = [4, 0], sizes = [2, 256], strides = [1, 1]} : vector<8x256xf32> to vector<2x256xf32>
    %c10 = arith.constant 10 : index
    %c0_297 = arith.constant 0 : index
    %1150 = vector.load %arg4[%c10, %c0_297] : memref<16x256xf32, #tpu.memory_space<vmem>>, vector<2x256xf32>
    tpu.vector_store %arg4[%c10, %c0_297], %1149 {strides = array<i32>} : memref<16x256xf32, #tpu.memory_space<vmem>>, vector<2x256xf32>,
    %1151 = vector.extract_strided_slice %889 {offsets = [6, 0], sizes = [2, 256], strides = [1, 1]} : vector<8x256xf32> to vector<2x256xf32>
    %c12 = arith.constant 12 : index
    %c0_298 = arith.constant 0 : index
    %1152 = vector.load %arg4[%c12, %c0_298] : memref<16x256xf32, #tpu.memory_space<vmem>>, vector<2x256xf32>
    tpu.vector_store %arg4[%c12, %c0_298], %1151 {strides = array<i32>} : memref<16x256xf32, #tpu.memory_space<vmem>>, vector<2x256xf32>,
    %1153 = vector.extract_strided_slice %1138 {offsets = [6, 0], sizes = [2, 256], strides = [1, 1]} : vector<8x256xf32> to vector<2x256xf32>
    %c14 = arith.constant 14 : index
    %c0_299 = arith.constant 0 : index
    %1154 = vector.load %arg4[%c14, %c0_299] : memref<16x256xf32, #tpu.memory_space<vmem>>, vector<2x256xf32>
    tpu.vector_store %arg4[%c14, %c0_299], %1153 {strides = array<i32>} : memref<16x256xf32, #tpu.memory_space<vmem>>, vector<2x256xf32>,
    return
  }
  func.func @transform_0(%arg0: i32) -> (i32, i32) {
    %c0_i32 = arith.constant 0 : i32
    %c0_i32_0 = arith.constant 0 : i32
    %c0_i32_1 = arith.constant 0 : i32
    return %c0_i32, %c0_i32_0 : i32, i32
  }
  func.func @transform_1(%arg0: i32) -> (i32, i32) {
    %c0_i32 = arith.constant 0 : i32
    %c0_i32_0 = arith.constant 0 : i32
    %c0_i32_1 = arith.constant 0 : i32
    return %c0_i32, %c0_i32_0 : i32, i32
  }
  func.func @transform_2(%arg0: i32) -> (i32, i32) {
    %c0_i32 = arith.constant 0 : i32
    %c0_i32_0 = arith.constant 0 : i32
    %c0_i32_1 = arith.constant 0 : i32
    return %c0_i32, %c0_i32_0 : i32, i32
  }
  func.func @transform_3(%arg0: i32) -> (i32, i32) {
    %c0_i32 = arith.constant 0 : i32
    %c0_i32_0 = arith.constant 0 : i32
    %c0_i32_1 = arith.constant 0 : i32
    return %c0_i32, %c0_i32_0 : i32, i32
  }
}

</mosaic_0001>

<llo_original>
// kernel: tpu_custom_call.1
$region0: #{tpu_custom_call.1}
  #allocation0 [shape = 'u32[]', space=smem, size = 0x4, offset = 0x4, fixed_abs, tag = 'smem constant byte address 0x4 - core index']
  #allocation1 [shape = 'u32[144,128]{1,0:T(1,128)}', space=vmem, size = 0x12000, scoped, tag = 'internal scratch']
  %s0 = inlined_call_operand.hbm [shape: f32[8,256], index: 0, kind: input, shape index: {}]
  %s1 = inlined_call_operand.hbm [shape: s32[2,256], index: 1, kind: input, shape index: {}]
  %s2 = inlined_call_operand.hbm [shape: f32[6,33], index: 2, kind: input, shape index: {}]
  %s3 = inlined_call_operand.hbm [shape: f32[16,256], index: 3, kind: output, shape index: {}]
  %s4 = sld [smem:[#allocation0]]
  $region34: #{tpu_custom_call.1} parent=0
    _
  %s6 = ssub.s32 1, %s4
  %s7 = scalar_select 0, %s6, %s4
  $region1: #{tpu_custom_call.1} parent=0
    #allocation2 [shape = 'u8[8192]{0}', space=vmem, size = 0x2000, scoped, tag = 'input window, operand 0, single buffered']
    #allocation3 [shape = 's32[1]{0}', space=sflag, size = 0x4, scoped, tag = 'scoped memory for tpu_custom_call.1']
    #allocation4 [shape = 's32[1]{0}', space=sflag, size = 0x4, scoped, tag = 'scoped memory for tpu_custom_call.1']
    #allocation5 [shape = 'u8[2048]{0}', space=vmem, size = 0x800, scoped, tag = 'input window, operand 1, single buffered']
    #allocation6 [shape = 's32[1]{0}', space=sflag, size = 0x4, scoped, tag = 'scoped memory for tpu_custom_call.1']
    #allocation7 [shape = 'u8[4096]{0}', space=vmem, size = 0x1000, scoped, tag = 'input window, operand 2, single buffered']
    #allocation8 [shape = 'u8[16384]{0}', space=vmem, size = 0x4000, scoped, tag = 'output window, operand 0, single buffered']
    %8 = vsyncpa [#allocation3], 0
    %9 = vsyncpa [#allocation6], 0
    %10 = vsyncpa [#allocation4], 0
    // Predicated region
    $region2: #{tpu_custom_call.1} parent=1 // pred_check
      _
    $region3: #{tpu_custom_call.1} parent=1 // pred_check_branch
      %12 = sbr.rel (0) target = $region5
    $region4: #{tpu_custom_call.1} parent=1 // pred_region
      %s14 = ssub.s32 256, 256
      %15 = vsyncadd [#allocation3], %s14
      %s17 = sshll.u32 [#allocation2], 4
      %s18 = int_to_ptr.vmem [resolvable:$true] %s17
      %20 = dma.hbm_to_vmem [thread:$0]  %s0, 256, %s18, [#allocation3]
    $region5: #{tpu_custom_call.1} parent=1 // pred_fallthru
      _
    // Predicated region
    $region6: #{tpu_custom_call.1} parent=1 // pred_check
      _
    $region7: #{tpu_custom_call.1} parent=1 // pred_check_branch
      %22 = sbr.rel (0) target = $region9
    $region8: #{tpu_custom_call.1} parent=1 // pred_region
      %s24 = ssub.s32 64, 64
      %25 = vsyncadd [#allocation6], %s24
      %s27 = sshll.u32 [#allocation5], 4
      %s28 = int_to_ptr.vmem [resolvable:$true] %s27
      %30 = dma.hbm_to_vmem [thread:$0]  %s1, 64, %s28, [#allocation6]
    $region9: #{tpu_custom_call.1} parent=1 // pred_fallthru
      _
    // Predicated region
    $region10: #{tpu_custom_call.1} parent=1 // pred_check
      _
    $region11: #{tpu_custom_call.1} parent=1 // pred_check_branch
      %32 = sbr.rel (0) target = $region13
    $region12: #{tpu_custom_call.1} parent=1 // pred_region
      %s34 = ssub.s32 128, 128
      %35 = vsyncadd [#allocation6], %s34
      %s37 = sshll.u32 [#allocation7], 4
      %s38 = int_to_ptr.vmem [resolvable:$true] %s37
      %40 = dma.hbm_to_vmem [thread:$0]  %s2, 128, %s38, [#allocation6]
    $region13: #{tpu_custom_call.1} parent=1 // pred_fallthru
      _
    // Predicated region
    $region14: #{tpu_custom_call.1} parent=1 // pred_check
      _
    $region15: #{tpu_custom_call.1} parent=1 // pred_check_branch
      %42 = sbr.rel (0) target = $region17
    $region16: #{tpu_custom_call.1} parent=1 // pred_region
      %43 = dma.done [#allocation3], 256
    $region17: #{tpu_custom_call.1} parent=1 // pred_fallthru
      _
    // Predicated region
    $region18: #{tpu_custom_call.1} parent=1 // pred_check
      _
    $region19: #{tpu_custom_call.1} parent=1 // pred_check_branch
      %45 = sbr.rel (0) target = $region21
    $region20: #{tpu_custom_call.1} parent=1 // pred_region
      %46 = dma.done [#allocation6], 64
    $region21: #{tpu_custom_call.1} parent=1 // pred_fallthru
      _
    // Predicated region
    $region22: #{tpu_custom_call.1} parent=1 // pred_check
      _
    $region23: #{tpu_custom_call.1} parent=1 // pred_check_branch
      %48 = sbr.rel (0) target = $region25
    $region24: #{tpu_custom_call.1} parent=1 // pred_region
      %49 = dma.done [#allocation6], 128
    $region25: #{tpu_custom_call.1} parent=1 // pred_fallthru
      _
    %v50 = vld [vmem:[#allocation5] sm:$0xf]
    %v51 = vadd.s32 %v50, 4294967294
    %vm52 = vcmp.ge.s32.totalorder %v51, 0
    %vm53 = vcmp.lt.s32.totalorder %v51, 16
    %vm54 = vmand %vm52, %vm53
    %v55 = vsel %vm52, 1, 0
    %v56 = vrot.slane %v55, 7
    %v57 = vrot.slane %v56, 2
    %vm58 = vcmp.ne.s32.totalorder %v57, 0
    %vm59 = vmand %vm54, %vm58
    %v60 = vsel %vm53, 1, 0
    %v61 = vrot.slane %v60, 7
    %v62 = vrot.slane %v61, 2
    %vm63 = vcmp.ne.s32.totalorder %v62, 0
    %vm64 = vmand %vm59, %vm63
    %v65 = vadd.s32 %v50, 4294967295
    %vm66 = vcmp.ge.s32.totalorder %v65, 0
    %vm67 = vcmp.lt.s32.totalorder %v65, 16
    %vm68 = vmand %vm66, %vm67
    %vm69 = vmand %vm68, %vm58
    %vm70 = vmand %vm69, %vm63
    %vm71 = vcmp.ge.s32.totalorder %v50, 0
    %vm72 = vcmp.lt.s32.totalorder %v50, 16
    %vm73 = vmand %vm71, %vm72
    %vm74 = vmand %vm73, %vm58
    %vm75 = vmand %vm74, %vm63
    %v76 = vadd.s32 %v50, 1
    %vm77 = vcmp.ge.s32.totalorder %v76, 0
    %vm78 = vcmp.lt.s32.totalorder %v76, 16
    %vm79 = vmand %vm77, %vm78
    %vm80 = vmand %vm79, %vm58
    %vm81 = vmand %vm80, %vm63
    %v82 = vadd.s32 %v50, 2
    %vm83 = vcmp.ge.s32.totalorder %v82, 0
    %vm84 = vcmp.lt.s32.totalorder %v82, 16
    %vm85 = vmand %vm83, %vm84
    %vm86 = vmand %vm85, %vm58
    %vm87 = vmand %vm86, %vm63
    %v88 = vsel %vm66, 1, 0
    %v89 = vrot.slane %v88, 7
    %v90 = vrot.slane %v89, 2
    %vm91 = vcmp.ne.s32.totalorder %v90, 0
    %vm92 = vmand %vm54, %vm91
    %v93 = vsel %vm67, 1, 0
    %v94 = vrot.slane %v93, 7
    %v95 = vrot.slane %v94, 2
    %vm96 = vcmp.ne.s32.totalorder %v95, 0
    %vm97 = vmand %vm92, %vm96
    %vm98 = vmand %vm68, %vm91
    %vm99 = vmand %vm98, %vm96
    %vm100 = vmand %vm73, %vm91
    %vm101 = vmand %vm100, %vm96
    %vm102 = vmand %vm79, %vm91
    %vm103 = vmand %vm102, %vm96
    %vm104 = vmand %vm85, %vm91
    %vm105 = vmand %vm104, %vm96
    %v106 = vsel %vm71, 1, 0
    %v107 = vrot.slane %v106, 7
    %v108 = vrot.slane %v107, 2
    %vm109 = vcmp.ne.s32.totalorder %v108, 0
    %vm110 = vmand %vm54, %vm109
    %v111 = vsel %vm72, 1, 0
    %v112 = vrot.slane %v111, 7
    %v113 = vrot.slane %v112, 2
    %vm114 = vcmp.ne.s32.totalorder %v113, 0
    %vm115 = vmand %vm110, %vm114
    %vm116 = vmand %vm68, %vm109
    %vm117 = vmand %vm116, %vm114
    %vm118 = vmand %vm79, %vm109
    %vm119 = vmand %vm118, %vm114
    %vm120 = vmand %vm85, %vm109
    %vm121 = vmand %vm120, %vm114
    %v122 = vsel %vm77, 1, 0
    %v123 = vrot.slane %v122, 7
    %v124 = vrot.slane %v123, 2
    %vm125 = vcmp.ne.s32.totalorder %v124, 0
    %vm126 = vmand %vm54, %vm125
    %v127 = vsel %vm78, 1, 0
    %v128 = vrot.slane %v127, 7
    %v129 = vrot.slane %v128, 2
    %vm130 = vcmp.ne.s32.totalorder %v129, 0
    %vm131 = vmand %vm126, %vm130
    %vm132 = vmand %vm68, %vm125
    %vm133 = vmand %vm132, %vm130
    %vm134 = vmand %vm73, %vm125
    %vm135 = vmand %vm134, %vm130
    %vm136 = vmand %vm79, %vm125
    %vm137 = vmand %vm136, %vm130
    %vm138 = vmand %vm85, %vm125
    %vm139 = vmand %vm138, %vm130
    %v140 = vsel %vm83, 1, 0
    %v141 = vrot.slane %v140, 7
    %v142 = vrot.slane %v141, 2
    %vm143 = vcmp.ne.s32.totalorder %v142, 0
    %vm144 = vmand %vm54, %vm143
    %v145 = vsel %vm84, 1, 0
    %v146 = vrot.slane %v145, 7
    %v147 = vrot.slane %v146, 2
    %vm148 = vcmp.ne.s32.totalorder %v147, 0
    %vm149 = vmand %vm144, %vm148
    %vm150 = vmand %vm68, %vm143
    %vm151 = vmand %vm150, %vm148
    %vm152 = vmand %vm73, %vm143
    %vm153 = vmand %vm152, %vm148
    %vm154 = vmand %vm79, %vm143
    %vm155 = vmand %vm154, %vm148
    %vm156 = vmand %vm85, %vm143
    %vm157 = vmand %vm156, %vm148
    %v158 = vld [vmem:[#allocation7] sm:$0x3f]
    %v159 = vld [vmem:[#allocation2] sm:$0xff]
    %v160 = vld [vmem:[#allocation2 + $0x8] sm:$0xff]
    %162 = vset.pattern.permute.xlu0 0
    %163 = vperm.xlu0 %162, %v158
    %v164 = vpop.permute.xlu0 %163
    %v166 = vlaneseq
    %v167 = vshrl.u32 %v166, 7
    %v168 = vsub.s32 0, %v167
    %v169 = vrot.slane %v159, %v168
    %v170 = vlaneseq
    %v171 = vshrl.u32 %v170, 7
    %v172 = vsub.s32 0, %v171
    %v173 = vrot.slane %v160, %v172
    %v174 = vmul.f32 %v164, %v169
    %v175 = vmul.f32 %v164, %v173
    %176 = vset.pattern.permute.xlu0 1
    %177 = vperm.xlu0 %176, %v158
    %v178 = vpop.permute.xlu0 %177
    %v180 = vlaneseq
    %v181 = vshrl.u32 %v180, 7
    %v182 = vsub.s32 1, %v181
    %v183 = vrot.slane %v159, %v182
    %v184 = vlaneseq
    %v185 = vshrl.u32 %v184, 7
    %v186 = vsub.s32 1, %v185
    %v187 = vrot.slane %v160, %v186
    %v188 = vmul.f32 %v178, %v183
    %v189 = vmul.f32 %v178, %v187
    %v190 = vadd.f32 %v174, %v188
    %v191 = vadd.f32 %v175, %v189
    %192 = vset.pattern.permute.xlu0 2
    %193 = vperm.xlu0 %192, %v158
    %v194 = vpop.permute.xlu0 %193
    %v196 = vlaneseq
    %v197 = vshrl.u32 %v196, 7
    %v198 = vsub.s32 2, %v197
    %v199 = vrot.slane %v159, %v198
    %v200 = vlaneseq
    %v201 = vshrl.u32 %v200, 7
    %v202 = vsub.s32 2, %v201
    %v203 = vrot.slane %v160, %v202
    %v204 = vmul.f32 %v194, %v199
    %v205 = vmul.f32 %v194, %v203
    %v206 = vadd.f32 %v190, %v204
    %v207 = vadd.f32 %v191, %v205
    %208 = vset.pattern.permute.xlu0 3
    %209 = vperm.xlu0 %208, %v158
    %v210 = vpop.permute.xlu0 %209
    %v212 = vlaneseq
    %v213 = vshrl.u32 %v212, 7
    %v214 = vsub.s32 3, %v213
    %v215 = vrot.slane %v159, %v214
    %v216 = vlaneseq
    %v217 = vshrl.u32 %v216, 7
    %v218 = vsub.s32 3, %v217
    %v219 = vrot.slane %v160, %v218
    %v220 = vmul.f32 %v210, %v215
    %v221 = vmul.f32 %v210, %v219
    %v222 = vadd.f32 %v206, %v220
    %v223 = vadd.f32 %v207, %v221
    %v224 = vlaneseq
    %v225 = vshrl.u32 %v224, 7
    %v226 = vsub.s32 4, %v225
    %v227 = vrot.slane %v159, %v226
    %v228 = vlaneseq
    %v229 = vshrl.u32 %v228, 7
    %v230 = vsub.s32 4, %v229
    %v231 = vrot.slane %v160, %v230
    %v232 = vmul.f32 %v164, %v227
    %v233 = vmul.f32 %v164, %v231
    %v234 = vlaneseq
    %v235 = vshrl.u32 %v234, 7
    %v236 = vsub.s32 5, %v235
    %v237 = vrot.slane %v159, %v236
    %v238 = vlaneseq
    %v239 = vshrl.u32 %v238, 7
    %v240 = vsub.s32 5, %v239
    %v241 = vrot.slane %v160, %v240
    %v242 = vmul.f32 %v178, %v237
    %v243 = vmul.f32 %v178, %v241
    %v244 = vadd.f32 %v232, %v242
    %v245 = vadd.f32 %v233, %v243
    %v246 = vlaneseq
    %v247 = vshrl.u32 %v246, 7
    %v248 = vsub.s32 6, %v247
    %v249 = vrot.slane %v159, %v248
    %v250 = vlaneseq
    %v251 = vshrl.u32 %v250, 7
    %v252 = vsub.s32 6, %v251
    %v253 = vrot.slane %v160, %v252
    %v254 = vmul.f32 %v194, %v249
    %v255 = vmul.f32 %v194, %v253
    %v256 = vadd.f32 %v244, %v254
    %v257 = vadd.f32 %v245, %v255
    %v258 = vlaneseq
    %v259 = vshrl.u32 %v258, 7
    %v260 = vsub.s32 7, %v259
    %v261 = vrot.slane %v159, %v260
    %v262 = vlaneseq
    %v263 = vshrl.u32 %v262, 7
    %v264 = vsub.s32 7, %v263
    %v265 = vrot.slane %v160, %v264
    %v266 = vmul.f32 %v210, %v261
    %v267 = vmul.f32 %v210, %v265
    %v268 = vadd.f32 %v256, %v266
    %v269 = vadd.f32 %v257, %v267
    %v272 = vrot.slane %v268, 6
    %v273 = vrot.slane %v269, 6
    %vm276 = vcmask 1041408
    %v277 = vsel %vm276, %v222, %v272
    %v278 = vsel %vm276, %v223, %v273
    %vm279 = vcmask 1043456
    %v280 = vsel %vm279, %v277, 0.0
    %v281 = vsel %vm279, %v278, 0.0
    %v282 = vadd.f32 %v280, %v281
    %283 = vadd.xlane.f32.xlu0 %v282
    %v284 = vpop.xlane.xlu0 %283
    %v285 = vmul.f32 %v277, %v277
    %v286 = vmul.f32 %v278, %v278
    %v287 = vsel %vm279, %v285, 0.0
    %v288 = vsel %vm279, %v286, 0.0
    %v289 = vadd.f32 %v287, %v288
    %290 = vadd.xlane.f32.xlu0 %v289
    %v291 = vpop.xlane.xlu0 %290
    %v293 = vrot.slane %v284, 2
    %v295 = vadd.f32 %v284, %v293
    %v297 = vrot.slane %v291, 2
    %v299 = vadd.f32 %v291, %v297
    %v300 = vmul.f32 %v295, 0.001953125
    %v301 = vmul.f32 %v299, 0.001953125
    %v302 = vmul.f32 %v300, %v300
    %v303 = vsub.f32 %v301, %v302
    %v304 = vadd.f32 %v303, 1e-05
    %v305 = vrsqrt.pop %v304
    %307 = vrot.lane.b32.xlu0 %v305, 29
    %v308 = vpop.permute.xlu0 %307
    %v310 = vmul.f32 %v158, %v308
    %312 = vrot.lane.b32.xlu0 %v310, 99
    %v313 = vpop.permute.xlu0 %312
    %v315 = vmul.f32 %v300, %v313
    %317 = vrot.lane.b32.xlu0 %v315, 30
    %v318 = vpop.permute.xlu0 %317
    %v320 = vsub.f32 %v158, %v318
    %v321 = vrot.slane %v310, 6
    %v323 = vsel %vm276, %v310, %v321
    %v325 = vrot.slane %v320, 6
    %v327 = vsel %vm276, %v320, %v325
    %329 = vset.pattern.permute.xlu0 29
    %330 = vperm.xlu0 %329, %v323
    %v331 = vpop.permute.xlu0 %330
    %v333 = vmul.f32 %v277, %v331
    %v334 = vmul.f32 %v278, %v331
    %336 = vset.pattern.permute.xlu0 30
    %337 = vperm.xlu0 %336, %v327
    %v338 = vpop.permute.xlu0 %337
    %v340 = vadd.f32 %v333, %v338
    %v341 = vadd.f32 %v334, %v338
    %v342 = vmul.f32 %v340, 0.5
    %v343 = vmul.f32 %v341, 0.5
    %v344 = vtanh.pop %v342
    %v345 = vtanh.pop %v343
    %v346 = vmul.f32 %v344, 0.5
    %v347 = vmul.f32 %v345, 0.5
    %v348 = vadd.f32 %v346, 0.5
    %v349 = vadd.f32 %v347, 0.5
    %v350 = vmul.f32 %v340, %v348
    %v351 = vmul.f32 %v341, %v349
    %v352 = vrot.slane %v158, 6
    %v354 = vsel %vm276, %v158, %v352
    %355 = vrot.lane.b32.xlu0 %v350, 34
    %v356 = vpop.permute.xlu0 %355
    %357 = vrot.lane.b32.xlu0 %v351, 34
    %v358 = vpop.permute.xlu0 %357
    %v359 = vlaneseq
    %v360 = vand.u32 %v359, 127
    %vm361 = vcmp.lt.s32.totalorder %v360, 34
    %v362 = vsel %vm361, %v356, %v358
    %v363 = vsel %vm361, %v358, %v356
    %v364 = vsel %vm64, 1, 0
    %v365 = vlaneseq
    %v366 = vshrl.u32 %v365, 7
    %v367 = vsub.s32 0, %v366
    %v368 = vrot.slane %v364, %v367
    %v369 = vlaneseq
    %v370 = vshrl.u32 %v369, 7
    %v371 = vsub.s32 2, %v370
    %v372 = vrot.slane %v364, %v371
    %v373 = vlaneseq
    %v374 = vshrl.u32 %v373, 7
    %v375 = vsub.s32 0, %v374
    %v376 = vrot.slane %v368, %v375
    %v377 = vlaneseq
    %v378 = vshrl.u32 %v377, 7
    %v379 = vsub.s32 0, %v378
    %v380 = vrot.slane %v372, %v379
    %vm381 = vcmp.eq.s32.totalorder %v376, 1
    %vm382 = vcmp.eq.s32.totalorder %v380, 1
    %v383 = vsel %vm381, %v363, 0.0
    %v384 = vsel %vm382, %v362, 0.0
    %386 = vset.pattern.permute.xlu0 4
    %387 = vperm.xlu0 %386, %v354
    %v388 = vpop.permute.xlu0 %387
    %v390 = vmul.f32 %v383, %v388
    %v391 = vmul.f32 %v384, %v388
    %392 = vrot.lane.b32.xlu0 %v350, 33
    %v393 = vpop.permute.xlu0 %392
    %394 = vrot.lane.b32.xlu0 %v351, 33
    %v395 = vpop.permute.xlu0 %394
    %vm396 = vcmp.lt.s32.totalorder %v360, 33
    %v397 = vsel %vm396, %v393, %v395
    %v398 = vsel %vm396, %v395, %v393
    %v399 = vsel %vm70, 1, 0
    %v400 = vlaneseq
    %v401 = vshrl.u32 %v400, 7
    %v402 = vsub.s32 0, %v401
    %v403 = vrot.slane %v399, %v402
    %v404 = vlaneseq
    %v405 = vshrl.u32 %v404, 7
    %v406 = vsub.s32 2, %v405
    %v407 = vrot.slane %v399, %v406
    %v408 = vlaneseq
    %v409 = vshrl.u32 %v408, 7
    %v410 = vsub.s32 0, %v409
    %v411 = vrot.slane %v403, %v410
    %v412 = vlaneseq
    %v413 = vshrl.u32 %v412, 7
    %v414 = vsub.s32 0, %v413
    %v415 = vrot.slane %v407, %v414
    %vm416 = vcmp.eq.s32.totalorder %v411, 1
    %vm417 = vcmp.eq.s32.totalorder %v415, 1
    %v418 = vsel %vm416, %v398, 0.0
    %v419 = vsel %vm417, %v397, 0.0
    %420 = vset.pattern.permute.xlu0 5
    %421 = vperm.xlu0 %420, %v354
    %v422 = vpop.permute.xlu0 %421
    %v424 = vmul.f32 %v418, %v422
    %v425 = vmul.f32 %v419, %v422
    %v426 = vadd.f32 %v390, %v424
    %v427 = vadd.f32 %v391, %v425
    %428 = vrot.lane.b32.xlu0 %v350, 32
    %v429 = vpop.permute.xlu0 %428
    %430 = vrot.lane.b32.xlu0 %v351, 32
    %v431 = vpop.permute.xlu0 %430
    %vm432 = vcmp.lt.s32.totalorder %v360, 32
    %v433 = vsel %vm432, %v429, %v431
    %v434 = vsel %vm432, %v431, %v429
    %v435 = vsel %vm75, 1, 0
    %v436 = vlaneseq
    %v437 = vshrl.u32 %v436, 7
    %v438 = vsub.s32 0, %v437
    %v439 = vrot.slane %v435, %v438
    %v440 = vlaneseq
    %v441 = vshrl.u32 %v440, 7
    %v442 = vsub.s32 2, %v441
    %v443 = vrot.slane %v435, %v442
    %v444 = vlaneseq
    %v445 = vshrl.u32 %v444, 7
    %v446 = vsub.s32 0, %v445
    %v447 = vrot.slane %v439, %v446
    %v448 = vlaneseq
    %v449 = vshrl.u32 %v448, 7
    %v450 = vsub.s32 0, %v449
    %v451 = vrot.slane %v443, %v450
    %vm452 = vcmp.eq.s32.totalorder %v447, 1
    %vm453 = vcmp.eq.s32.totalorder %v451, 1
    %v454 = vsel %vm452, %v434, 0.0
    %v455 = vsel %vm453, %v433, 0.0
    %456 = vset.pattern.permute.xlu0 6
    %457 = vperm.xlu0 %456, %v354
    %v458 = vpop.permute.xlu0 %457
    %v460 = vmul.f32 %v454, %v458
    %v461 = vmul.f32 %v455, %v458
    %v462 = vadd.f32 %v426, %v460
    %v463 = vadd.f32 %v427, %v461
    %464 = vrot.lane.b32.xlu0 %v350, 31
    %v465 = vpop.permute.xlu0 %464
    %466 = vrot.lane.b32.xlu0 %v351, 31
    %v467 = vpop.permute.xlu0 %466
    %vm468 = vcmp.lt.s32.totalorder %v360, 31
    %v469 = vsel %vm468, %v465, %v467
    %v470 = vsel %vm468, %v467, %v465
    %v471 = vsel %vm81, 1, 0
    %v472 = vlaneseq
    %v473 = vshrl.u32 %v472, 7
    %v474 = vsub.s32 0, %v473
    %v475 = vrot.slane %v471, %v474
    %v476 = vlaneseq
    %v477 = vshrl.u32 %v476, 7
    %v478 = vsub.s32 2, %v477
    %v479 = vrot.slane %v471, %v478
    %v480 = vlaneseq
    %v481 = vshrl.u32 %v480, 7
    %v482 = vsub.s32 0, %v481
    %v483 = vrot.slane %v475, %v482
    %v484 = vlaneseq
    %v485 = vshrl.u32 %v484, 7
    %v486 = vsub.s32 0, %v485
    %v487 = vrot.slane %v479, %v486
    %vm488 = vcmp.eq.s32.totalorder %v483, 1
    %vm489 = vcmp.eq.s32.totalorder %v487, 1
    %v490 = vsel %vm488, %v470, 0.0
    %v491 = vsel %vm489, %v469, 0.0
    %492 = vset.pattern.permute.xlu0 7
    %493 = vperm.xlu0 %492, %v354
    %v494 = vpop.permute.xlu0 %493
    %v496 = vmul.f32 %v490, %v494
    %v497 = vmul.f32 %v491, %v494
    %v498 = vadd.f32 %v462, %v496
    %v499 = vadd.f32 %v463, %v497
    %500 = vrot.lane.b32.xlu0 %v350, 30
    %v501 = vpop.permute.xlu0 %500
    %502 = vrot.lane.b32.xlu0 %v351, 30
    %v503 = vpop.permute.xlu0 %502
    %vm504 = vcmp.lt.s32.totalorder %v360, 30
    %v505 = vsel %vm504, %v501, %v503
    %v506 = vsel %vm504, %v503, %v501
    %v507 = vsel %vm87, 1, 0
    %v508 = vlaneseq
    %v509 = vshrl.u32 %v508, 7
    %v510 = vsub.s32 0, %v509
    %v511 = vrot.slane %v507, %v510
    %v512 = vlaneseq
    %v513 = vshrl.u32 %v512, 7
    %v514 = vsub.s32 2, %v513
    %v515 = vrot.slane %v507, %v514
    %v516 = vlaneseq
    %v517 = vshrl.u32 %v516, 7
    %v518 = vsub.s32 0, %v517
    %v519 = vrot.slane %v511, %v518
    %v520 = vlaneseq
    %v521 = vshrl.u32 %v520, 7
    %v522 = vsub.s32 0, %v521
    %v523 = vrot.slane %v515, %v522
    %vm524 = vcmp.eq.s32.totalorder %v519, 1
    %vm525 = vcmp.eq.s32.totalorder %v523, 1
    %v526 = vsel %vm524, %v506, 0.0
    %v527 = vsel %vm525, %v505, 0.0
    %528 = vset.pattern.permute.xlu0 8
    %529 = vperm.xlu0 %528, %v354
    %v530 = vpop.permute.xlu0 %529
    %v532 = vmul.f32 %v526, %v530
    %v533 = vmul.f32 %v527, %v530
    %v534 = vadd.f32 %v498, %v532
    %v535 = vadd.f32 %v499, %v533
    %536 = vrot.lane.b32.xlu0 %v350, 18
    %v537 = vpop.permute.xlu0 %536
    %538 = vrot.lane.b32.xlu0 %v351, 18
    %v539 = vpop.permute.xlu0 %538
    %vm540 = vcmp.lt.s32.totalorder %v360, 18
    %v541 = vsel %vm540, %v537, %v539
    %v542 = vsel %vm540, %v539, %v537
    %v543 = vsel %vm97, 1, 0
    %v544 = vlaneseq
    %v545 = vshrl.u32 %v544, 7
    %v546 = vsub.s32 0, %v545
    %v547 = vrot.slane %v543, %v546
    %v548 = vlaneseq
    %v549 = vshrl.u32 %v548, 7
    %v550 = vsub.s32 2, %v549
    %v551 = vrot.slane %v543, %v550
    %v552 = vlaneseq
    %v553 = vshrl.u32 %v552, 7
    %v554 = vsub.s32 0, %v553
    %v555 = vrot.slane %v547, %v554
    %v556 = vlaneseq
    %v557 = vshrl.u32 %v556, 7
    %v558 = vsub.s32 0, %v557
    %v559 = vrot.slane %v551, %v558
    %vm560 = vcmp.eq.s32.totalorder %v555, 1
    %vm561 = vcmp.eq.s32.totalorder %v559, 1
    %v562 = vsel %vm560, %v542, 0.0
    %v563 = vsel %vm561, %v541, 0.0
    %564 = vset.pattern.permute.xlu0 9
    %565 = vperm.xlu0 %564, %v354
    %v566 = vpop.permute.xlu0 %565
    %v568 = vmul.f32 %v562, %v566
    %v569 = vmul.f32 %v563, %v566
    %570 = vrot.lane.b32.xlu0 %v350, 17
    %v571 = vpop.permute.xlu0 %570
    %572 = vrot.lane.b32.xlu0 %v351, 17
    %v573 = vpop.permute.xlu0 %572
    %vm574 = vcmp.lt.s32.totalorder %v360, 17
    %v575 = vsel %vm574, %v571, %v573
    %v576 = vsel %vm574, %v573, %v571
    %v577 = vsel %vm99, 1, 0
    %v578 = vlaneseq
    %v579 = vshrl.u32 %v578, 7
    %v580 = vsub.s32 0, %v579
    %v581 = vrot.slane %v577, %v580
    %v582 = vlaneseq
    %v583 = vshrl.u32 %v582, 7
    %v584 = vsub.s32 2, %v583
    %v585 = vrot.slane %v577, %v584
    %v586 = vlaneseq
    %v587 = vshrl.u32 %v586, 7
    %v588 = vsub.s32 0, %v587
    %v589 = vrot.slane %v581, %v588
    %v590 = vlaneseq
    %v591 = vshrl.u32 %v590, 7
    %v592 = vsub.s32 0, %v591
    %v593 = vrot.slane %v585, %v592
    %vm594 = vcmp.eq.s32.totalorder %v589, 1
    %vm595 = vcmp.eq.s32.totalorder %v593, 1
    %v596 = vsel %vm594, %v576, 0.0
    %v597 = vsel %vm595, %v575, 0.0
    %598 = vset.pattern.permute.xlu0 10
    %599 = vperm.xlu0 %598, %v354
    %v600 = vpop.permute.xlu0 %599
    %v602 = vmul.f32 %v596, %v600
    %v603 = vmul.f32 %v597, %v600
    %v604 = vadd.f32 %v568, %v602
    %v605 = vadd.f32 %v569, %v603
    %606 = vrot.lane.b32.xlu0 %v350, 16
    %v607 = vpop.permute.xlu0 %606
    %608 = vrot.lane.b32.xlu0 %v351, 16
    %v609 = vpop.permute.xlu0 %608
    %vm610 = vcmp.lt.s32.totalorder %v360, 16
    %v611 = vsel %vm610, %v607, %v609
    %v612 = vsel %vm610, %v609, %v607
    %v613 = vsel %vm101, 1, 0
    %v614 = vlaneseq
    %v615 = vshrl.u32 %v614, 7
    %v616 = vsub.s32 0, %v615
    %v617 = vrot.slane %v613, %v616
    %v618 = vlaneseq
    %v619 = vshrl.u32 %v618, 7
    %v620 = vsub.s32 2, %v619
    %v621 = vrot.slane %v613, %v620
    %v622 = vlaneseq
    %v623 = vshrl.u32 %v622, 7
    %v624 = vsub.s32 0, %v623
    %v625 = vrot.slane %v617, %v624
    %v626 = vlaneseq
    %v627 = vshrl.u32 %v626, 7
    %v628 = vsub.s32 0, %v627
    %v629 = vrot.slane %v621, %v628
    %vm630 = vcmp.eq.s32.totalorder %v625, 1
    %vm631 = vcmp.eq.s32.totalorder %v629, 1
    %v632 = vsel %vm630, %v612, 0.0
    %v633 = vsel %vm631, %v611, 0.0
    %634 = vset.pattern.permute.xlu0 11
    %635 = vperm.xlu0 %634, %v354
    %v636 = vpop.permute.xlu0 %635
    %v638 = vmul.f32 %v632, %v636
    %v639 = vmul.f32 %v633, %v636
    %v640 = vadd.f32 %v604, %v638
    %v641 = vadd.f32 %v605, %v639
    %642 = vrot.lane.b32.xlu0 %v350, 15
    %v643 = vpop.permute.xlu0 %642
    %644 = vrot.lane.b32.xlu0 %v351, 15
    %v645 = vpop.permute.xlu0 %644
    %vm646 = vcmp.lt.s32.totalorder %v360, 15
    %v647 = vsel %vm646, %v643, %v645
    %v648 = vsel %vm646, %v645, %v643
    %v649 = vsel %vm103, 1, 0
    %v650 = vlaneseq
    %v651 = vshrl.u32 %v650, 7
    %v652 = vsub.s32 0, %v651
    %v653 = vrot.slane %v649, %v652
    %v654 = vlaneseq
    %v655 = vshrl.u32 %v654, 7
    %v656 = vsub.s32 2, %v655
    %v657 = vrot.slane %v649, %v656
    %v658 = vlaneseq
    %v659 = vshrl.u32 %v658, 7
    %v660 = vsub.s32 0, %v659
    %v661 = vrot.slane %v653, %v660
    %v662 = vlaneseq
    %v663 = vshrl.u32 %v662, 7
    %v664 = vsub.s32 0, %v663
    %v665 = vrot.slane %v657, %v664
    %vm666 = vcmp.eq.s32.totalorder %v661, 1
    %vm667 = vcmp.eq.s32.totalorder %v665, 1
    %v668 = vsel %vm666, %v648, 0.0
    %v669 = vsel %vm667, %v647, 0.0
    %670 = vset.pattern.permute.xlu0 12
    %671 = vperm.xlu0 %670, %v354
    %v672 = vpop.permute.xlu0 %671
    %v674 = vmul.f32 %v668, %v672
    %v675 = vmul.f32 %v669, %v672
    %v676 = vadd.f32 %v640, %v674
    %v677 = vadd.f32 %v641, %v675
    %678 = vrot.lane.b32.xlu0 %v350, 14
    %v679 = vpop.permute.xlu0 %678
    %680 = vrot.lane.b32.xlu0 %v351, 14
    %v681 = vpop.permute.xlu0 %680
    %vm682 = vcmp.lt.s32.totalorder %v360, 14
    %v683 = vsel %vm682, %v679, %v681
    %v684 = vsel %vm682, %v681, %v679
    %v685 = vsel %vm105, 1, 0
    %v686 = vlaneseq
    %v687 = vshrl.u32 %v686, 7
    %v688 = vsub.s32 0, %v687
    %v689 = vrot.slane %v685, %v688
    %v690 = vlaneseq
    %v691 = vshrl.u32 %v690, 7
    %v692 = vsub.s32 2, %v691
    %v693 = vrot.slane %v685, %v692
    %v694 = vlaneseq
    %v695 = vshrl.u32 %v694, 7
    %v696 = vsub.s32 0, %v695
    %v697 = vrot.slane %v689, %v696
    %v698 = vlaneseq
    %v699 = vshrl.u32 %v698, 7
    %v700 = vsub.s32 0, %v699
    %v701 = vrot.slane %v693, %v700
    %vm702 = vcmp.eq.s32.totalorder %v697, 1
    %vm703 = vcmp.eq.s32.totalorder %v701, 1
    %v704 = vsel %vm702, %v684, 0.0
    %v705 = vsel %vm703, %v683, 0.0
    %706 = vset.pattern.permute.xlu0 13
    %707 = vperm.xlu0 %706, %v354
    %v708 = vpop.permute.xlu0 %707
    %v710 = vmul.f32 %v704, %v708
    %v711 = vmul.f32 %v705, %v708
    %v712 = vadd.f32 %v676, %v710
    %v713 = vadd.f32 %v677, %v711
    %714 = vrot.lane.b32.xlu0 %v350, 2
    %v715 = vpop.permute.xlu0 %714
    %716 = vrot.lane.b32.xlu0 %v351, 2
    %v717 = vpop.permute.xlu0 %716
    %vm718 = vcmp.lt.s32.totalorder %v360, 2
    %v719 = vsel %vm718, %v715, %v717
    %v720 = vsel %vm718, %v717, %v715
    %v721 = vsel %vm115, 1, 0
    %v722 = vlaneseq
    %v723 = vshrl.u32 %v722, 7
    %v724 = vsub.s32 0, %v723
    %v725 = vrot.slane %v721, %v724
    %v726 = vlaneseq
    %v727 = vshrl.u32 %v726, 7
    %v728 = vsub.s32 2, %v727
    %v729 = vrot.slane %v721, %v728
    %v730 = vlaneseq
    %v731 = vshrl.u32 %v730, 7
    %v732 = vsub.s32 0, %v731
    %v733 = vrot.slane %v725, %v732
    %v734 = vlaneseq
    %v735 = vshrl.u32 %v734, 7
    %v736 = vsub.s32 0, %v735
    %v737 = vrot.slane %v729, %v736
    %vm738 = vcmp.eq.s32.totalorder %v733, 1
    %vm739 = vcmp.eq.s32.totalorder %v737, 1
    %v740 = vsel %vm738, %v720, 0.0
    %v741 = vsel %vm739, %v719, 0.0
    %742 = vset.pattern.permute.xlu0 14
    %743 = vperm.xlu0 %742, %v354
    %v744 = vpop.permute.xlu0 %743
    %v746 = vmul.f32 %v740, %v744
    %v747 = vmul.f32 %v741, %v744
    %748 = vrot.lane.b32.xlu0 %v350, 1
    %v749 = vpop.permute.xlu0 %748
    %750 = vrot.lane.b32.xlu0 %v351, 1
    %v751 = vpop.permute.xlu0 %750
    %vm752 = vcmp.lt.s32.totalorder %v360, 1
    %v753 = vsel %vm752, %v749, %v751
    %v754 = vsel %vm752, %v751, %v749
    %v755 = vsel %vm117, 1, 0
    %v756 = vlaneseq
    %v757 = vshrl.u32 %v756, 7
    %v758 = vsub.s32 0, %v757
    %v759 = vrot.slane %v755, %v758
    %v760 = vlaneseq
    %v761 = vshrl.u32 %v760, 7
    %v762 = vsub.s32 2, %v761
    %v763 = vrot.slane %v755, %v762
    %v764 = vlaneseq
    %v765 = vshrl.u32 %v764, 7
    %v766 = vsub.s32 0, %v765
    %v767 = vrot.slane %v759, %v766
    %v768 = vlaneseq
    %v769 = vshrl.u32 %v768, 7
    %v770 = vsub.s32 0, %v769
    %v771 = vrot.slane %v763, %v770
    %vm772 = vcmp.eq.s32.totalorder %v767, 1
    %vm773 = vcmp.eq.s32.totalorder %v771, 1
    %v774 = vsel %vm772, %v754, 0.0
    %v775 = vsel %vm773, %v753, 0.0
    %776 = vset.pattern.permute.xlu0 15
    %777 = vperm.xlu0 %776, %v354
    %v778 = vpop.permute.xlu0 %777
    %v780 = vmul.f32 %v774, %v778
    %v781 = vmul.f32 %v775, %v778
    %v782 = vadd.f32 %v746, %v780
    %v783 = vadd.f32 %v747, %v781
    %784 = vset.pattern.permute.xlu0 16
    %785 = vperm.xlu0 %784, %v354
    %v786 = vpop.permute.xlu0 %785
    %v788 = vmul.f32 %v350, %v786
    %v789 = vmul.f32 %v351, %v786
    %v790 = vadd.f32 %v782, %v788
    %v791 = vadd.f32 %v783, %v789
    %792 = vrot.lane.b32.xlu0 %v350, 127
    %v793 = vpop.permute.xlu0 %792
    %794 = vrot.lane.b32.xlu0 %v351, 127
    %v795 = vpop.permute.xlu0 %794
    %vm796 = vcmp.lt.s32.totalorder %v360, 127
    %v797 = vsel %vm796, %v793, %v795
    %v798 = vsel %vm796, %v795, %v793
    %v799 = vsel %vm119, 1, 0
    %v800 = vlaneseq
    %v801 = vshrl.u32 %v800, 7
    %v802 = vsub.s32 0, %v801
    %v803 = vrot.slane %v799, %v802
    %v804 = vlaneseq
    %v805 = vshrl.u32 %v804, 7
    %v806 = vsub.s32 2, %v805
    %v807 = vrot.slane %v799, %v806
    %v808 = vlaneseq
    %v809 = vshrl.u32 %v808, 7
    %v810 = vsub.s32 0, %v809
    %v811 = vrot.slane %v803, %v810
    %v812 = vlaneseq
    %v813 = vshrl.u32 %v812, 7
    %v814 = vsub.s32 0, %v813
    %v815 = vrot.slane %v807, %v814
    %vm816 = vcmp.eq.s32.totalorder %v811, 1
    %vm817 = vcmp.eq.s32.totalorder %v815, 1
    %v818 = vsel %vm816, %v797, 0.0
    %v819 = vsel %vm817, %v798, 0.0
    %820 = vset.pattern.permute.xlu0 17
    %821 = vperm.xlu0 %820, %v354
    %v822 = vpop.permute.xlu0 %821
    %v824 = vmul.f32 %v818, %v822
    %v825 = vmul.f32 %v819, %v822
    %v826 = vadd.f32 %v790, %v824
    %v827 = vadd.f32 %v791, %v825
    %828 = vrot.lane.b32.xlu0 %v350, 126
    %v829 = vpop.permute.xlu0 %828
    %830 = vrot.lane.b32.xlu0 %v351, 126
    %v831 = vpop.permute.xlu0 %830
    %vm832 = vcmp.lt.s32.totalorder %v360, 126
    %v833 = vsel %vm832, %v829, %v831
    %v834 = vsel %vm832, %v831, %v829
    %v835 = vsel %vm121, 1, 0
    %v836 = vlaneseq
    %v837 = vshrl.u32 %v836, 7
    %v838 = vsub.s32 0, %v837
    %v839 = vrot.slane %v835, %v838
    %v840 = vlaneseq
    %v841 = vshrl.u32 %v840, 7
    %v842 = vsub.s32 2, %v841
    %v843 = vrot.slane %v835, %v842
    %v844 = vlaneseq
    %v845 = vshrl.u32 %v844, 7
    %v846 = vsub.s32 0, %v845
    %v847 = vrot.slane %v839, %v846
    %v848 = vlaneseq
    %v849 = vshrl.u32 %v848, 7
    %v850 = vsub.s32 0, %v849
    %v851 = vrot.slane %v843, %v850
    %vm852 = vcmp.eq.s32.totalorder %v847, 1
    %vm853 = vcmp.eq.s32.totalorder %v851, 1
    %v854 = vsel %vm852, %v833, 0.0
    %v855 = vsel %vm853, %v834, 0.0
    %856 = vset.pattern.permute.xlu0 18
    %857 = vperm.xlu0 %856, %v354
    %v858 = vpop.permute.xlu0 %857
    %v860 = vmul.f32 %v854, %v858
    %v861 = vmul.f32 %v855, %v858
    %v862 = vadd.f32 %v826, %v860
    %v863 = vadd.f32 %v827, %v861
    %864 = vrot.lane.b32.xlu0 %v350, 114
    %v865 = vpop.permute.xlu0 %864
    %866 = vrot.lane.b32.xlu0 %v351, 114
    %v867 = vpop.permute.xlu0 %866
    %vm868 = vcmp.lt.s32.totalorder %v360, 114
    %v869 = vsel %vm868, %v865, %v867
    %v870 = vsel %vm868, %v867, %v865
    %v871 = vsel %vm131, 1, 0
    %v872 = vlaneseq
    %v873 = vshrl.u32 %v872, 7
    %v874 = vsub.s32 0, %v873
    %v875 = vrot.slane %v871, %v874
    %v876 = vlaneseq
    %v877 = vshrl.u32 %v876, 7
    %v878 = vsub.s32 2, %v877
    %v879 = vrot.slane %v871, %v878
    %v880 = vlaneseq
    %v881 = vshrl.u32 %v880, 7
    %v882 = vsub.s32 0, %v881
    %v883 = vrot.slane %v875, %v882
    %v884 = vlaneseq
    %v885 = vshrl.u32 %v884, 7
    %v886 = vsub.s32 0, %v885
    %v887 = vrot.slane %v879, %v886
    %vm888 = vcmp.eq.s32.totalorder %v883, 1
    %vm889 = vcmp.eq.s32.totalorder %v887, 1
    %v890 = vsel %vm888, %v869, 0.0
    %v891 = vsel %vm889, %v870, 0.0
    %892 = vset.pattern.permute.xlu0 19
    %893 = vperm.xlu0 %892, %v354
    %v894 = vpop.permute.xlu0 %893
    %v896 = vmul.f32 %v890, %v894
    %v897 = vmul.f32 %v891, %v894
    %898 = vrot.lane.b32.xlu0 %v350, 113
    %v899 = vpop.permute.xlu0 %898
    %900 = vrot.lane.b32.xlu0 %v351, 113
    %v901 = vpop.permute.xlu0 %900
    %vm902 = vcmp.lt.s32.totalorder %v360, 113
    %v903 = vsel %vm902, %v899, %v901
    %v904 = vsel %vm902, %v901, %v899
    %v905 = vsel %vm133, 1, 0
    %v906 = vlaneseq
    %v907 = vshrl.u32 %v906, 7
    %v908 = vsub.s32 0, %v907
    %v909 = vrot.slane %v905, %v908
    %v910 = vlaneseq
    %v911 = vshrl.u32 %v910, 7
    %v912 = vsub.s32 2, %v911
    %v913 = vrot.slane %v905, %v912
    %v914 = vlaneseq
    %v915 = vshrl.u32 %v914, 7
    %v916 = vsub.s32 0, %v915
    %v917 = vrot.slane %v909, %v916
    %v918 = vlaneseq
    %v919 = vshrl.u32 %v918, 7
    %v920 = vsub.s32 0, %v919
    %v921 = vrot.slane %v913, %v920
    %vm922 = vcmp.eq.s32.totalorder %v917, 1
    %vm923 = vcmp.eq.s32.totalorder %v921, 1
    %v924 = vsel %vm922, %v903, 0.0
    %v925 = vsel %vm923, %v904, 0.0
    %926 = vset.pattern.permute.xlu0 20
    %927 = vperm.xlu0 %926, %v354
    %v928 = vpop.permute.xlu0 %927
    %v930 = vmul.f32 %v924, %v928
    %v931 = vmul.f32 %v925, %v928
    %v932 = vadd.f32 %v896, %v930
    %v933 = vadd.f32 %v897, %v931
    %934 = vrot.lane.b32.xlu0 %v350, 112
    %v935 = vpop.permute.xlu0 %934
    %936 = vrot.lane.b32.xlu0 %v351, 112
    %v937 = vpop.permute.xlu0 %936
    %vm938 = vcmp.lt.s32.totalorder %v360, 112
    %v939 = vsel %vm938, %v935, %v937
    %v940 = vsel %vm938, %v937, %v935
    %v941 = vsel %vm135, 1, 0
    %v942 = vlaneseq
    %v943 = vshrl.u32 %v942, 7
    %v944 = vsub.s32 0, %v943
    %v945 = vrot.slane %v941, %v944
    %v946 = vlaneseq
    %v947 = vshrl.u32 %v946, 7
    %v948 = vsub.s32 2, %v947
    %v949 = vrot.slane %v941, %v948
    %v950 = vlaneseq
    %v951 = vshrl.u32 %v950, 7
    %v952 = vsub.s32 0, %v951
    %v953 = vrot.slane %v945, %v952
    %v954 = vlaneseq
    %v955 = vshrl.u32 %v954, 7
    %v956 = vsub.s32 0, %v955
    %v957 = vrot.slane %v949, %v956
    %vm958 = vcmp.eq.s32.totalorder %v953, 1
    %vm959 = vcmp.eq.s32.totalorder %v957, 1
    %v960 = vsel %vm958, %v939, 0.0
    %v961 = vsel %vm959, %v940, 0.0
    %962 = vset.pattern.permute.xlu0 21
    %963 = vperm.xlu0 %962, %v354
    %v964 = vpop.permute.xlu0 %963
    %v966 = vmul.f32 %v960, %v964
    %v967 = vmul.f32 %v961, %v964
    %v968 = vadd.f32 %v932, %v966
    %v969 = vadd.f32 %v933, %v967
    %970 = vrot.lane.b32.xlu0 %v350, 111
    %v971 = vpop.permute.xlu0 %970
    %972 = vrot.lane.b32.xlu0 %v351, 111
    %v973 = vpop.permute.xlu0 %972
    %vm974 = vcmp.lt.s32.totalorder %v360, 111
    %v975 = vsel %vm974, %v971, %v973
    %v976 = vsel %vm974, %v973, %v971
    %v977 = vsel %vm137, 1, 0
    %v978 = vlaneseq
    %v979 = vshrl.u32 %v978, 7
    %v980 = vsub.s32 0, %v979
    %v981 = vrot.slane %v977, %v980
    %v982 = vlaneseq
    %v983 = vshrl.u32 %v982, 7
    %v984 = vsub.s32 2, %v983
    %v985 = vrot.slane %v977, %v984
    %v986 = vlaneseq
    %v987 = vshrl.u32 %v986, 7
    %v988 = vsub.s32 0, %v987
    %v989 = vrot.slane %v981, %v988
    %v990 = vlaneseq
    %v991 = vshrl.u32 %v990, 7
    %v992 = vsub.s32 0, %v991
    %v993 = vrot.slane %v985, %v992
    %vm994 = vcmp.eq.s32.totalorder %v989, 1
    %vm995 = vcmp.eq.s32.totalorder %v993, 1
    %v996 = vsel %vm994, %v975, 0.0
    %v997 = vsel %vm995, %v976, 0.0
    %998 = vset.pattern.permute.xlu0 22
    %999 = vperm.xlu0 %998, %v354
    %v1000 = vpop.permute.xlu0 %999
    %v1002 = vmul.f32 %v996, %v1000
    %v1003 = vmul.f32 %v997, %v1000
    %v1004 = vadd.f32 %v968, %v1002
    %v1005 = vadd.f32 %v969, %v1003
    %1006 = vrot.lane.b32.xlu0 %v350, 110
    %v1007 = vpop.permute.xlu0 %1006
    %1008 = vrot.lane.b32.xlu0 %v351, 110
    %v1009 = vpop.permute.xlu0 %1008
    %vm1010 = vcmp.lt.s32.totalorder %v360, 110
    %v1011 = vsel %vm1010, %v1007, %v1009
    %v1012 = vsel %vm1010, %v1009, %v1007
    %v1013 = vsel %vm139, 1, 0
    %v1014 = vlaneseq
    %v1015 = vshrl.u32 %v1014, 7
    %v1016 = vsub.s32 0, %v1015
    %v1017 = vrot.slane %v1013, %v1016
    %v1018 = vlaneseq
    %v1019 = vshrl.u32 %v1018, 7
    %v1020 = vsub.s32 2, %v1019
    %v1021 = vrot.slane %v1013, %v1020
    %v1022 = vlaneseq
    %v1023 = vshrl.u32 %v1022, 7
    %v1024 = vsub.s32 0, %v1023
    %v1025 = vrot.slane %v1017, %v1024
    %v1026 = vlaneseq
    %v1027 = vshrl.u32 %v1026, 7
    %v1028 = vsub.s32 0, %v1027
    %v1029 = vrot.slane %v1021, %v1028
    %vm1030 = vcmp.eq.s32.totalorder %v1025, 1
    %vm1031 = vcmp.eq.s32.totalorder %v1029, 1
    %v1032 = vsel %vm1030, %v1011, 0.0
    %v1033 = vsel %vm1031, %v1012, 0.0
    %1034 = vset.pattern.permute.xlu0 23
    %1035 = vperm.xlu0 %1034, %v354
    %v1036 = vpop.permute.xlu0 %1035
    %v1038 = vmul.f32 %v1032, %v1036
    %v1039 = vmul.f32 %v1033, %v1036
    %v1040 = vadd.f32 %v1004, %v1038
    %v1041 = vadd.f32 %v1005, %v1039
    %1042 = vrot.lane.b32.xlu0 %v350, 98
    %v1043 = vpop.permute.xlu0 %1042
    %1044 = vrot.lane.b32.xlu0 %v351, 98
    %v1045 = vpop.permute.xlu0 %1044
    %vm1046 = vcmp.lt.s32.totalorder %v360, 98
    %v1047 = vsel %vm1046, %v1043, %v1045
    %v1048 = vsel %vm1046, %v1045, %v1043
    %v1049 = vsel %vm149, 1, 0
    %v1050 = vlaneseq
    %v1051 = vshrl.u32 %v1050, 7
    %v1052 = vsub.s32 0, %v1051
    %v1053 = vrot.slane %v1049, %v1052
    %v1054 = vlaneseq
    %v1055 = vshrl.u32 %v1054, 7
    %v1056 = vsub.s32 2, %v1055
    %v1057 = vrot.slane %v1049, %v1056
    %v1058 = vlaneseq
    %v1059 = vshrl.u32 %v1058, 7
    %v1060 = vsub.s32 0, %v1059
    %v1061 = vrot.slane %v1053, %v1060
    %v1062 = vlaneseq
    %v1063 = vshrl.u32 %v1062, 7
    %v1064 = vsub.s32 0, %v1063
    %v1065 = vrot.slane %v1057, %v1064
    %vm1066 = vcmp.eq.s32.totalorder %v1061, 1
    %vm1067 = vcmp.eq.s32.totalorder %v1065, 1
    %v1068 = vsel %vm1066, %v1047, 0.0
    %v1069 = vsel %vm1067, %v1048, 0.0
    %1070 = vset.pattern.permute.xlu0 24
    %1071 = vperm.xlu0 %1070, %v354
    %v1072 = vpop.permute.xlu0 %1071
    %v1074 = vmul.f32 %v1068, %v1072
    %v1075 = vmul.f32 %v1069, %v1072
    %1076 = vrot.lane.b32.xlu0 %v350, 97
    %v1077 = vpop.permute.xlu0 %1076
    %1078 = vrot.lane.b32.xlu0 %v351, 97
    %v1079 = vpop.permute.xlu0 %1078
    %vm1080 = vcmp.lt.s32.totalorder %v360, 97
    %v1081 = vsel %vm1080, %v1077, %v1079
    %v1082 = vsel %vm1080, %v1079, %v1077
    %v1083 = vsel %vm151, 1, 0
    %v1084 = vlaneseq
    %v1085 = vshrl.u32 %v1084, 7
    %v1086 = vsub.s32 0, %v1085
    %v1087 = vrot.slane %v1083, %v1086
    %v1088 = vlaneseq
    %v1089 = vshrl.u32 %v1088, 7
    %v1090 = vsub.s32 2, %v1089
    %v1091 = vrot.slane %v1083, %v1090
    %v1092 = vlaneseq
    %v1093 = vshrl.u32 %v1092, 7
    %v1094 = vsub.s32 0, %v1093
    %v1095 = vrot.slane %v1087, %v1094
    %v1096 = vlaneseq
    %v1097 = vshrl.u32 %v1096, 7
    %v1098 = vsub.s32 0, %v1097
    %v1099 = vrot.slane %v1091, %v1098
    %vm1100 = vcmp.eq.s32.totalorder %v1095, 1
    %vm1101 = vcmp.eq.s32.totalorder %v1099, 1
    %v1102 = vsel %vm1100, %v1081, 0.0
    %v1103 = vsel %vm1101, %v1082, 0.0
    %1104 = vset.pattern.permute.xlu0 25
    %1105 = vperm.xlu0 %1104, %v354
    %v1106 = vpop.permute.xlu0 %1105
    %v1108 = vmul.f32 %v1102, %v1106
    %v1109 = vmul.f32 %v1103, %v1106
    %v1110 = vadd.f32 %v1074, %v1108
    %v1111 = vadd.f32 %v1075, %v1109
    %1112 = vrot.lane.b32.xlu0 %v350, 96
    %v1113 = vpop.permute.xlu0 %1112
    %1114 = vrot.lane.b32.xlu0 %v351, 96
    %v1115 = vpop.permute.xlu0 %1114
    %vm1116 = vcmp.lt.s32.totalorder %v360, 96
    %v1117 = vsel %vm1116, %v1113, %v1115
    %v1118 = vsel %vm1116, %v1115, %v1113
    %v1119 = vsel %vm153, 1, 0
    %v1120 = vlaneseq
    %v1121 = vshrl.u32 %v1120, 7
    %v1122 = vsub.s32 0, %v1121
    %v1123 = vrot.slane %v1119, %v1122
    %v1124 = vlaneseq
    %v1125 = vshrl.u32 %v1124, 7
    %v1126 = vsub.s32 2, %v1125
    %v1127 = vrot.slane %v1119, %v1126
    %v1128 = vlaneseq
    %v1129 = vshrl.u32 %v1128, 7
    %v1130 = vsub.s32 0, %v1129
    %v1131 = vrot.slane %v1123, %v1130
    %v1132 = vlaneseq
    %v1133 = vshrl.u32 %v1132, 7
    %v1134 = vsub.s32 0, %v1133
    %v1135 = vrot.slane %v1127, %v1134
    %vm1136 = vcmp.eq.s32.totalorder %v1131, 1
    %vm1137 = vcmp.eq.s32.totalorder %v1135, 1
    %v1138 = vsel %vm1136, %v1117, 0.0
    %v1139 = vsel %vm1137, %v1118, 0.0
    %1140 = vset.pattern.permute.xlu0 26
    %1141 = vperm.xlu0 %1140, %v354
    %v1142 = vpop.permute.xlu0 %1141
    %v1144 = vmul.f32 %v1138, %v1142
    %v1145 = vmul.f32 %v1139, %v1142
    %v1146 = vadd.f32 %v1110, %v1144
    %v1147 = vadd.f32 %v1111, %v1145
    %1148 = vrot.lane.b32.xlu0 %v350, 95
    %v1149 = vpop.permute.xlu0 %1148
    %1150 = vrot.lane.b32.xlu0 %v351, 95
    %v1151 = vpop.permute.xlu0 %1150
    %vm1152 = vcmp.lt.s32.totalorder %v360, 95
    %v1153 = vsel %vm1152, %v1149, %v1151
    %v1154 = vsel %vm1152, %v1151, %v1149
    %v1155 = vsel %vm155, 1, 0
    %v1156 = vlaneseq
    %v1157 = vshrl.u32 %v1156, 7
    %v1158 = vsub.s32 0, %v1157
    %v1159 = vrot.slane %v1155, %v1158
    %v1160 = vlaneseq
    %v1161 = vshrl.u32 %v1160, 7
    %v1162 = vsub.s32 2, %v1161
    %v1163 = vrot.slane %v1155, %v1162
    %v1164 = vlaneseq
    %v1165 = vshrl.u32 %v1164, 7
    %v1166 = vsub.s32 0, %v1165
    %v1167 = vrot.slane %v1159, %v1166
    %v1168 = vlaneseq
    %v1169 = vshrl.u32 %v1168, 7
    %v1170 = vsub.s32 0, %v1169
    %v1171 = vrot.slane %v1163, %v1170
    %vm1172 = vcmp.eq.s32.totalorder %v1167, 1
    %vm1173 = vcmp.eq.s32.totalorder %v1171, 1
    %v1174 = vsel %vm1172, %v1153, 0.0
    %v1175 = vsel %vm1173, %v1154, 0.0
    %1176 = vset.pattern.permute.xlu0 27
    %1177 = vperm.xlu0 %1176, %v354
    %v1178 = vpop.permute.xlu0 %1177
    %v1180 = vmul.f32 %v1174, %v1178
    %v1181 = vmul.f32 %v1175, %v1178
    %v1182 = vadd.f32 %v1146, %v1180
    %v1183 = vadd.f32 %v1147, %v1181
    %1184 = vrot.lane.b32.xlu0 %v350, 94
    %v1185 = vpop.permute.xlu0 %1184
    %1186 = vrot.lane.b32.xlu0 %v351, 94
    %v1187 = vpop.permute.xlu0 %1186
    %vm1188 = vcmp.lt.s32.totalorder %v360, 94
    %v1189 = vsel %vm1188, %v1185, %v1187
    %v1190 = vsel %vm1188, %v1187, %v1185
    %v1191 = vsel %vm157, 1, 0
    %v1192 = vlaneseq
    %v1193 = vshrl.u32 %v1192, 7
    %v1194 = vsub.s32 0, %v1193
    %v1195 = vrot.slane %v1191, %v1194
    %v1196 = vlaneseq
    %v1197 = vshrl.u32 %v1196, 7
    %v1198 = vsub.s32 2, %v1197
    %v1199 = vrot.slane %v1191, %v1198
    %v1200 = vlaneseq
    %v1201 = vshrl.u32 %v1200, 7
    %v1202 = vsub.s32 0, %v1201
    %v1203 = vrot.slane %v1195, %v1202
    %v1204 = vlaneseq
    %v1205 = vshrl.u32 %v1204, 7
    %v1206 = vsub.s32 0, %v1205
    %v1207 = vrot.slane %v1199, %v1206
    %vm1208 = vcmp.eq.s32.totalorder %v1203, 1
    %vm1209 = vcmp.eq.s32.totalorder %v1207, 1
    %v1210 = vsel %vm1208, %v1189, 0.0
    %v1211 = vsel %vm1209, %v1190, 0.0
    %1212 = vset.pattern.permute.xlu0 28
    %1213 = vperm.xlu0 %1212, %v354
    %v1214 = vpop.permute.xlu0 %1213
    %v1216 = vmul.f32 %v1210, %v1214
    %v1217 = vmul.f32 %v1211, %v1214
    %v1218 = vadd.f32 %v1182, %v1216
    %v1219 = vadd.f32 %v1183, %v1217
    %v1220 = vadd.f32 %v534, %v712
    %v1221 = vadd.f32 %v535, %v713
    %v1222 = vadd.f32 %v862, %v1040
    %v1223 = vadd.f32 %v863, %v1041
    %v1224 = vadd.f32 %v1220, %v1222
    %v1225 = vadd.f32 %v1221, %v1223
    %v1226 = vadd.f32 %v1224, %v1218
    %v1227 = vadd.f32 %v1225, %v1219
    %v1228 = vsel %vm279, %v1226, 0.0
    %v1229 = vsel %vm279, %v1227, 0.0
    %v1230 = vadd.f32 %v1228, %v1229
    %1231 = vadd.xlane.f32.xlu0 %v1230
    %v1232 = vpop.xlane.xlu0 %1231
    %v1233 = vmul.f32 %v1226, %v1226
    %v1234 = vmul.f32 %v1227, %v1227
    %v1235 = vsel %vm279, %v1233, 0.0
    %v1236 = vsel %vm279, %v1234, 0.0
    %v1237 = vadd.f32 %v1235, %v1236
    %1238 = vadd.xlane.f32.xlu0 %v1237
    %v1239 = vpop.xlane.xlu0 %1238
    %v1241 = vrot.slane %v1232, 2
    %v1243 = vadd.f32 %v1232, %v1241
    %v1245 = vrot.slane %v1239, 2
    %v1247 = vadd.f32 %v1239, %v1245
    %v1248 = vmul.f32 %v1243, 0.001953125
    %v1249 = vmul.f32 %v1247, 0.001953125
    %v1250 = vmul.f32 %v1248, %v1248
    %v1251 = vsub.f32 %v1249, %v1250
    %v1252 = vadd.f32 %v1251, 1e-05
    %v1253 = vrsqrt.pop %v1252
    %1255 = vrot.lane.b32.xlu0 %v1253, 31
    %v1256 = vpop.permute.xlu0 %1255
    %v1258 = vmul.f32 %v158, %v1256
    %1260 = vrot.lane.b32.xlu0 %v1258, 97
    %v1261 = vpop.permute.xlu0 %1260
    %v1263 = vmul.f32 %v1248, %v1261
    %1265 = vrot.lane.b32.xlu0 %v1263, 32
    %v1266 = vpop.permute.xlu0 %1265
    %v1268 = vsub.f32 %v158, %v1266
    %v1269 = vrot.slane %v1258, 6
    %v1271 = vsel %vm276, %v1258, %v1269
    %v1273 = vrot.slane %v1268, 6
    %v1275 = vsel %vm276, %v1268, %v1273
    %1277 = vset.pattern.permute.xlu0 31
    %1278 = vperm.xlu0 %1277, %v1271
    %v1279 = vpop.permute.xlu0 %1278
    %v1281 = vmul.f32 %v1226, %v1279
    %v1282 = vmul.f32 %v1227, %v1279
    %1284 = vset.pattern.permute.xlu0 32
    %1285 = vperm.xlu0 %1284, %v1275
    %v1286 = vpop.permute.xlu0 %1285
    %v1288 = vadd.f32 %v1281, %v1286
    %v1289 = vadd.f32 %v1282, %v1286
    %v1290 = vmul.f32 %v1288, 0.5
    %v1291 = vmul.f32 %v1289, 0.5
    %v1292 = vtanh.pop %v1290
    %v1293 = vtanh.pop %v1291
    %v1294 = vmul.f32 %v1292, 0.5
    %v1295 = vmul.f32 %v1293, 0.5
    %v1296 = vadd.f32 %v1294, 0.5
    %v1297 = vadd.f32 %v1295, 0.5
    %v1298 = vmul.f32 %v1288, %v1296
    %v1299 = vmul.f32 %v1289, %v1297
    %v1300 = vlaneseq
    %v1301 = vshrl.u32 %v1300, 7
    %v1302 = vsub.s32 0, %v1301
    %v1303 = vrot.slane %v350, %v1302
    %v1304 = vlaneseq
    %v1305 = vshrl.u32 %v1304, 7
    %v1306 = vsub.s32 0, %v1305
    %v1307 = vrot.slane %v351, %v1306
    %v1308 = vmul.f32 %v164, %v1303
    %v1309 = vmul.f32 %v164, %v1307
    %v1310 = vlaneseq
    %v1311 = vshrl.u32 %v1310, 7
    %v1312 = vsub.s32 1, %v1311
    %v1313 = vrot.slane %v350, %v1312
    %v1314 = vlaneseq
    %v1315 = vshrl.u32 %v1314, 7
    %v1316 = vsub.s32 1, %v1315
    %v1317 = vrot.slane %v351, %v1316
    %v1318 = vmul.f32 %v178, %v1313
    %v1319 = vmul.f32 %v178, %v1317
    %v1320 = vadd.f32 %v1308, %v1318
    %v1321 = vadd.f32 %v1309, %v1319
    %v1322 = vlaneseq
    %v1323 = vshrl.u32 %v1322, 7
    %v1324 = vsub.s32 0, %v1323
    %v1325 = vrot.slane %v1298, %v1324
    %v1326 = vlaneseq
    %v1327 = vshrl.u32 %v1326, 7
    %v1328 = vsub.s32 0, %v1327
    %v1329 = vrot.slane %v1299, %v1328
    %v1330 = vmul.f32 %v194, %v1325
    %v1331 = vmul.f32 %v194, %v1329
    %v1332 = vadd.f32 %v1320, %v1330
    %v1333 = vadd.f32 %v1321, %v1331
    %v1334 = vlaneseq
    %v1335 = vshrl.u32 %v1334, 7
    %v1336 = vsub.s32 1, %v1335
    %v1337 = vrot.slane %v1298, %v1336
    %v1338 = vlaneseq
    %v1339 = vshrl.u32 %v1338, 7
    %v1340 = vsub.s32 1, %v1339
    %v1341 = vrot.slane %v1299, %v1340
    %v1342 = vmul.f32 %v210, %v1337
    %v1343 = vmul.f32 %v210, %v1341
    %v1344 = vadd.f32 %v1332, %v1342
    %v1345 = vadd.f32 %v1333, %v1343
    %v1346 = vlaneseq
    %v1347 = vshrl.u32 %v1346, 7
    %v1348 = vsub.s32 2, %v1347
    %v1349 = vrot.slane %v350, %v1348
    %v1350 = vlaneseq
    %v1351 = vshrl.u32 %v1350, 7
    %v1352 = vsub.s32 2, %v1351
    %v1353 = vrot.slane %v351, %v1352
    %v1354 = vmul.f32 %v164, %v1349
    %v1355 = vmul.f32 %v164, %v1353
    %v1356 = vlaneseq
    %v1357 = vshrl.u32 %v1356, 7
    %v1358 = vsub.s32 3, %v1357
    %v1359 = vrot.slane %v350, %v1358
    %v1360 = vlaneseq
    %v1361 = vshrl.u32 %v1360, 7
    %v1362 = vsub.s32 3, %v1361
    %v1363 = vrot.slane %v351, %v1362
    %v1364 = vmul.f32 %v178, %v1359
    %v1365 = vmul.f32 %v178, %v1363
    %v1366 = vadd.f32 %v1354, %v1364
    %v1367 = vadd.f32 %v1355, %v1365
    %v1368 = vlaneseq
    %v1369 = vshrl.u32 %v1368, 7
    %v1370 = vsub.s32 2, %v1369
    %v1371 = vrot.slane %v1298, %v1370
    %v1372 = vlaneseq
    %v1373 = vshrl.u32 %v1372, 7
    %v1374 = vsub.s32 2, %v1373
    %v1375 = vrot.slane %v1299, %v1374
    %v1376 = vmul.f32 %v194, %v1371
    %v1377 = vmul.f32 %v194, %v1375
    %v1378 = vadd.f32 %v1366, %v1376
    %v1379 = vadd.f32 %v1367, %v1377
    %v1380 = vlaneseq
    %v1381 = vshrl.u32 %v1380, 7
    %v1382 = vsub.s32 3, %v1381
    %v1383 = vrot.slane %v1298, %v1382
    %v1384 = vlaneseq
    %v1385 = vshrl.u32 %v1384, 7
    %v1386 = vsub.s32 3, %v1385
    %v1387 = vrot.slane %v1299, %v1386
    %v1388 = vmul.f32 %v210, %v1383
    %v1389 = vmul.f32 %v210, %v1387
    %v1390 = vadd.f32 %v1378, %v1388
    %v1391 = vadd.f32 %v1379, %v1389
    %v1394 = vrot.slane %v1344, 2
    %v1395 = vrot.slane %v1345, 2
    %v1400 = vrot.slane %v1390, 6
    %v1401 = vrot.slane %v1391, 6
    %v1404 = vsel %vm279, %v1394, %v1400
    %v1405 = vsel %vm279, %v1395, %v1401
    %v1406 = vadd.f32 %v1404, %v1405
    %1407 = vadd.xlane.f32.xlu0 %v1406
    %v1408 = vpop.xlane.xlu0 %1407
    %v1409 = vmul.f32 %v1404, %v1404
    %v1410 = vmul.f32 %v1405, %v1405
    %v1411 = vadd.f32 %v1409, %v1410
    %1412 = vadd.xlane.f32.xlu0 %v1411
    %v1413 = vpop.xlane.xlu0 %1412
    %v1415 = vrot.slane %v1408, 4
    %v1417 = vadd.f32 %v1408, %v1415
    %v1419 = vrot.slane %v1413, 4
    %v1421 = vadd.f32 %v1413, %v1419
    %v1422 = vmul.f32 %v1417, 0.001953125
    %v1423 = vmul.f32 %v1421, 0.001953125
    %v1424 = vmul.f32 %v1422, %v1422
    %v1425 = vsub.f32 %v1423, %v1424
    %v1426 = vadd.f32 %v1425, 1e-05
    %v1427 = vrsqrt.pop %v1426
    %v1429 = vrot.slane %v1427, 6
    %1430 = vrot.lane.b32.xlu0 %v1429, 29
    %v1431 = vpop.permute.xlu0 %1430
    %v1433 = vmul.f32 %v158, %v1431
    %v1435 = vrot.slane %v1433, 2
    %1436 = vrot.lane.b32.xlu0 %v1435, 99
    %v1437 = vpop.permute.xlu0 %1436
    %v1439 = vmul.f32 %v1422, %v1437
    %v1441 = vrot.slane %v1439, 6
    %1442 = vrot.lane.b32.xlu0 %v1441, 30
    %v1443 = vpop.permute.xlu0 %1442
    %v1445 = vsub.f32 %v158, %v1443
    %v1447 = vrot.slane %v1433, 6
    %v1449 = vsel %vm279, %v1435, %v1447
    %v1451 = vrot.slane %v1445, 2
    %v1453 = vrot.slane %v1445, 6
    %v1455 = vsel %vm279, %v1451, %v1453
    %1457 = vset.pattern.permute.xlu0 29
    %1458 = vperm.xlu0 %1457, %v1449
    %v1459 = vpop.permute.xlu0 %1458
    %v1461 = vmul.f32 %v1404, %v1459
    %v1462 = vmul.f32 %v1405, %v1459
    %1464 = vset.pattern.permute.xlu0 30
    %1465 = vperm.xlu0 %1464, %v1455
    %v1466 = vpop.permute.xlu0 %1465
    %v1468 = vadd.f32 %v1461, %v1466
    %v1469 = vadd.f32 %v1462, %v1466
    %v1470 = vrot.slane %v158, 2
    %v1472 = vsel %vm279, %v1470, %v352
    %1473 = vrot.lane.b32.xlu0 %v1468, 34
    %v1474 = vpop.permute.xlu0 %1473
    %1475 = vrot.lane.b32.xlu0 %v1469, 34
    %v1476 = vpop.permute.xlu0 %1475
    %v1477 = vsel %vm361, %v1474, %v1476
    %v1478 = vsel %vm361, %v1476, %v1474
    %v1479 = vsel %vm381, %v1478, 0.0
    %v1480 = vsel %vm382, %v1477, 0.0
    %1482 = vset.pattern.permute.xlu0 4
    %1483 = vperm.xlu0 %1482, %v1472
    %v1484 = vpop.permute.xlu0 %1483
    %v1486 = vmul.f32 %v1479, %v1484
    %v1487 = vmul.f32 %v1480, %v1484
    %1488 = vrot.lane.b32.xlu0 %v1468, 33
    %v1489 = vpop.permute.xlu0 %1488
    %1490 = vrot.lane.b32.xlu0 %v1469, 33
    %v1491 = vpop.permute.xlu0 %1490
    %v1492 = vsel %vm396, %v1489, %v1491
    %v1493 = vsel %vm396, %v1491, %v1489
    %v1494 = vsel %vm416, %v1493, 0.0
    %v1495 = vsel %vm417, %v1492, 0.0
    %1496 = vset.pattern.permute.xlu0 5
    %1497 = vperm.xlu0 %1496, %v1472
    %v1498 = vpop.permute.xlu0 %1497
    %v1500 = vmul.f32 %v1494, %v1498
    %v1501 = vmul.f32 %v1495, %v1498
    %v1502 = vadd.f32 %v1486, %v1500
    %v1503 = vadd.f32 %v1487, %v1501
    %1504 = vrot.lane.b32.xlu0 %v1468, 32
    %v1505 = vpop.permute.xlu0 %1504
    %1506 = vrot.lane.b32.xlu0 %v1469, 32
    %v1507 = vpop.permute.xlu0 %1506
    %v1508 = vsel %vm432, %v1505, %v1507
    %v1509 = vsel %vm432, %v1507, %v1505
    %v1510 = vsel %vm452, %v1509, 0.0
    %v1511 = vsel %vm453, %v1508, 0.0
    %1512 = vset.pattern.permute.xlu0 6
    %1513 = vperm.xlu0 %1512, %v1472
    %v1514 = vpop.permute.xlu0 %1513
    %v1516 = vmul.f32 %v1510, %v1514
    %v1517 = vmul.f32 %v1511, %v1514
    %v1518 = vadd.f32 %v1502, %v1516
    %v1519 = vadd.f32 %v1503, %v1517
    %1520 = vrot.lane.b32.xlu0 %v1468, 31
    %v1521 = vpop.permute.xlu0 %1520
    %1522 = vrot.lane.b32.xlu0 %v1469, 31
    %v1523 = vpop.permute.xlu0 %1522
    %v1524 = vsel %vm468, %v1521, %v1523
    %v1525 = vsel %vm468, %v1523, %v1521
    %v1526 = vsel %vm488, %v1525, 0.0
    %v1527 = vsel %vm489, %v1524, 0.0
    %1528 = vset.pattern.permute.xlu0 7
    %1529 = vperm.xlu0 %1528, %v1472
    %v1530 = vpop.permute.xlu0 %1529
    %v1532 = vmul.f32 %v1526, %v1530
    %v1533 = vmul.f32 %v1527, %v1530
    %v1534 = vadd.f32 %v1518, %v1532
    %v1535 = vadd.f32 %v1519, %v1533
    %1536 = vrot.lane.b32.xlu0 %v1468, 30
    %v1537 = vpop.permute.xlu0 %1536
    %1538 = vrot.lane.b32.xlu0 %v1469, 30
    %v1539 = vpop.permute.xlu0 %1538
    %v1540 = vsel %vm504, %v1537, %v1539
    %v1541 = vsel %vm504, %v1539, %v1537
    %v1542 = vsel %vm524, %v1541, 0.0
    %v1543 = vsel %vm525, %v1540, 0.0
    %1544 = vset.pattern.permute.xlu0 8
    %1545 = vperm.xlu0 %1544, %v1472
    %v1546 = vpop.permute.xlu0 %1545
    %v1548 = vmul.f32 %v1542, %v1546
    %v1549 = vmul.f32 %v1543, %v1546
    %v1550 = vadd.f32 %v1534, %v1548
    %v1551 = vadd.f32 %v1535, %v1549
    %1552 = vrot.lane.b32.xlu0 %v1468, 18
    %v1553 = vpop.permute.xlu0 %1552
    %1554 = vrot.lane.b32.xlu0 %v1469, 18
    %v1555 = vpop.permute.xlu0 %1554
    %v1556 = vsel %vm540, %v1553, %v1555
    %v1557 = vsel %vm540, %v1555, %v1553
    %v1558 = vsel %vm560, %v1557, 0.0
    %v1559 = vsel %vm561, %v1556, 0.0
    %1560 = vset.pattern.permute.xlu0 9
    %1561 = vperm.xlu0 %1560, %v1472
    %v1562 = vpop.permute.xlu0 %1561
    %v1564 = vmul.f32 %v1558, %v1562
    %v1565 = vmul.f32 %v1559, %v1562
    %1566 = vrot.lane.b32.xlu0 %v1468, 17
    %v1567 = vpop.permute.xlu0 %1566
    %1568 = vrot.lane.b32.xlu0 %v1469, 17
    %v1569 = vpop.permute.xlu0 %1568
    %v1570 = vsel %vm574, %v1567, %v1569
    %v1571 = vsel %vm574, %v1569, %v1567
    %v1572 = vsel %vm594, %v1571, 0.0
    %v1573 = vsel %vm595, %v1570, 0.0
    %1574 = vset.pattern.permute.xlu0 10
    %1575 = vperm.xlu0 %1574, %v1472
    %v1576 = vpop.permute.xlu0 %1575
    %v1578 = vmul.f32 %v1572, %v1576
    %v1579 = vmul.f32 %v1573, %v1576
    %v1580 = vadd.f32 %v1564, %v1578
    %v1581 = vadd.f32 %v1565, %v1579
    %1582 = vrot.lane.b32.xlu0 %v1468, 16
    %v1583 = vpop.permute.xlu0 %1582
    %1584 = vrot.lane.b32.xlu0 %v1469, 16
    %v1585 = vpop.permute.xlu0 %1584
    %v1586 = vsel %vm610, %v1583, %v1585
    %v1587 = vsel %vm610, %v1585, %v1583
    %v1588 = vsel %vm630, %v1587, 0.0
    %v1589 = vsel %vm631, %v1586, 0.0
    %1590 = vset.pattern.permute.xlu0 11
    %1591 = vperm.xlu0 %1590, %v1472
    %v1592 = vpop.permute.xlu0 %1591
    %v1594 = vmul.f32 %v1588, %v1592
    %v1595 = vmul.f32 %v1589, %v1592
    %v1596 = vadd.f32 %v1580, %v1594
    %v1597 = vadd.f32 %v1581, %v1595
    %1598 = vrot.lane.b32.xlu0 %v1468, 15
    %v1599 = vpop.permute.xlu0 %1598
    %1600 = vrot.lane.b32.xlu0 %v1469, 15
    %v1601 = vpop.permute.xlu0 %1600
    %v1602 = vsel %vm646, %v1599, %v1601
    %v1603 = vsel %vm646, %v1601, %v1599
    %v1604 = vsel %vm666, %v1603, 0.0
    %v1605 = vsel %vm667, %v1602, 0.0
    %1606 = vset.pattern.permute.xlu0 12
    %1607 = vperm.xlu0 %1606, %v1472
    %v1608 = vpop.permute.xlu0 %1607
    %v1610 = vmul.f32 %v1604, %v1608
    %v1611 = vmul.f32 %v1605, %v1608
    %v1612 = vadd.f32 %v1596, %v1610
    %v1613 = vadd.f32 %v1597, %v1611
    %1614 = vrot.lane.b32.xlu0 %v1468, 14
    %v1615 = vpop.permute.xlu0 %1614
    %1616 = vrot.lane.b32.xlu0 %v1469, 14
    %v1617 = vpop.permute.xlu0 %1616
    %v1618 = vsel %vm682, %v1615, %v1617
    %v1619 = vsel %vm682, %v1617, %v1615
    %v1620 = vsel %vm702, %v1619, 0.0
    %v1621 = vsel %vm703, %v1618, 0.0
    %1622 = vset.pattern.permute.xlu0 13
    %1623 = vperm.xlu0 %1622, %v1472
    %v1624 = vpop.permute.xlu0 %1623
    %v1626 = vmul.f32 %v1620, %v1624
    %v1627 = vmul.f32 %v1621, %v1624
    %v1628 = vadd.f32 %v1612, %v1626
    %v1629 = vadd.f32 %v1613, %v1627
    %1630 = vrot.lane.b32.xlu0 %v1468, 2
    %v1631 = vpop.permute.xlu0 %1630
    %1632 = vrot.lane.b32.xlu0 %v1469, 2
    %v1633 = vpop.permute.xlu0 %1632
    %v1634 = vsel %vm718, %v1631, %v1633
    %v1635 = vsel %vm718, %v1633, %v1631
    %v1636 = vsel %vm738, %v1635, 0.0
    %v1637 = vsel %vm739, %v1634, 0.0
    %1638 = vset.pattern.permute.xlu0 14
    %1639 = vperm.xlu0 %1638, %v1472
    %v1640 = vpop.permute.xlu0 %1639
    %v1642 = vmul.f32 %v1636, %v1640
    %v1643 = vmul.f32 %v1637, %v1640
    %1644 = vrot.lane.b32.xlu0 %v1468, 1
    %v1645 = vpop.permute.xlu0 %1644
    %1646 = vrot.lane.b32.xlu0 %v1469, 1
    %v1647 = vpop.permute.xlu0 %1646
    %v1648 = vsel %vm752, %v1645, %v1647
    %v1649 = vsel %vm752, %v1647, %v1645
    %v1650 = vsel %vm772, %v1649, 0.0
    %v1651 = vsel %vm773, %v1648, 0.0
    %1652 = vset.pattern.permute.xlu0 15
    %1653 = vperm.xlu0 %1652, %v1472
    %v1654 = vpop.permute.xlu0 %1653
    %v1656 = vmul.f32 %v1650, %v1654
    %v1657 = vmul.f32 %v1651, %v1654
    %v1658 = vadd.f32 %v1642, %v1656
    %v1659 = vadd.f32 %v1643, %v1657
    %1660 = vset.pattern.permute.xlu0 16
    %1661 = vperm.xlu0 %1660, %v1472
    %v1662 = vpop.permute.xlu0 %1661
    %v1664 = vmul.f32 %v1468, %v1662
    %v1665 = vmul.f32 %v1469, %v1662
    %v1666 = vadd.f32 %v1658, %v1664
    %v1667 = vadd.f32 %v1659, %v1665
    %1668 = vrot.lane.b32.xlu0 %v1468, 127
    %v1669 = vpop.permute.xlu0 %1668
    %1670 = vrot.lane.b32.xlu0 %v1469, 127
    %v1671 = vpop.permute.xlu0 %1670
    %v1672 = vsel %vm796, %v1669, %v1671
    %v1673 = vsel %vm796, %v1671, %v1669
    %v1674 = vsel %vm816, %v1672, 0.0
    %v1675 = vsel %vm817, %v1673, 0.0
    %1676 = vset.pattern.permute.xlu0 17
    %1677 = vperm.xlu0 %1676, %v1472
    %v1678 = vpop.permute.xlu0 %1677
    %v1680 = vmul.f32 %v1674, %v1678
    %v1681 = vmul.f32 %v1675, %v1678
    %v1682 = vadd.f32 %v1666, %v1680
    %v1683 = vadd.f32 %v1667, %v1681
    %1684 = vrot.lane.b32.xlu0 %v1468, 126
    %v1685 = vpop.permute.xlu0 %1684
    %1686 = vrot.lane.b32.xlu0 %v1469, 126
    %v1687 = vpop.permute.xlu0 %1686
    %v1688 = vsel %vm832, %v1685, %v1687
    %v1689 = vsel %vm832, %v1687, %v1685
    %v1690 = vsel %vm852, %v1688, 0.0
    %v1691 = vsel %vm853, %v1689, 0.0
    %1692 = vset.pattern.permute.xlu0 18
    %1693 = vperm.xlu0 %1692, %v1472
    %v1694 = vpop.permute.xlu0 %1693
    %v1696 = vmul.f32 %v1690, %v1694
    %v1697 = vmul.f32 %v1691, %v1694
    %v1698 = vadd.f32 %v1682, %v1696
    %v1699 = vadd.f32 %v1683, %v1697
    %1700 = vrot.lane.b32.xlu0 %v1468, 114
    %v1701 = vpop.permute.xlu0 %1700
    %1702 = vrot.lane.b32.xlu0 %v1469, 114
    %v1703 = vpop.permute.xlu0 %1702
    %v1704 = vsel %vm868, %v1701, %v1703
    %v1705 = vsel %vm868, %v1703, %v1701
    %v1706 = vsel %vm888, %v1704, 0.0
    %v1707 = vsel %vm889, %v1705, 0.0
    %1708 = vset.pattern.permute.xlu0 19
    %1709 = vperm.xlu0 %1708, %v1472
    %v1710 = vpop.permute.xlu0 %1709
    %v1712 = vmul.f32 %v1706, %v1710
    %v1713 = vmul.f32 %v1707, %v1710
    %1714 = vrot.lane.b32.xlu0 %v1468, 113
    %v1715 = vpop.permute.xlu0 %1714
    %1716 = vrot.lane.b32.xlu0 %v1469, 113
    %v1717 = vpop.permute.xlu0 %1716
    %v1718 = vsel %vm902, %v1715, %v1717
    %v1719 = vsel %vm902, %v1717, %v1715
    %v1720 = vsel %vm922, %v1718, 0.0
    %v1721 = vsel %vm923, %v1719, 0.0
    %1722 = vset.pattern.permute.xlu0 20
    %1723 = vperm.xlu0 %1722, %v1472
    %v1724 = vpop.permute.xlu0 %1723
    %v1726 = vmul.f32 %v1720, %v1724
    %v1727 = vmul.f32 %v1721, %v1724
    %v1728 = vadd.f32 %v1712, %v1726
    %v1729 = vadd.f32 %v1713, %v1727
    %1730 = vrot.lane.b32.xlu0 %v1468, 112
    %v1731 = vpop.permute.xlu0 %1730
    %1732 = vrot.lane.b32.xlu0 %v1469, 112
    %v1733 = vpop.permute.xlu0 %1732
    %v1734 = vsel %vm938, %v1731, %v1733
    %v1735 = vsel %vm938, %v1733, %v1731
    %v1736 = vsel %vm958, %v1734, 0.0
    %v1737 = vsel %vm959, %v1735, 0.0
    %1738 = vset.pattern.permute.xlu0 21
    %1739 = vperm.xlu0 %1738, %v1472
    %v1740 = vpop.permute.xlu0 %1739
    %v1742 = vmul.f32 %v1736, %v1740
    %v1743 = vmul.f32 %v1737, %v1740
    %v1744 = vadd.f32 %v1728, %v1742
    %v1745 = vadd.f32 %v1729, %v1743
    %1746 = vrot.lane.b32.xlu0 %v1468, 111
    %v1747 = vpop.permute.xlu0 %1746
    %1748 = vrot.lane.b32.xlu0 %v1469, 111
    %v1749 = vpop.permute.xlu0 %1748
    %v1750 = vsel %vm974, %v1747, %v1749
    %v1751 = vsel %vm974, %v1749, %v1747
    %v1752 = vsel %vm994, %v1750, 0.0
    %v1753 = vsel %vm995, %v1751, 0.0
    %1754 = vset.pattern.permute.xlu0 22
    %1755 = vperm.xlu0 %1754, %v1472
    %v1756 = vpop.permute.xlu0 %1755
    %v1758 = vmul.f32 %v1752, %v1756
    %v1759 = vmul.f32 %v1753, %v1756
    %v1760 = vadd.f32 %v1744, %v1758
    %v1761 = vadd.f32 %v1745, %v1759
    %1762 = vrot.lane.b32.xlu0 %v1468, 110
    %v1763 = vpop.permute.xlu0 %1762
    %1764 = vrot.lane.b32.xlu0 %v1469, 110
    %v1765 = vpop.permute.xlu0 %1764
    %v1766 = vsel %vm1010, %v1763, %v1765
    %v1767 = vsel %vm1010, %v1765, %v1763
    %v1768 = vsel %vm1030, %v1766, 0.0
    %v1769 = vsel %vm1031, %v1767, 0.0
    %1770 = vset.pattern.permute.xlu0 23
    %1771 = vperm.xlu0 %1770, %v1472
    %v1772 = vpop.permute.xlu0 %1771
    %v1774 = vmul.f32 %v1768, %v1772
    %v1775 = vmul.f32 %v1769, %v1772
    %v1776 = vadd.f32 %v1760, %v1774
    %v1777 = vadd.f32 %v1761, %v1775
    %1778 = vrot.lane.b32.xlu0 %v1468, 98
    %v1779 = vpop.permute.xlu0 %1778
    %1780 = vrot.lane.b32.xlu0 %v1469, 98
    %v1781 = vpop.permute.xlu0 %1780
    %v1782 = vsel %vm1046, %v1779, %v1781
    %v1783 = vsel %vm1046, %v1781, %v1779
    %v1784 = vsel %vm1066, %v1782, 0.0
    %v1785 = vsel %vm1067, %v1783, 0.0
    %1786 = vset.pattern.permute.xlu0 24
    %1787 = vperm.xlu0 %1786, %v1472
    %v1788 = vpop.permute.xlu0 %1787
    %v1790 = vmul.f32 %v1784, %v1788
    %v1791 = vmul.f32 %v1785, %v1788
    %1792 = vrot.lane.b32.xlu0 %v1468, 97
    %v1793 = vpop.permute.xlu0 %1792
    %1794 = vrot.lane.b32.xlu0 %v1469, 97
    %v1795 = vpop.permute.xlu0 %1794
    %v1796 = vsel %vm1080, %v1793, %v1795
    %v1797 = vsel %vm1080, %v1795, %v1793
    %v1798 = vsel %vm1100, %v1796, 0.0
    %v1799 = vsel %vm1101, %v1797, 0.0
    %1800 = vset.pattern.permute.xlu0 25
    %1801 = vperm.xlu0 %1800, %v1472
    %v1802 = vpop.permute.xlu0 %1801
    %v1804 = vmul.f32 %v1798, %v1802
    %v1805 = vmul.f32 %v1799, %v1802
    %v1806 = vadd.f32 %v1790, %v1804
    %v1807 = vadd.f32 %v1791, %v1805
    %1808 = vrot.lane.b32.xlu0 %v1468, 96
    %v1809 = vpop.permute.xlu0 %1808
    %1810 = vrot.lane.b32.xlu0 %v1469, 96
    %v1811 = vpop.permute.xlu0 %1810
    %v1812 = vsel %vm1116, %v1809, %v1811
    %v1813 = vsel %vm1116, %v1811, %v1809
    %v1814 = vsel %vm1136, %v1812, 0.0
    %v1815 = vsel %vm1137, %v1813, 0.0
    %1816 = vset.pattern.permute.xlu0 26
    %1817 = vperm.xlu0 %1816, %v1472
    %v1818 = vpop.permute.xlu0 %1817
    %v1820 = vmul.f32 %v1814, %v1818
    %v1821 = vmul.f32 %v1815, %v1818
    %v1822 = vadd.f32 %v1806, %v1820
    %v1823 = vadd.f32 %v1807, %v1821
    %1824 = vrot.lane.b32.xlu0 %v1468, 95
    %v1825 = vpop.permute.xlu0 %1824
    %1826 = vrot.lane.b32.xlu0 %v1469, 95
    %v1827 = vpop.permute.xlu0 %1826
    %v1828 = vsel %vm1152, %v1825, %v1827
    %v1829 = vsel %vm1152, %v1827, %v1825
    %v1830 = vsel %vm1172, %v1828, 0.0
    %v1831 = vsel %vm1173, %v1829, 0.0
    %1832 = vset.pattern.permute.xlu0 27
    %1833 = vperm.xlu0 %1832, %v1472
    %v1834 = vpop.permute.xlu0 %1833
    %v1836 = vmul.f32 %v1830, %v1834
    %v1837 = vmul.f32 %v1831, %v1834
    %v1838 = vadd.f32 %v1822, %v1836
    %v1839 = vadd.f32 %v1823, %v1837
    %1840 = vrot.lane.b32.xlu0 %v1468, 94
    %v1841 = vpop.permute.xlu0 %1840
    %1842 = vrot.lane.b32.xlu0 %v1469, 94
    %v1843 = vpop.permute.xlu0 %1842
    %v1844 = vsel %vm1188, %v1841, %v1843
    %v1845 = vsel %vm1188, %v1843, %v1841
    %v1846 = vsel %vm1208, %v1844, 0.0
    %v1847 = vsel %vm1209, %v1845, 0.0
    %1848 = vset.pattern.permute.xlu0 28
    %1849 = vperm.xlu0 %1848, %v1472
    %v1850 = vpop.permute.xlu0 %1849
    %v1852 = vmul.f32 %v1846, %v1850
    %v1853 = vmul.f32 %v1847, %v1850
    %v1854 = vadd.f32 %v1838, %v1852
    %v1855 = vadd.f32 %v1839, %v1853
    %v1856 = vadd.f32 %v1550, %v1628
    %v1857 = vadd.f32 %v1551, %v1629
    %v1858 = vadd.f32 %v1698, %v1776
    %v1859 = vadd.f32 %v1699, %v1777
    %v1860 = vadd.f32 %v1856, %v1858
    %v1861 = vadd.f32 %v1857, %v1859
    %v1862 = vadd.f32 %v1860, %v1854
    %v1863 = vadd.f32 %v1861, %v1855
    %v1864 = vadd.f32 %v1862, %v1863
    %1865 = vadd.xlane.f32.xlu0 %v1864
    %v1866 = vpop.xlane.xlu0 %1865
    %v1867 = vmul.f32 %v1862, %v1862
    %v1868 = vmul.f32 %v1863, %v1863
    %v1869 = vadd.f32 %v1867, %v1868
    %1870 = vadd.xlane.f32.xlu0 %v1869
    %v1871 = vpop.xlane.xlu0 %1870
    %v1873 = vrot.slane %v1866, 4
    %v1875 = vadd.f32 %v1866, %v1873
    %v1877 = vrot.slane %v1871, 4
    %v1879 = vadd.f32 %v1871, %v1877
    %v1880 = vmul.f32 %v1875, 0.001953125
    %v1881 = vmul.f32 %v1879, 0.001953125
    %v1882 = vmul.f32 %v1880, %v1880
    %v1883 = vsub.f32 %v1881, %v1882
    %v1884 = vadd.f32 %v1883, 1e-05
    %v1885 = vrsqrt.pop %v1884
    %v1887 = vrot.slane %v1885, 6
    %1888 = vrot.lane.b32.xlu0 %v1887, 31
    %v1889 = vpop.permute.xlu0 %1888
    %v1891 = vmul.f32 %v158, %v1889
    %v1893 = vrot.slane %v1891, 2
    %1894 = vrot.lane.b32.xlu0 %v1893, 97
    %v1895 = vpop.permute.xlu0 %1894
    %v1897 = vmul.f32 %v1880, %v1895
    %v1899 = vrot.slane %v1897, 6
    %1900 = vrot.lane.b32.xlu0 %v1899, 32
    %v1901 = vpop.permute.xlu0 %1900
    %v1903 = vsub.f32 %v158, %v1901
    %v1905 = vrot.slane %v1891, 6
    %v1907 = vsel %vm279, %v1893, %v1905
    %v1909 = vrot.slane %v1903, 2
    %v1911 = vrot.slane %v1903, 6
    %v1913 = vsel %vm279, %v1909, %v1911
    %1915 = vset.pattern.permute.xlu0 31
    %1916 = vperm.xlu0 %1915, %v1907
    %v1917 = vpop.permute.xlu0 %1916
    %v1919 = vmul.f32 %v1862, %v1917
    %v1920 = vmul.f32 %v1863, %v1917
    %1922 = vset.pattern.permute.xlu0 32
    %1923 = vperm.xlu0 %1922, %v1913
    %v1924 = vpop.permute.xlu0 %1923
    %v1926 = vadd.f32 %v1919, %v1924
    %v1927 = vadd.f32 %v1920, %v1924
    %1928 = vst [vmem:[#allocation8] sm:$0x3] %v1468
    %1929 = vst [vmem:[#allocation8 + $0x8] sm:$0x3] %v1469
    %v1932 = vrot.slane %v1926, 6
    %v1933 = vrot.slane %v1927, 6
    %1936 = vst [vmem:[#allocation8] sm:$0xc] %v1932
    %1937 = vst [vmem:[#allocation8 + $0x8] sm:$0xc] %v1933
    %v1940 = vrot.slane %v1468, 6
    %v1941 = vrot.slane %v1469, 6
    %1944 = vst [vmem:[#allocation8] sm:$0x30] %v1940
    %1945 = vst [vmem:[#allocation8 + $0x8] sm:$0x30] %v1941
    %v1946 = vrot.slane %v1926, 4
    %v1947 = vrot.slane %v1927, 4
    %1950 = vst [vmem:[#allocation8] sm:$0xc0] %v1946
    %1951 = vst [vmem:[#allocation8 + $0x8] sm:$0xc0] %v1947
    %v1952 = vrot.slane %v1468, 4
    %v1953 = vrot.slane %v1469, 4
    %1956 = vst [vmem:[#allocation8 + $0x10] sm:$0x3] %v1952
    %1957 = vst [vmem:[#allocation8 + $0x18] sm:$0x3] %v1953
    %v1958 = vrot.slane %v1926, 2
    %v1959 = vrot.slane %v1927, 2
    %1962 = vst [vmem:[#allocation8 + $0x10] sm:$0xc] %v1958
    %1963 = vst [vmem:[#allocation8 + $0x18] sm:$0xc] %v1959
    %v1964 = vrot.slane %v1468, 2
    %v1965 = vrot.slane %v1469, 2
    %1968 = vst [vmem:[#allocation8 + $0x10] sm:$0x30] %v1964
    %1969 = vst [vmem:[#allocation8 + $0x18] sm:$0x30] %v1965
    %1970 = vst [vmem:[#allocation8 + $0x10] sm:$0xc0] %v1926
    %1971 = vst [vmem:[#allocation8 + $0x18] sm:$0xc0] %v1927
    // Predicated region
    $region26: #{tpu_custom_call.1} parent=1 // pred_check
      _
    $region27: #{tpu_custom_call.1} parent=1 // pred_check_branch
      %1973 = sbr.rel (0) target = $region29
    $region28: #{tpu_custom_call.1} parent=1 // pred_region
      %s1975 = ssub.s32 512, 512
      %1976 = vsyncadd [#allocation4], %s1975
      %s1977 = sshll.u32 [#allocation8], 4
      %s1978 = int_to_ptr.vmem [resolvable:$true] %s1977
      %1983 = dma.vmem_to_hbm [thread:$0]  %s1978, 512, %s3, [#allocation4], 256, 256, 16
    $region29: #{tpu_custom_call.1} parent=1 // pred_fallthru
      _
    // Predicated region
    $region30: #{tpu_custom_call.1} parent=1 // pred_check
      _
    $region31: #{tpu_custom_call.1} parent=1 // pred_check_branch
      %1985 = sbr.rel (0) target = $region33
    $region32: #{tpu_custom_call.1} parent=1 // pred_region
      %1986 = dma.done [#allocation4], 512
    $region33: #{tpu_custom_call.1} parent=1 // pred_fallthru
      _
    %1987 = vsyncpa [#allocation3], 1
    %1988 = vsyncpa [#allocation6], 1
    %1989 = vsyncpa [#allocation4], 1

</llo_original>
